<compile_context>
chip_gen: v7x
topology: tpu7x:2x2x1
jax: 0.10.0
libtpu: 0.0.40
codegen_flags: <defaults>
</compile_context>

<pallas_src>
import functools

import jax
import jax.numpy as jnp
from jax import lax
from jax.experimental import pallas as pl
from jax.experimental.pallas import tpu as pltpu

SOFT_NN_TEMP = 0.1  # softmax temperature used by Soft_NN (corr_type='soft')


# ---------------------------------------------------------------------------
# Fused kernel: Soft_NN + filtering MLP (1x1-conv equivalent) + weighted-Kabsch
# partial sums.  One invocation handles one (batch, source-tile) pair against
# the full (VMEM-resident) target cloud.
# ---------------------------------------------------------------------------
def _fused_pairwise_kernel(
    xyz_s4_ref,   # [1, 4, tn]  f32  source points^T, homogeneous (x,y,z,1 rows)
    xyz_t4_ref,   # [1, M, 4]   f32  target points, homogeneous (ones column)
    f_s_ref,      # [1, tn, Cp] bf16 source desc * 2/T, spare channel = -1/T
    f_t_ref,      # [1, M, Cp]  bf16 target desc, spare channel = |f_t|^2
    w1s_ref,      # [4, H] f32  filtering-net W1 rows for xyz_s (row 3 zero)
    w1t_ref,      # [4, H] f32  filtering-net W1 rows for nn    (row 3 zero)
    b1_ref,       # [H, 1] f32
    w2_ref,       # [H, 1] f32
    b2_ref,       # [1, 1] f32
    nn4_ref,      # [1, 4, tn]   f32 out : soft-NN coords^T (row 3 ~ 1, unused)
    w_ref,        # [1, 1, tn]   f32 out : per-correspondence weights
    kab_ref,      # [1, 1, 4, 4] f32 out : [S | sum w*xs ; (sum w*nn)^T | sum w]
):
    fs = f_s_ref[0]          # [tn, Cp] bf16 (already scaled; bias channel = -1/T)
    ft = f_t_ref[0]          # [M, Cp]  bf16 (bias channel = |f_t|^2)
    xt4 = xyz_t4_ref[0]      # [M, 4]   f32
    xs4 = xyz_s4_ref[0]      # [4, tn]  f32

    # ---- Soft_NN similarity: sim[j,i] = (2 f_s[i].f_t[j] - |f_t[j]|^2) / T ----
    # (the |f_s|^2 row term cancels in the softmax; the norm/scale terms ride
    #  the spare descriptor channel so this is a single bf16 MXU matmul)
    sim = lax.dot_general(ft, fs, (((1,), (1,)), ((), ())),
                          preferred_element_type=jnp.float32)        # [M, tn]

    m = jnp.max(sim, axis=0, keepdims=True)                          # [1, tn]
    p = jnp.exp(sim - m)                                             # [M, tn]

    # acc rows 0..2 = sum_j p[j,i] * xyz_t[j]; row 3 = sum_j p[j,i] (softmax denom)
    acc4 = lax.dot_general(xt4, p, (((0,), (0,)), ((), ())),
                           preferred_element_type=jnp.float32)       # [4, tn]
    inv_l = 1.0 / acc4[3:4, :]                                       # [1, tn]
    nn4 = acc4 * inv_l                      # rows 0..2 = soft-NN coords, row 3 = 1

    # ---- filtering network: 6 -> H relu -> 1, weights = relu(tanh(logits)) ----
    # (the 6-channel [xyz_s | nn] concat is replaced by the equivalent split
    #  matmul on the homogeneous 4-row operands with zero-padded weight rows)
    h = (lax.dot_general(w1s_ref[...], xs4, (((0,), (0,)), ((), ())),
                         preferred_element_type=jnp.float32)
         + lax.dot_general(w1t_ref[...], nn4, (((0,), (0,)), ((), ())),
                           preferred_element_type=jnp.float32)
         + b1_ref[...])                                              # [H, tn]
    h = jnp.maximum(h, 0.0)
    logits = (lax.dot_general(w2_ref[...], h, (((0,), (0,)), ((), ())),
                              preferred_element_type=jnp.float32)
              + b2_ref[...])                                         # [1, tn]
    w = jnp.maximum(jnp.tanh(logits), 0.0)                           # [1, tn]

    # lane-dense stores
    nn4_ref[0] = nn4
    w_ref[0] = w

    # ---- weighted-Kabsch raw sums in ONE tiny matmul ----
    # P = w * [xs; 1], Q = [nn; 1]  =>  P Q^T = [[S, sum w*xs],[sum w*nn, sum w]]
    P = xs4 * w                                                      # [4, tn]
    kab_ref[0, 0] = lax.dot_general(P, nn4, (((1,), (1,)), ((), ())),
                                    preferred_element_type=jnp.float32)


# ---------------------------------------------------------------------------
# Full PairwiseReg forward (fused Pallas hot path + tiny plain-JAX 3x3 SVD)
# ---------------------------------------------------------------------------
@functools.partial(jax.jit, static_argnames=("tn",))
def pairwise_reg_forward(xyz_s, xyz_t, f_s, f_t, w1, b1, w2, b2, *, tn=128):
    B, N, C = f_s.shape
    _, M, _ = f_t.shape
    H = w1.shape[1]

    tn = min(tn, N)
    assert N % tn == 0, "N must divide the source tile size"
    assert tn == N or tn % 128 == 0
    NT = N // tn

    inv_t = 1.0 / SOFT_NN_TEMP
    # pad channels to a multiple of 128 (full MXU contraction) with one spare
    # slot carrying the -|f_t|^2 / T softmax bias; fold the 2/T scale into f_s.
    Cp = ((C + 1 + 127) // 128) * 128
    fs_aug = jnp.concatenate(
        [f_s * (2.0 * inv_t),
         jnp.full((B, N, 1), -inv_t, f_s.dtype),
         jnp.zeros((B, N, Cp - C - 1), f_s.dtype)],
        axis=-1).astype(jnp.bfloat16)                            # [B, N, Cp]
    t_sqnorm = jnp.sum(f_t * f_t, axis=-1, keepdims=True)        # [B, M, 1]
    ft_aug = jnp.concatenate(
        [f_t, t_sqnorm, jnp.zeros((B, M, Cp - C - 1), f_t.dtype)],
        axis=-1).astype(jnp.bfloat16)                            # [B, M, Cp]

    # layout plumbing: homogeneous coords; points-on-lanes for the source cloud.
    xyz_s4_T = jnp.transpose(
        jnp.concatenate([xyz_s, jnp.ones((B, N, 1), xyz_s.dtype)], axis=-1),
        (0, 2, 1))                                               # [B, 4, N]
    xyz_t4 = jnp.concatenate(
        [xyz_t, jnp.ones((B, M, 1), xyz_t.dtype)], axis=-1)      # [B, M, 4]

    # filtering-net parameter reshapes (zero row 3 so the homogeneous "1" rows
    # of xs/nn contribute nothing).
    zrow = jnp.zeros((1, H), w1.dtype)
    w1s4 = jnp.concatenate([w1[:3, :], zrow], axis=0)            # [4, H]
    w1t4 = jnp.concatenate([w1[3:6, :], zrow], axis=0)           # [4, H]
    b1c = jnp.reshape(b1, (H, 1))
    w2c = jnp.reshape(w2, (H, 1))
    b2c = jnp.reshape(b2, (1, 1))

    nn4_T, w_out, kab = pl.pallas_call(
        _fused_pairwise_kernel,
        out_shape=(
            jax.ShapeDtypeStruct((B, 4, N), jnp.float32),        # nn^T (+1 row)
            jax.ShapeDtypeStruct((B, 1, N), jnp.float32),        # weights
            jax.ShapeDtypeStruct((B, NT, 4, 4), jnp.float32),    # Kabsch partials
        ),
        grid=(B, NT),
        in_specs=[
            pl.BlockSpec((1, 4, tn), lambda b, ni: (b, 0, ni)),    # xyz_s^T (hom)
            pl.BlockSpec((1, M, 4), lambda b, ni: (b, 0, 0)),      # xyz_t (hom)
            pl.BlockSpec((1, tn, Cp), lambda b, ni: (b, ni, 0)),   # f_s tile
            pl.BlockSpec((1, M, Cp), lambda b, ni: (b, 0, 0)),     # f_t (resident/b)
            pl.BlockSpec((4, H), lambda b, ni: (0, 0)),            # W1 (xyz_s rows)
            pl.BlockSpec((4, H), lambda b, ni: (0, 0)),            # W1 (nn rows)
            pl.BlockSpec((H, 1), lambda b, ni: (0, 0)),            # b1
            pl.BlockSpec((H, 1), lambda b, ni: (0, 0)),            # w2
            pl.BlockSpec((1, 1), lambda b, ni: (0, 0)),            # b2
        ],
        out_specs=(
            pl.BlockSpec((1, 4, tn), lambda b, ni: (b, 0, ni)),
            pl.BlockSpec((1, 1, tn), lambda b, ni: (b, 0, ni)),
            pl.BlockSpec((1, 1, 4, 4), lambda b, ni: (b, ni, 0, 0)),
        ),
        compiler_params=pltpu.CompilerParams(
            dimension_semantics=("parallel", "parallel")),
    )(xyz_s4_T, xyz_t4, fs_aug, ft_aug, w1s4, w1t4, b1c, w2c, b2c)

    # ----- tiny plain-JAX glue: combine partials, 3x3 SVD Kabsch closure -----
    nn = jnp.transpose(nn4_T[:, :3, :], (0, 2, 1))               # [B, N, 3]
    weights = w_out[:, 0, :]                                     # [B, N]

    kab_sum = jnp.sum(kab, axis=1)                               # [B, 4, 4]
    S = kab_sum[:, :3, :3]                                       # sum w xs nn^T
    sum_ws = kab_sum[:, :3, 3]                                   # sum w xs
    sum_wt = kab_sum[:, 3, :3]                                   # sum w nn
    sw = kab_sum[:, 3, 3] + 1e-8                                 # sum w

    mu_s = sum_ws / sw[:, None]                                  # [B, 3]
    mu_t = sum_wt / sw[:, None]                                  # [B, 3]
    cov = S - sum_ws[:, :, None] * mu_t[:, None, :]              # centered cov

    U, _, Vt = jnp.linalg.svd(cov)
    V = jnp.swapaxes(Vt, -1, -2)
    Ut = jnp.swapaxes(U, -1, -2)
    d = jnp.sign(jnp.linalg.det(jnp.matmul(V, Ut)))              # [B]
    D = jnp.stack([jnp.ones_like(d), jnp.ones_like(d), d], axis=-1)
    R = jnp.matmul(V * D[:, None, :], Ut)                        # [B, 3, 3]
    t = mu_t - jnp.einsum("bij,bj->bi", R, mu_s)                 # [B, 3]

    # construct_filtering_input_data: [B, 1, N, 6] "xs" tensor [xyz_s | nn]
    corr = jnp.concatenate([xyz_s, nn], axis=-1)
    filtering_input = {"xs": corr[:, None, :, :]}
    registration_outputs = (weights, R, t)
    return filtering_input, f_s, f_t, registration_outputs


if __name__ == "__main__":
    # small but multi-tile shapes: NT = 2 source tiles, full-M resident target
    B, N, M, C, H = 2, 256, 512, 32, 32

    key = jax.random.PRNGKey(0)
    k_xs, k_xt, k_fs, k_ft, k_w1, k_w2 = jax.random.split(key, 6)

    xyz_s = jax.random.normal(k_xs, (B, N, 3), dtype=jnp.float32)
    xyz_t = jax.random.normal(k_xt, (B, M, 3), dtype=jnp.float32)
    f_s = 0.5 * jax.random.normal(k_fs, (B, N, C), dtype=jnp.float32)
    f_t = 0.5 * jax.random.normal(k_ft, (B, M, C), dtype=jnp.float32)

    # deterministic filtering-network parameters (6 -> H -> 1)
    w1 = 0.1 * jax.random.normal(k_w1, (6, H), dtype=jnp.float32)
    b1 = jnp.zeros((1, H), dtype=jnp.float32)
    w2 = 0.1 * jax.random.normal(k_w2, (H, 1), dtype=jnp.float32)
    b2 = jnp.full((1, 1), 0.5, dtype=jnp.float32)

    out = pairwise_reg_forward(xyz_s, xyz_t, f_s, f_t, w1, b1, w2, b2)
    jax.block_until_ready(out)

    filtering_input, f0, f1, (weights, R, t) = out

    # structural sanity checks (robust to bf16 MXU rounding)
    assert filtering_input["xs"].shape == (B, 1, N, 6)
    assert weights.shape == (B, N)
    assert R.shape == (B, 3, 3) and t.shape == (B, 3)
    assert bool(jnp.all(jnp.isfinite(filtering_input["xs"])))
    assert bool(jnp.all(jnp.isfinite(t)))
    assert bool(jnp.all((weights >= 0.0) & (weights <= 1.0)))
    eye = jnp.eye(3, dtype=jnp.float32)
    ortho_err = float(jnp.max(jnp.abs(jnp.matmul(R, jnp.swapaxes(R, -1, -2)) - eye)))
    det_err = float(jnp.max(jnp.abs(jnp.linalg.det(R) - 1.0)))
    assert ortho_err < 1e-4 and det_err < 1e-4

    print("KERNEL_OK")
</pallas_src>

<mosaic_0001>
module attributes {stable_mosaic.version = 11 : i64} {
  func.func @_fused_pairwise_kernel(%arg0: i32, %arg1: i32, %arg2: memref<1x4x128xf32, #tpu.memory_space<vmem>>, %arg3: memref<1x512x4xf32, #tpu.memory_space<vmem>>, %arg4: memref<1x128x128xbf16, #tpu.memory_space<vmem>>, %arg5: memref<1x512x128xbf16, #tpu.memory_space<vmem>>, %arg6: memref<4x32xf32, #tpu.memory_space<vmem>>, %arg7: memref<4x32xf32, #tpu.memory_space<vmem>>, %arg8: memref<32x1xf32, #tpu.memory_space<vmem>>, %arg9: memref<32x1xf32, #tpu.memory_space<vmem>>, %arg10: memref<1x1xf32, #tpu.memory_space<vmem>>, %arg11: memref<1x4x128xf32, #tpu.memory_space<vmem>>, %arg12: memref<1x1x128xf32, #tpu.memory_space<vmem>>, %arg13: memref<1x1x4x4xf32, #tpu.memory_space<vmem>>) attributes {dimension_semantics = [#tpu.dimension_semantics<parallel>, #tpu.dimension_semantics<parallel>], iteration_bounds = array<i64: 2, 2>, scalar_prefetch = 0 : i64, scratch_operands = 0 : i64, tpu.core_type = #tpu.core_type<tc>, window_params = [{transform_indices = @transform_0, window_bounds = array<i64: 1, 4, 128>}, {transform_indices = @transform_1, window_bounds = array<i64: 1, 512, 4>}, {transform_indices = @transform_2, window_bounds = array<i64: 1, 128, 128>}, {transform_indices = @transform_3, window_bounds = array<i64: 1, 512, 128>}, {pipeline_mode = #tpu.pipeline_mode<synchronous>, transform_indices = @transform_4, window_bounds = array<i64: 4, 32>}, {pipeline_mode = #tpu.pipeline_mode<synchronous>, transform_indices = @transform_5, window_bounds = array<i64: 4, 32>}, {pipeline_mode = #tpu.pipeline_mode<synchronous>, transform_indices = @transform_6, window_bounds = array<i64: 32, 1>}, {pipeline_mode = #tpu.pipeline_mode<synchronous>, transform_indices = @transform_7, window_bounds = array<i64: 32, 1>}, {pipeline_mode = #tpu.pipeline_mode<synchronous>, transform_indices = @transform_8, window_bounds = array<i64: 1, 1>}, {transform_indices = @transform_9, window_bounds = array<i64: 1, 4, 128>}, {transform_indices = @transform_10, window_bounds = array<i64: 1, 1, 128>}, {transform_indices = @transform_11, window_bounds = array<i64: 1, 1, 4, 4>}]} {
    %c0 = arith.constant 0 : index
    %c0_0 = arith.constant 0 : index
    %c0_1 = arith.constant 0 : index
    %0 = vector.load %arg4[%c0, %c0_0, %c0_1] : memref<1x128x128xbf16, #tpu.memory_space<vmem>>, vector<1x128x128xbf16>
    %1 = vector.shape_cast %0 : vector<1x128x128xbf16> to vector<128x128xbf16>
    %c0_2 = arith.constant 0 : index
    %c0_3 = arith.constant 0 : index
    %c0_4 = arith.constant 0 : index
    %2 = vector.load %arg5[%c0_2, %c0_3, %c0_4] : memref<1x512x128xbf16, #tpu.memory_space<vmem>>, vector<1x512x128xbf16>
    %3 = vector.shape_cast %2 : vector<1x512x128xbf16> to vector<512x128xbf16>
    %c0_5 = arith.constant 0 : index
    %c0_6 = arith.constant 0 : index
    %c0_7 = arith.constant 0 : index
    %4 = vector.load %arg3[%c0_5, %c0_6, %c0_7] : memref<1x512x4xf32, #tpu.memory_space<vmem>>, vector<1x512x4xf32>
    %5 = vector.shape_cast %4 : vector<1x512x4xf32> to vector<512x4xf32>
    %c0_8 = arith.constant 0 : index
    %c0_9 = arith.constant 0 : index
    %c0_10 = arith.constant 0 : index
    %6 = vector.load %arg2[%c0_8, %c0_9, %c0_10] : memref<1x4x128xf32, #tpu.memory_space<vmem>>, vector<1x4x128xf32>
    %7 = vector.shape_cast %6 : vector<1x4x128xf32> to vector<4x128xf32>
    %cst = arith.constant dense<0.000000e+00> : vector<512x128xf32>
    %8 = tpu.matmul %3, %1, %cst {dimension_numbers = #tpu.dot_dimension_numbers<[1], [1], [0], [0], [0, 0, 1, 0], [], []>} : vector<512x128xbf16>, vector<128x128xbf16>, vector<512x128xf32> -> vector<512x128xf32>
    %cst_11 = arith.constant dense<0xFF800000> : vector<128xf32>
    %9 = vector.multi_reduction <maximumf>, %8, %cst_11 [0] : vector<512x128xf32> to vector<128xf32>
    %10 = vector.shape_cast %9 : vector<128xf32> to vector<1x128xf32>
    %11 = vector.broadcast %10 : vector<1x128xf32> to vector<512x128xf32>
    %12 = arith.subf %8, %11 : vector<512x128xf32>
    %13 = math.exp %12 : vector<512x128xf32>
    %cst_12 = arith.constant dense<0.000000e+00> : vector<4x128xf32>
    %14 = tpu.matmul %5, %13, %cst_12 {dimension_numbers = #tpu.dot_dimension_numbers<[0], [0], [1], [1], [0, 1, 1, 1], [], []>} : vector<512x4xf32>, vector<512x128xf32>, vector<4x128xf32> -> vector<4x128xf32>
    %15 = vector.extract_strided_slice %14 {offsets = [3, 0], sizes = [1, 128], strides = [1, 1]} : vector<4x128xf32> to vector<1x128xf32>
    %cst_13 = arith.constant 1.000000e+00 : f32
    %16 = vector.broadcast %cst_13 : f32 to vector<1x128xf32>
    %17 = arith.divf %16, %15 : vector<1x128xf32>
    %18 = vector.broadcast %17 : vector<1x128xf32> to vector<4x128xf32>
    %19 = arith.mulf %14, %18 : vector<4x128xf32>
    %c0_14 = arith.constant 0 : index
    %c0_15 = arith.constant 0 : index
    %20 = vector.load %arg6[%c0_14, %c0_15] : memref<4x32xf32, #tpu.memory_space<vmem>>, vector<4x32xf32>
    %cst_16 = arith.constant dense<0.000000e+00> : vector<32x128xf32>
    %21 = tpu.matmul %20, %7, %cst_16 {dimension_numbers = #tpu.dot_dimension_numbers<[0], [0], [1], [1], [0, 1, 1, 1], [], []>} : vector<4x32xf32>, vector<4x128xf32>, vector<32x128xf32> -> vector<32x128xf32>
    %c0_17 = arith.constant 0 : index
    %c0_18 = arith.constant 0 : index
    %22 = vector.load %arg7[%c0_17, %c0_18] : memref<4x32xf32, #tpu.memory_space<vmem>>, vector<4x32xf32>
    %cst_19 = arith.constant dense<0.000000e+00> : vector<32x128xf32>
    %23 = tpu.matmul %22, %19, %cst_19 {dimension_numbers = #tpu.dot_dimension_numbers<[0], [0], [1], [1], [0, 1, 1, 1], [], []>} : vector<4x32xf32>, vector<4x128xf32>, vector<32x128xf32> -> vector<32x128xf32>
    %24 = arith.addf %21, %23 : vector<32x128xf32>
    %c0_20 = arith.constant 0 : index
    %c0_21 = arith.constant 0 : index
    %25 = vector.load %arg8[%c0_20, %c0_21] : memref<32x1xf32, #tpu.memory_space<vmem>>, vector<32x1xf32>
    %26 = vector.broadcast %25 : vector<32x1xf32> to vector<32x128xf32>
    %27 = arith.addf %24, %26 : vector<32x128xf32>
    %cst_22 = arith.constant 0.000000e+00 : f32
    %28 = vector.broadcast %cst_22 : f32 to vector<32x128xf32>
    %29 = arith.maximumf %27, %28 : vector<32x128xf32>
    %c0_23 = arith.constant 0 : index
    %c0_24 = arith.constant 0 : index
    %30 = vector.load %arg9[%c0_23, %c0_24] : memref<32x1xf32, #tpu.memory_space<vmem>>, vector<32x1xf32>
    %cst_25 = arith.constant dense<0.000000e+00> : vector<1x128xf32>
    %31 = tpu.matmul %30, %29, %cst_25 {dimension_numbers = #tpu.dot_dimension_numbers<[0], [0], [1], [1], [0, 1, 1, 1], [], []>} : vector<32x1xf32>, vector<32x128xf32>, vector<1x128xf32> -> vector<1x128xf32>
    %c0_26 = arith.constant 0 : index
    %c0_27 = arith.constant 0 : index
    %32 = vector.load %arg10[%c0_26, %c0_27] : memref<1x1xf32, #tpu.memory_space<vmem>>, vector<1x1xf32>
    %33 = vector.broadcast %32 : vector<1x1xf32> to vector<1x128xf32>
    %34 = arith.addf %31, %33 : vector<1x128xf32>
    %35 = math.tanh %34 : vector<1x128xf32>
    %cst_28 = arith.constant 0.000000e+00 : f32
    %36 = vector.broadcast %cst_28 : f32 to vector<1x128xf32>
    %37 = arith.maximumf %35, %36 : vector<1x128xf32>
    %c0_29 = arith.constant 0 : index
    %c0_30 = arith.constant 0 : index
    %c0_31 = arith.constant 0 : index
    %38 = vector.load %arg11[%c0_29, %c0_30, %c0_31] : memref<1x4x128xf32, #tpu.memory_space<vmem>>, vector<1x4x128xf32>
    %39 = vector.shape_cast %38 : vector<1x4x128xf32> to vector<4x128xf32>
    %40 = vector.shape_cast %19 : vector<4x128xf32> to vector<1x4x128xf32>
    tpu.vector_store %arg11[%c0_29, %c0_30, %c0_31], %40 {strides = array<i32>} : memref<1x4x128xf32, #tpu.memory_space<vmem>>, vector<1x4x128xf32>,
    %c0_32 = arith.constant 0 : index
    %c0_33 = arith.constant 0 : index
    %c0_34 = arith.constant 0 : index
    %41 = vector.load %arg12[%c0_32, %c0_33, %c0_34] : memref<1x1x128xf32, #tpu.memory_space<vmem>>, vector<1x1x128xf32>
    %42 = vector.shape_cast %41 : vector<1x1x128xf32> to vector<1x128xf32>
    %43 = vector.shape_cast %37 : vector<1x128xf32> to vector<1x1x128xf32>
    tpu.vector_store %arg12[%c0_32, %c0_33, %c0_34], %43 {strides = array<i32>} : memref<1x1x128xf32, #tpu.memory_space<vmem>>, vector<1x1x128xf32>,
    %44 = vector.broadcast %37 : vector<1x128xf32> to vector<4x128xf32>
    %45 = arith.mulf %7, %44 : vector<4x128xf32>
    %cst_35 = arith.constant dense<0.000000e+00> : vector<4x4xf32>
    %46 = tpu.matmul %45, %19, %cst_35 {dimension_numbers = #tpu.dot_dimension_numbers<[1], [1], [0], [0], [0, 0, 1, 0], [], []>} : vector<4x128xf32>, vector<4x128xf32>, vector<4x4xf32> -> vector<4x4xf32>
    %c0_36 = arith.constant 0 : index
    %c0_37 = arith.constant 0 : index
    %c0_38 = arith.constant 0 : index
    %c0_39 = arith.constant 0 : index
    %47 = vector.load %arg13[%c0_36, %c0_37, %c0_38, %c0_39] : memref<1x1x4x4xf32, #tpu.memory_space<vmem>>, vector<1x1x4x4xf32>
    %48 = vector.shape_cast %47 : vector<1x1x4x4xf32> to vector<4x4xf32>
    %49 = vector.shape_cast %46 : vector<4x4xf32> to vector<1x1x4x4xf32>
    tpu.vector_store %arg13[%c0_36, %c0_37, %c0_38, %c0_39], %49 {strides = array<i32>} : memref<1x1x4x4xf32, #tpu.memory_space<vmem>>, vector<1x1x4x4xf32>,
    return
  }
  func.func @transform_0(%arg0: i32, %arg1: i32) -> (i32, i32, i32) {
    %c0_i32 = arith.constant 0 : i32
    %c0_i32_0 = arith.constant 0 : i32
    return %arg0, %c0_i32, %arg1 : i32, i32, i32
  }
  func.func @transform_1(%arg0: i32, %arg1: i32) -> (i32, i32, i32) {
    %c0_i32 = arith.constant 0 : i32
    %c0_i32_0 = arith.constant 0 : i32
    %c0_i32_1 = arith.constant 0 : i32
    return %arg0, %c0_i32, %c0_i32_0 : i32, i32, i32
  }
  func.func @transform_2(%arg0: i32, %arg1: i32) -> (i32, i32, i32) {
    %c0_i32 = arith.constant 0 : i32
    %c0_i32_0 = arith.constant 0 : i32
    return %arg0, %arg1, %c0_i32 : i32, i32, i32
  }
  func.func @transform_3(%arg0: i32, %arg1: i32) -> (i32, i32, i32) {
    %c0_i32 = arith.constant 0 : i32
    %c0_i32_0 = arith.constant 0 : i32
    %c0_i32_1 = arith.constant 0 : i32
    return %arg0, %c0_i32, %c0_i32_0 : i32, i32, i32
  }
  func.func @transform_4(%arg0: i32, %arg1: i32) -> (i32, i32) {
    %c0_i32 = arith.constant 0 : i32
    %c0_i32_0 = arith.constant 0 : i32
    %c0_i32_1 = arith.constant 0 : i32
    return %c0_i32, %c0_i32_0 : i32, i32
  }
  func.func @transform_5(%arg0: i32, %arg1: i32) -> (i32, i32) {
    %c0_i32 = arith.constant 0 : i32
    %c0_i32_0 = arith.constant 0 : i32
    %c0_i32_1 = arith.constant 0 : i32
    return %c0_i32, %c0_i32_0 : i32, i32
  }
  func.func @transform_6(%arg0: i32, %arg1: i32) -> (i32, i32) {
    %c0_i32 = arith.constant 0 : i32
    %c0_i32_0 = arith.constant 0 : i32
    %c0_i32_1 = arith.constant 0 : i32
    return %c0_i32, %c0_i32_0 : i32, i32
  }
  func.func @transform_7(%arg0: i32, %arg1: i32) -> (i32, i32) {
    %c0_i32 = arith.constant 0 : i32
    %c0_i32_0 = arith.constant 0 : i32
    %c0_i32_1 = arith.constant 0 : i32
    return %c0_i32, %c0_i32_0 : i32, i32
  }
  func.func @transform_8(%arg0: i32, %arg1: i32) -> (i32, i32) {
    %c0_i32 = arith.constant 0 : i32
    %c0_i32_0 = arith.constant 0 : i32
    %c0_i32_1 = arith.constant 0 : i32
    return %c0_i32, %c0_i32_0 : i32, i32
  }
  func.func @transform_9(%arg0: i32, %arg1: i32) -> (i32, i32, i32) {
    %c0_i32 = arith.constant 0 : i32
    %c0_i32_0 = arith.constant 0 : i32
    return %arg0, %c0_i32, %arg1 : i32, i32, i32
  }
  func.func @transform_10(%arg0: i32, %arg1: i32) -> (i32, i32, i32) {
    %c0_i32 = arith.constant 0 : i32
    %c0_i32_0 = arith.constant 0 : i32
    return %arg0, %c0_i32, %arg1 : i32, i32, i32
  }
  func.func @transform_11(%arg0: i32, %arg1: i32) -> (i32, i32, i32, i32) {
    %c0_i32 = arith.constant 0 : i32
    %c0_i32_0 = arith.constant 0 : i32
    %c0_i32_1 = arith.constant 0 : i32
    return %arg0, %arg1, %c0_i32, %c0_i32_0 : i32, i32, i32, i32
  }
}

</mosaic_0001>

<llo_original>
// kernel: custom-call.57
$region0: #{custom-call.57}
  %s0 = inlined_call_operand.vmem [shape: f32[2,6,3], index: 0, kind: input, shape index: {}]
  %s1 = inlined_call_operand.vmem [shape: f32[2,6,3], index: 1, kind: output, shape index: {0}]
  %s2 = inlined_call_operand.vmem [shape: f32[2,3], index: 2, kind: output, shape index: {1}]
  %3 = xla_tuple %s1, %s2
  $region1: #{custom-call.57} parent=0
    #allocation0 [shape = 'u8[8192]{0}', space=vmem, size = 0x2000, scoped, tag = 'operand span for operand 0']
    #allocation1 [shape = 'u8[8192]{0}', space=vmem, size = 0x2000, scoped, tag = 'operand span for operand 1']
    #allocation2 [shape = 'u8[4096]{0}', space=vmem, size = 0x1000, scoped, tag = 'operand span for operand 2']
    #allocation3 [shape = 'u8[2048]{0}', space=vmem, size = 0x800, scoped, tag = 'packed  for operand 2']
    loop: start=0, step=1, limit=4
    $region2: #{custom-call.57} parent=1 // loop_pre_header
      _
    $region3: #{custom-call.57} parent=1 // loop_header
      %s5 = sphi 0, %s9
      %p6 = scmp.ge.s32.totalorder %s5, 4
      %s12 = sphi 0, %s31
      %s13 = sphi 0, %s27
      %s14 = sphi 0, %s23
      %s15 = sphi 0, %s12
      %s16 = sphi 0, %s13
      %s17 = sphi 0, %s14
      %s18 = sphi 0, %s15
      %s19 = sphi 0, %s16
      %s20 = sphi 0, %s17
      %s46 = sphi 0, %s48
      %s49 = sphi 0, %s46
      %s50 = sphi 0, %s49
      %s66 = sphi 0, %s50
    $region4: #{custom-call.57} parent=1 // loop_header_branch
      %8 = sbr.rel (%p6) target = $region8
    $region5: #{custom-call.57} parent=1 // loop_body
      %s10 = ssub.s32 %s5, 1
      %s11 = ssub.s32 %s5, 2
      %s21 = sadd.s32 1, %s14
      %p22 = scmp.ge.s32.totalorder %s21, 1
      %s23 = scalar_select %p22, 0, %s21
      %s24 = sadd.s32 1, %s13
      %s25 = scalar_select %p22, %s24, %s13
      %p26 = scmp.ge.s32.totalorder %s25, 1
      %s27 = scalar_select %p26, 0, %s25
      %s28 = sadd.s32 1, %s12
      %s29 = scalar_select %p26, %s28, %s12
      %p30 = scmp.ge.s32.totalorder %s29, 2
      %s31 = scalar_select %p30, 0, %s29
      %p32 = scmp.lt.s32.totalorder %s12, 0
      %s33 = ssub.s32 0, %s12
      %s34 = scalar_select %p32, %s33, %s12
      %s35 = sshrl.u32 %s34, 3
      %s36 = ssub.s32 0, %s35
      %s37 = scalar_select %p32, %s36, %s35
      %p38 = scmp.lt.s32.totalorder %s31, 0
      %s39 = ssub.s32 0, %s31
      %s40 = scalar_select %p38, %s39, %s31
      %s41 = sshrl.u32 %s40, 3
      %s42 = ssub.s32 0, %s41
      %s43 = scalar_select %p38, %s42, %s41
      %s44 = ssub.s32 %s37, %s43
      %p45 = scmp.eq.s32.totalorder %s44, 0
      %s47 = sadd.s32 %s46, 1
      %s48 = scalar_select %p45, %s46, %s47
      %p51 = pneg %p45
      %p52 = scmp.eq.s32.totalorder %s5, 1
      %p53 = por %p51, %p52
      %p54 = scmp.ne.s32.totalorder %s46, %s49
      %p55 = scmp.eq.s32.totalorder %s5, 0
      %p56 = por %p54, %p55
      %p57 = scmp.ne.s32.totalorder %s46, %s49
      %p58 = scmp.eq.s32.totalorder %s10, 1
      %p59 = por %p57, %p58
      %p60 = scmp.ne.s32.totalorder %s49, %s50
      %p61 = scmp.eq.s32.totalorder %s10, 0
      %p62 = por %p60, %p61
      %p63 = scmp.ne.s32.totalorder %s49, %s50
      %p64 = scmp.eq.s32.totalorder %s11, 1
      %p65 = por %p63, %p64
      %p67 = scmp.ne.s32.totalorder %s50, %s66
      %p68 = scmp.eq.s32.totalorder %s11, 0
      %p69 = por %p67, %p68
      %p70 = scmp.le.s32.totalorder 1, %s5
      %p71 = scmp.lt.s32.totalorder %s5, 3
      %p72 = pnand %p70, %p71
      %p73 = pneg %p72
      // Predicated region
      $region9: #{custom-call.57} parent=5 // pred_check
        _
      $region10: #{custom-call.57} parent=5 // pred_check_branch
        %75 = sbr.rel (%p72) target = $region12
      $region11: #{custom-call.57} parent=5 // pred_region
        %s76 = ssub.s32 %s5, 1
      $region12: #{custom-call.57} parent=5 // pred_fallthru
        _
      %p77 = scmp.lt.s32.totalorder %s5, 2
      // Predicated region
      $region13: #{custom-call.57} parent=5 // pred_check
        %p78 = pneg %p77
      $region14: #{custom-call.57} parent=5 // pred_check_branch
        %80 = sbr.rel (%p78) target = $region16
      $region15: #{custom-call.57} parent=5 // pred_region
        %s81 = sand.u32 %s5, 1
        %s82 = sand.u32 %s5, 1
        %s83 = smul.addr %s82, 8
        %s84 = scalar_lea.vmem [#allocation0], %s83
        %s85 = sadd.s32 %s14, %s13
        %s86 = sadd.s32 %s85, %s12
        %s87 = smul.addr %s86, 8
        %s88 = scalar_lea.vmem %s0, %s87
        // Predicated region
        $region17: #{custom-call.57} parent=15 // pred_check
          _
        $region18: #{custom-call.57} parent=15 // pred_check_branch
          %90 = sbr.rel (0) target = $region20
        $region19: #{custom-call.57} parent=15 // pred_region
          // Predicated region
          $region21: #{custom-call.57} parent=19 // pred_check
            _
          $region22: #{custom-call.57} parent=19 // pred_check_branch
            %92 = sbr.rel (0) target = $region24
          $region23: #{custom-call.57} parent=19 // pred_region
            // Predicated region
            $region36: #{custom-call.57} parent=23 // pred_check
              _
            $region37: #{custom-call.57} parent=23 // pred_check_branch
              %107 = sbr.rel (0) target = $region39
            $region38: #{custom-call.57} parent=23 // pred_region
              loop: start=0, step=1, limit=1
              $region40: #{custom-call.57} parent=38 // loop_pre_header
                _
              $region41: #{custom-call.57} parent=38 // loop_header
                %s109 = sphi 0, %s113
                %p110 = scmp.ge.s32.totalorder %s109, 1
                %s114 = sphi %s88, %s88
                %s115 = sphi %s84, %s84
              $region42: #{custom-call.57} parent=38 // loop_header_branch
                %112 = sbr.rel (%p110) target = $region46
              $region43: #{custom-call.57} parent=38 // loop_body
                %v116 = vld [vmem:[%s114] sm:$0xff]
                %117 = vst [vmem:[%s115] sm:$0xff] %v116
              $region44: #{custom-call.57} parent=38 // loop_footer
                %s113 = sadd.s32 1, %s109
              $region45: #{custom-call.57} parent=38 // loop_footer_branch
                %108 = sbr.rel target = $region41
              $region46: #{custom-call.57} parent=38 // loop_exit
                _
            $region39: #{custom-call.57} parent=23 // pred_fallthru
              _
            // Predicated region
            $region47: #{custom-call.57} parent=23 // pred_check
              _
            $region48: #{custom-call.57} parent=23 // pred_check_branch
              %119 = sbr.rel target = $region50
            $region49: #{custom-call.57} parent=23 // pred_region
              _
            $region50: #{custom-call.57} parent=23 // pred_fallthru
              _
          $region24: #{custom-call.57} parent=19 // pred_fallthru
            _
          // Predicated region
          $region25: #{custom-call.57} parent=19 // pred_check
            _
          $region26: #{custom-call.57} parent=19 // pred_check_branch
            %94 = sbr.rel target = $region28
          $region27: #{custom-call.57} parent=19 // pred_region
            loop: start=0, step=1, limit=1
            $region29: #{custom-call.57} parent=27 // loop_pre_header
              _
            $region30: #{custom-call.57} parent=27 // loop_header
              %s97 = sphi 0, %s101
              %p98 = scmp.ge.s32.totalorder %s97, 1
              %s102 = sphi %s88, %s88
              %s103 = sphi %s84, %s84
            $region31: #{custom-call.57} parent=27 // loop_header_branch
              %100 = sbr.rel (%p98) target = $region35
            $region32: #{custom-call.57} parent=27 // loop_body
              %v104 = vld [vmem:[%s102] sm:$0xff]
              %105 = vst [vmem:[%s103] sm:$0xff] %v104
            $region33: #{custom-call.57} parent=27 // loop_footer
              %s101 = sadd.s32 1, %s97
            $region34: #{custom-call.57} parent=27 // loop_footer_branch
              %96 = sbr.rel target = $region30
            $region35: #{custom-call.57} parent=27 // loop_exit
              _
          $region28: #{custom-call.57} parent=19 // pred_fallthru
            _
        $region20: #{custom-call.57} parent=15 // pred_fallthru
          _
        %120 = vnop
      $region16: #{custom-call.57} parent=5 // pred_fallthru
        _
      %p121 = scmp.le.s32.totalorder 1, %s5
      %p122 = scmp.lt.s32.totalorder %s5, 3
      %p123 = pnand %p121, %p122
      %p124 = pneg %p123
      // Predicated region
      $region51: #{custom-call.57} parent=5 // pred_check
        _
      $region52: #{custom-call.57} parent=5 // pred_check_branch
        %126 = sbr.rel (%p123) target = $region54
      $region53: #{custom-call.57} parent=5 // pred_region
        #allocation4 [shape = 'f32[6,128]{1,0}', space=vmem, size = 0x1000, scoped, tag = 'scratch for Householder reflectors']
        %s127 = ssub.s32 %s5, 1
        %s128 = sand.u32 %s10, 1
        %s129 = sand.u32 %s10, 1
        %s130 = smul.addr %s129, 8
        %s131 = scalar_lea.vmem [#allocation0], %s130
        %s132 = sand.u32 %s10, 1
        %s133 = sand.u32 %s10, 1
        %s134 = smul.addr %s133, 8
        %s135 = scalar_lea.vmem [#allocation0], %s134
        %s136 = sand.u32 %s10, 1
        %s137 = sand.u32 %s10, 1
        %s138 = smul.addr %s137, 8
        %s139 = scalar_lea.vmem [#allocation1], %s138
        %p140 = pneg %p62
        %p141 = pneg %p59
        %s142 = sand.u32 %s49, 1
        %s143 = sand.u32 %s49, 1
        %s144 = smul.addr %s143, 2
        %s145 = scalar_lea.vmem [#allocation3], %s144
        %p146 = scmp.lt.s32.totalorder %s15, 0
        %s147 = ssub.s32 0, %s15
        %s148 = scalar_select %p146, %s147, %s15
        %s149 = sshrl.u32 %s148, 3
        %s150 = ssub.s32 0, %s149
        %s151 = scalar_select %p146, %s150, %s149
        %s152 = sand.u32 %s15, 7
        %s153 = scalar_lea.vmem [#allocation2], %s152
        %v154 = vld [vmem:[%s131] sm:$0xff]
        %155 = vst [vmem:[%s139] sm:$0xff] %v154
        %156 = vst [vmem:[%s153] sm:$0x1] 0.0
        loop: start=0, step=1, limit=3
        $region55: #{custom-call.57} parent=53 // loop_pre_header
          _
        $region56: #{custom-call.57} parent=53 // loop_header
          %s158 = sphi 0, %s162
          %p159 = scmp.ge.s32.totalorder %s158, 3
        $region57: #{custom-call.57} parent=53 // loop_header_branch
          %161 = sbr.rel (%p159) target = $region61
        $region58: #{custom-call.57} parent=53 // loop_body
          %v163 = vld [vmem:[%s139] sm:$0xff]
          %v164 = vlaneseq
          %v165 = vshrl.u32 %v164, 7
          %v167 = vstv %s158
          %vm168 = vcmp.gt.s32.totalorder %v165, %v167
          %vm169 = vcmp.lt.s32.totalorder %v165, 6
          %vm170 = vmand %vm168, %vm169
          %v171 = vsel %vm170, %v163, 0.0
          %v172 = vmul.f32 %v171, %v171
          %v173 = vrot.slane %v172, 4
          %v174 = vadd.f32 %v172, %v173
          %v175 = vrot.slane %v174, 2
          %v176 = vadd.f32 %v174, %v175
          %v177 = vrot.slane %v176, 1
          %v178 = vadd.f32 %v176, %v177
          %v179 = vrsqrt.pop %v178
          %v180 = vmul.f32 %v178, %v179
          %vm181 = vcmp.eq.f32.partialorder %v178, inf
          %v182 = vsel %vm181, %v178, %v180
          %vm183 = vcmp.eq.f32.partialorder %v178, 0.0
          %v184 = vand.u32 %v178, 2147483648
          %v185 = vsel %vm183, %v184, %v182
          %vm186 = vcmp.eq.f32.partialorder %v178, 0.0
          %s187 = sshrl.u32 %s158, 3
          %s188 = sand.u32 %s158, 7
          %s189 = smul.addr %s187, 8
          %s190 = sadd.s32 %s188, %s189
          %s191 = scalar_lea.vmem %s139, %s190 [#allocation1]
          %v192 = vld [vmem:[%s191] ss:$0 sm:$0xff]
          %v193 = vand.u32 2147483647, %v192
          %v194 = vmax.f32 %v193, 0.0
          %v195 = vand.u32 2147483647, %v185
          %v196 = vmax.f32 %v194, %v195
          %v197 = vrcp.pop %v196
          %v198 = vmul.f32 %v193, %v197
          %v199 = vmul.f32 %v198, %v198
          %v200 = vrcp.pop %v196
          %v201 = vmul.f32 0.0, %v200
          %v202 = vmul.f32 %v201, %v201
          %v203 = vadd.f32 %v199, %v202
          %v204 = vrcp.pop %v196
          %v205 = vmul.f32 %v195, %v204
          %v206 = vmul.f32 %v205, %v205
          %v207 = vadd.f32 %v203, %v206
          %vm208 = vcmp.eq.f32.partialorder %v196, 0.0
          %v209 = vrsqrt.pop %v207
          %v210 = vmul.f32 %v207, %v209
          %vm211 = vcmp.eq.f32.partialorder %v207, inf
          %v212 = vsel %vm211, %v207, %v210
          %vm213 = vcmp.eq.f32.partialorder %v207, 0.0
          %v214 = vand.u32 %v207, 2147483648
          %v215 = vsel %vm213, %v214, %v212
          %v216 = vmul.f32 %v196, %v215
          %v217 = vsel %vm208, 0.0, %v216
          %vm218 = vcmp.lt.f32.partialorder %v192, 0.0
          %v219 = vxor.u32 %v217, 2147483648
          %v220 = vsel %vm218, %v217, %v219
          %v221 = vsub.f32 %v220, %v192
          %v222 = vrcp.pop %v220
          %v223 = vmul.f32 %v221, %v222
          %v224 = vsel %vm186, %v192, %v220
          %v225 = vsel %vm186, 0.0, %v223
          %v226 = vsub.f32 %v192, %v224
          %s227 = smov %s139
          %v228 = vlaneseq
          %v229 = vshrl.u32 %v228, 7
          %v230 = vmov %v229
          %v231 = vld [vmem:[%s227] sm:$0xff]
          %v233 = vstv %s158
          %vm234 = vcmp.gt.s32.totalorder %v230, %v233
          %vm235 = vcmp.lt.s32.totalorder %v230, 6
          %vm236 = vmand %vm234, %vm235
          %v237 = vsel %vm236, %v231, 0.0
          %v238 = vrcp.pop %v226
          %v239 = vmul.f32 %v237, %v238
          %v240 = vsel %vm186, 0.0, %v239
          %v241 = vstv %s158
          %v242 = vlaneseq
          %v243 = vand.u32 %v242, 127
          %vm244 = vcmp.eq.s32.totalorder %v243, %v241
          %v245 = vsel %vm244, %v240, 0.0
          %246 = vadd.xlane.f32.xlu0 %v245
          %v247 = vpop.xlane.xlu0 %246
          %248 = vst [vmem:[#allocation4] sm:$0xff] %v247
          %s249 = scalar_lea.vmem [#allocation4], %s158
          %250 = vst [vmem:[%s249] sm:$0x1] 1.0
          %v251 = vstv %s158
          %v252 = vlaneseq
          %v253 = vand.u32 %v252, 127
          %vm254 = vcmp.eq.s32.totalorder %v253, %v251
          %v255 = vsel %vm254, %v225, 0.0
          %256 = vadd.xlane.f32.xlu0 %v255
          %v257 = vpop.xlane.xlu0 %256
          %v258 = vstv %s158
          %v259 = vlaneseq
          %v260 = vand.u32 %v259, 127
          %vm261 = vcmp.eq.s32.totalorder %v260, %v258
          %v262 = vld [vmem:[%s153] ss:$0 sm:$0xff]
          %v263 = vsel %vm261, %v257, %v262
          %264 = vst [vmem:[%s153] sm:$0x1] %v263
          %s265 = smov %s139
          %s266 = smov [#allocation4]
          %v267 = vlaneseq
          %v268 = vshrl.u32 %v267, 7
          %v269 = vmov %v268
          %v271 = vld [vmem:[%s266] sm:$0xff]
          %v272 = vld [vmem:[%s265] sm:$0xff]
          %v273 = vmul.f32 %v271, %v272
          %vm274 = vcmp.lt.s32.totalorder %v269, 6
          %v275 = vsel %vm274, %v273, 0.0
          %v276 = vrot.slane %v275, 4
          %v277 = vadd.f32 %v275, %v276
          %v278 = vrot.slane %v277, 2
          %v279 = vadd.f32 %v277, %v278
          %v280 = vrot.slane %v279, 1
          %v281 = vadd.f32 %v279, %v280
          %s282 = smov %s265
          %s283 = smov %s266
          %v284 = vlaneseq
          %v285 = vshrl.u32 %v284, 7
          %v286 = vmov %v285
          %v287 = vmul.f32 %v281, %v257
          %v289 = vlaneseq
          %v290 = vand.u32 %v289, 127
          %v291 = vld [vmem:[%s283] sm:$0xff]
          %v292 = vmul.f32 %v291, %v287
          %v293 = vld [vmem:[%s282] sm:$0xff]
          %v294 = vstv %s158
          %vm295 = vcmp.gt.s32.totalorder %v290, %v294
          %v296 = vsub.f32 %v293, %v292
          %v297 = vsel %vm295, %v296, %v293
          %v298 = vstv %s158
          %v299 = vlaneseq
          %v300 = vand.u32 %v299, 127
          %vm301 = vcmp.eq.s32.totalorder %v300, %v298
          %v302 = vstv %s158
          %vm303 = vcmp.ge.s32.totalorder %v286, %v302
          %vm304 = vmand %vm301, %vm303
          %v305 = vsel %vm304, %v291, %v297
          %306 = vst [vmem:[%s282] sm:$0xff] %v305
          %s307 = scalar_lea.vmem %s282, %s158
          %v308 = vld [vmem:[%s307] ss:$0 sm:$0xff]
          %v309 = vstv %s158
          %v310 = vlaneseq
          %v311 = vand.u32 %v310, 127
          %vm312 = vcmp.eq.s32.totalorder %v311, %v309
          %v313 = vsel %vm312, %v224, %v308
          %314 = vst [vmem:[%s307] sm:$0x1] %v313
        $region59: #{custom-call.57} parent=53 // loop_footer
          %s162 = sadd.s32 1, %s158
        $region60: #{custom-call.57} parent=53 // loop_footer_branch
          %157 = sbr.rel target = $region56
        $region61: #{custom-call.57} parent=53 // loop_exit
          _
        %s316 = sshllo.u32 0, 2
        %v318 = vld [vmem:[#allocation2] sm:%s316]
        %s319 = sshllo.u32 0, 2
        %320 = vst [vmem:[%s145] sm:%s319] %v318
        %s321 = sand.u32 %s10, 1
        %s322 = sand.u32 %s10, 1
        %s323 = smul.addr %s322, 8
        %s324 = scalar_lea.vmem [#allocation1], %s323
        %s325 = sand.u32 %s49, 1
        %s326 = sand.u32 %s49, 1
        %s327 = smul.addr %s326, 2
        %s328 = scalar_lea.vmem [#allocation3], %s327
        %s329 = sadd.s32 %s17, %s16
        %s330 = sadd.s32 %s329, %s15
        %s331 = smul.addr %s330, 8
        %s332 = scalar_lea.vmem %s1, %s331
        // Predicated region
        $region62: #{custom-call.57} parent=53 // pred_check
          _
        $region63: #{custom-call.57} parent=53 // pred_check_branch
          %334 = sbr.rel (0) target = $region65
        $region64: #{custom-call.57} parent=53 // pred_region
          // Predicated region
          $region66: #{custom-call.57} parent=64 // pred_check
            _
          $region67: #{custom-call.57} parent=64 // pred_check_branch
            %336 = sbr.rel (0) target = $region69
          $region68: #{custom-call.57} parent=64 // pred_region
            // Predicated region
            $region81: #{custom-call.57} parent=68 // pred_check
              _
            $region82: #{custom-call.57} parent=68 // pred_check_branch
              %351 = sbr.rel (0) target = $region84
            $region83: #{custom-call.57} parent=68 // pred_region
              loop: start=0, step=1, limit=1
              $region85: #{custom-call.57} parent=83 // loop_pre_header
                _
              $region86: #{custom-call.57} parent=83 // loop_header
                %s353 = sphi 0, %s357
                %p354 = scmp.ge.s32.totalorder %s353, 1
                %s358 = sphi %s324, %s324
                %s359 = sphi %s332, %s332
              $region87: #{custom-call.57} parent=83 // loop_header_branch
                %356 = sbr.rel (%p354) target = $region91
              $region88: #{custom-call.57} parent=83 // loop_body
                %v360 = vld [vmem:[%s358] sm:$0xff]
                %361 = vst [vmem:[%s359] sm:$0xff] %v360
              $region89: #{custom-call.57} parent=83 // loop_footer
                %s357 = sadd.s32 1, %s353
              $region90: #{custom-call.57} parent=83 // loop_footer_branch
                %352 = sbr.rel target = $region86
              $region91: #{custom-call.57} parent=83 // loop_exit
                _
            $region84: #{custom-call.57} parent=68 // pred_fallthru
              _
            // Predicated region
            $region92: #{custom-call.57} parent=68 // pred_check
              _
            $region93: #{custom-call.57} parent=68 // pred_check_branch
              %363 = sbr.rel target = $region95
            $region94: #{custom-call.57} parent=68 // pred_region
              _
            $region95: #{custom-call.57} parent=68 // pred_fallthru
              _
          $region69: #{custom-call.57} parent=64 // pred_fallthru
            _
          // Predicated region
          $region70: #{custom-call.57} parent=64 // pred_check
            _
          $region71: #{custom-call.57} parent=64 // pred_check_branch
            %338 = sbr.rel target = $region73
          $region72: #{custom-call.57} parent=64 // pred_region
            loop: start=0, step=1, limit=1
            $region74: #{custom-call.57} parent=72 // loop_pre_header
              _
            $region75: #{custom-call.57} parent=72 // loop_header
              %s341 = sphi 0, %s345
              %p342 = scmp.ge.s32.totalorder %s341, 1
              %s346 = sphi %s324, %s324
              %s347 = sphi %s332, %s332
            $region76: #{custom-call.57} parent=72 // loop_header_branch
              %344 = sbr.rel (%p342) target = $region80
            $region77: #{custom-call.57} parent=72 // loop_body
              %v348 = vld [vmem:[%s346] sm:$0xff]
              %349 = vst [vmem:[%s347] sm:$0xff] %v348
            $region78: #{custom-call.57} parent=72 // loop_footer
              %s345 = sadd.s32 1, %s341
            $region79: #{custom-call.57} parent=72 // loop_footer_branch
              %340 = sbr.rel target = $region75
            $region80: #{custom-call.57} parent=72 // loop_exit
              _
          $region73: #{custom-call.57} parent=64 // pred_fallthru
            _
        $region65: #{custom-call.57} parent=53 // pred_fallthru
          _
        %364 = vnop
        // Predicated region
        $region96: #{custom-call.57} parent=53 // pred_check
          %p365 = pneg %p59
        $region97: #{custom-call.57} parent=53 // pred_check_branch
          %367 = sbr.rel (%p365) target = $region99
        $region98: #{custom-call.57} parent=53 // pred_region
          %p368 = scmp.lt.s32.totalorder %s15, 0
          %s369 = ssub.s32 0, %s15
          %s370 = scalar_select %p368, %s369, %s15
          %s371 = sshrl.u32 %s370, 3
          %s372 = ssub.s32 0, %s371
          %s373 = scalar_select %p368, %s372, %s371
          %s374 = smul.addr %s373, 2
          %s375 = scalar_lea.vmem %s2, %s374
          // Predicated region
          $region100: #{custom-call.57} parent=98 // pred_check
            _
          $region101: #{custom-call.57} parent=98 // pred_check_branch
            %377 = sbr.rel (0) target = $region103
          $region102: #{custom-call.57} parent=98 // pred_region
            // Predicated region
            $region104: #{custom-call.57} parent=102 // pred_check
              _
            $region105: #{custom-call.57} parent=102 // pred_check_branch
              %379 = sbr.rel target = $region107
            $region106: #{custom-call.57} parent=102 // pred_region
              // Predicated region
              $region119: #{custom-call.57} parent=106 // pred_check
                _
              $region120: #{custom-call.57} parent=106 // pred_check_branch
                %394 = sbr.rel (0) target = $region122
              $region121: #{custom-call.57} parent=106 // pred_region
                loop: start=0, step=1, limit=1
                $region123: #{custom-call.57} parent=121 // loop_pre_header
                  _
                $region124: #{custom-call.57} parent=121 // loop_header
                  %s397 = sphi 0, %s401
                  %p398 = scmp.ge.s32.totalorder %s397, 1
                  %s402 = sphi %s328, %s328
                  %s403 = sphi %s375, %s375
                $region125: #{custom-call.57} parent=121 // loop_header_branch
                  %400 = sbr.rel (%p398) target = $region129
                $region126: #{custom-call.57} parent=121 // loop_body
                  %v404 = vld [vmem:[%s402] sm:$0x3]
                  %405 = vst [vmem:[%s403] sm:$0x3] %v404
                $region127: #{custom-call.57} parent=121 // loop_footer
                  %s401 = sadd.s32 1, %s397
                $region128: #{custom-call.57} parent=121 // loop_footer_branch
                  %396 = sbr.rel target = $region124
                $region129: #{custom-call.57} parent=121 // loop_exit
                  _
              $region122: #{custom-call.57} parent=106 // pred_fallthru
                _
            $region107: #{custom-call.57} parent=102 // pred_fallthru
              _
            // Predicated region
            $region108: #{custom-call.57} parent=102 // pred_check
              _
            $region109: #{custom-call.57} parent=102 // pred_check_branch
              %381 = sbr.rel (0) target = $region111
            $region110: #{custom-call.57} parent=102 // pred_region
              loop: start=0, step=1, limit=1
              $region112: #{custom-call.57} parent=110 // loop_pre_header
                _
              $region113: #{custom-call.57} parent=110 // loop_header
                %s384 = sphi 0, %s388
                %p385 = scmp.ge.s32.totalorder %s384, 1
                %s389 = sphi %s328, %s328
                %s390 = sphi %s375, %s375
              $region114: #{custom-call.57} parent=110 // loop_header_branch
                %387 = sbr.rel (%p385) target = $region118
              $region115: #{custom-call.57} parent=110 // loop_body
                %v391 = vld [vmem:[%s389] sm:$0x3]
                %392 = vst [vmem:[%s390] sm:$0x3] %v391
              $region116: #{custom-call.57} parent=110 // loop_footer
                %s388 = sadd.s32 1, %s384
              $region117: #{custom-call.57} parent=110 // loop_footer_branch
                %383 = sbr.rel target = $region113
              $region118: #{custom-call.57} parent=110 // loop_exit
                _
            $region111: #{custom-call.57} parent=102 // pred_fallthru
              _
          $region103: #{custom-call.57} parent=98 // pred_fallthru
            _
          %406 = vnop
        $region99: #{custom-call.57} parent=53 // pred_fallthru
          _
      $region54: #{custom-call.57} parent=5 // pred_fallthru
        _
      %p407 = scmp.le.s32.totalorder 2, %s5
      // Predicated region
      $region130: #{custom-call.57} parent=5 // pred_check
        %p408 = pneg %p407
      $region131: #{custom-call.57} parent=5 // pred_check_branch
        %410 = sbr.rel (%p408) target = $region133
      $region132: #{custom-call.57} parent=5 // pred_region
        %s411 = ssub.s32 %s5, 2
        %s412 = sand.u32 %s11, 1
        %s413 = sand.u32 %s11, 1
        %s414 = smul.addr %s413, 8
        %s415 = scalar_lea.vmem [#allocation1], %s414
        // Predicated region
        $region134: #{custom-call.57} parent=132 // pred_check
          %p416 = pneg %p65
        $region135: #{custom-call.57} parent=132 // pred_check_branch
          %418 = sbr.rel (%p416) target = $region137
        $region136: #{custom-call.57} parent=132 // pred_region
          %s419 = sand.u32 %s50, 1
          %s420 = sand.u32 %s50, 1
          %s421 = smul.addr %s420, 2
          %s422 = scalar_lea.vmem [#allocation3], %s421
        $region137: #{custom-call.57} parent=132 // pred_fallthru
          _
      $region133: #{custom-call.57} parent=5 // pred_fallthru
        _
    $region6: #{custom-call.57} parent=1 // loop_footer
      %s9 = sadd.s32 1, %s5
    $region7: #{custom-call.57} parent=1 // loop_footer_branch
      %4 = sbr.rel target = $region3
    $region8: #{custom-call.57} parent=1 // loop_exit
      _

// kernel: custom-call.58
$region0: #{custom-call.58}
  %s0 = inlined_call_operand.vmem [shape: f32[2,3,3], index: 0, kind: input, shape index: {}]
  %s1 = inlined_call_operand.vmem [shape: f32[2,3,3], index: 1, kind: output, shape index: {}]
  $region1: #{custom-call.58} parent=0
    #allocation0 [shape = 'u8[4096]{0}', space=vmem, size = 0x1000, scoped, tag = 'operand span for operand 0']
    #allocation1 [shape = 'u8[4096]{0}', space=vmem, size = 0x1000, scoped, tag = 'packed  for operand 0']
    #allocation2 [shape = 'u8[4096]{0}', space=vmem, size = 0x1000, scoped, tag = 'operand span for operand 1']
    #allocation3 [shape = 'u8[4096]{0}', space=vmem, size = 0x1000, scoped, tag = 'packed  for operand 1']
    loop: start=0, step=1, limit=4
    $region2: #{custom-call.58} parent=1 // loop_pre_header
      _
    $region3: #{custom-call.58} parent=1 // loop_header
      %s3 = sphi 0, %s7
      %p4 = scmp.ge.s32.totalorder %s3, 4
    $region4: #{custom-call.58} parent=1 // loop_header_branch
      %6 = sbr.rel (%p4) target = $region8
    $region5: #{custom-call.58} parent=1 // loop_body
      %s8 = ssub.s32 %s3, 1
      %s9 = ssub.s32 %s3, 2
      %s10 = sadd.s32 %s3, 1
      %p11 = scmp.le.s32.totalorder 1, %s3
      %p12 = scmp.lt.s32.totalorder %s3, 3
      %p13 = pnand %p11, %p12
      %p14 = pneg %p13
      // Predicated region
      $region9: #{custom-call.58} parent=5 // pred_check
        _
      $region10: #{custom-call.58} parent=5 // pred_check_branch
        %16 = sbr.rel (%p13) target = $region12
      $region11: #{custom-call.58} parent=5 // pred_region
        %s17 = ssub.s32 %s3, 1
      $region12: #{custom-call.58} parent=5 // pred_fallthru
        _
      %p18 = scmp.lt.s32.totalorder %s3, 2
      // Predicated region
      $region13: #{custom-call.58} parent=5 // pred_check
        %p19 = pneg %p18
      $region14: #{custom-call.58} parent=5 // pred_check_branch
        %21 = sbr.rel (%p19) target = $region16
      $region15: #{custom-call.58} parent=5 // pred_region
        %s22 = sand.u32 %s3, 1
        %s23 = sand.u32 %s3, 1
        %s24 = smul.addr %s23, 4
        %s25 = scalar_lea.vmem [#allocation1], %s24
        %s26 = smul.addr %s3, 4
        %s27 = scalar_lea.vmem %s0, %s26
        // Predicated region
        $region17: #{custom-call.58} parent=15 // pred_check
          _
        $region18: #{custom-call.58} parent=15 // pred_check_branch
          %29 = sbr.rel (0) target = $region20
        $region19: #{custom-call.58} parent=15 // pred_region
          // Predicated region
          $region21: #{custom-call.58} parent=19 // pred_check
            _
          $region22: #{custom-call.58} parent=19 // pred_check_branch
            %31 = sbr.rel target = $region24
          $region23: #{custom-call.58} parent=19 // pred_region
            // Predicated region
            $region36: #{custom-call.58} parent=23 // pred_check
              _
            $region37: #{custom-call.58} parent=23 // pred_check_branch
              %46 = sbr.rel (0) target = $region39
            $region38: #{custom-call.58} parent=23 // pred_region
              loop: start=0, step=1, limit=1
              $region40: #{custom-call.58} parent=38 // loop_pre_header
                _
              $region41: #{custom-call.58} parent=38 // loop_header
                %s49 = sphi 0, %s53
                %p50 = scmp.ge.s32.totalorder %s49, 1
                %s54 = sphi %s27, %s27
                %s55 = sphi %s25, %s25
              $region42: #{custom-call.58} parent=38 // loop_header_branch
                %52 = sbr.rel (%p50) target = $region46
              $region43: #{custom-call.58} parent=38 // loop_body
                %v56 = vld [vmem:[%s54] sm:$0xf]
                %57 = vst [vmem:[%s55] sm:$0xf] %v56
              $region44: #{custom-call.58} parent=38 // loop_footer
                %s53 = sadd.s32 1, %s49
              $region45: #{custom-call.58} parent=38 // loop_footer_branch
                %48 = sbr.rel target = $region41
              $region46: #{custom-call.58} parent=38 // loop_exit
                _
            $region39: #{custom-call.58} parent=23 // pred_fallthru
              _
          $region24: #{custom-call.58} parent=19 // pred_fallthru
            _
          // Predicated region
          $region25: #{custom-call.58} parent=19 // pred_check
            _
          $region26: #{custom-call.58} parent=19 // pred_check_branch
            %33 = sbr.rel (0) target = $region28
          $region27: #{custom-call.58} parent=19 // pred_region
            loop: start=0, step=1, limit=1
            $region29: #{custom-call.58} parent=27 // loop_pre_header
              _
            $region30: #{custom-call.58} parent=27 // loop_header
              %s36 = sphi 0, %s40
              %p37 = scmp.ge.s32.totalorder %s36, 1
              %s41 = sphi %s27, %s27
              %s42 = sphi %s25, %s25
            $region31: #{custom-call.58} parent=27 // loop_header_branch
              %39 = sbr.rel (%p37) target = $region35
            $region32: #{custom-call.58} parent=27 // loop_body
              %v43 = vld [vmem:[%s41] sm:$0xf]
              %44 = vst [vmem:[%s42] sm:$0xf] %v43
            $region33: #{custom-call.58} parent=27 // loop_footer
              %s40 = sadd.s32 1, %s36
            $region34: #{custom-call.58} parent=27 // loop_footer_branch
              %35 = sbr.rel target = $region30
            $region35: #{custom-call.58} parent=27 // loop_exit
              _
          $region28: #{custom-call.58} parent=19 // pred_fallthru
            _
        $region20: #{custom-call.58} parent=15 // pred_fallthru
          _
        %58 = vnop
      $region16: #{custom-call.58} parent=5 // pred_fallthru
        _
      %p59 = scmp.le.s32.totalorder 1, %s3
      %p60 = scmp.lt.s32.totalorder %s3, 3
      %p61 = pnand %p59, %p60
      %p62 = pneg %p61
      // Predicated region
      $region47: #{custom-call.58} parent=5 // pred_check
        _
      $region48: #{custom-call.58} parent=5 // pred_check_branch
        %64 = sbr.rel (%p61) target = $region50
      $region49: #{custom-call.58} parent=5 // pred_region
        %s65 = ssub.s32 %s3, 1
        %s66 = sand.u32 %s8, 1
        %s67 = sand.u32 %s8, 1
        %s68 = smul.addr %s67, 4
        %s69 = scalar_lea.vmem [#allocation1], %s68
        %s70 = sand.u32 %s8, 1
        %s71 = sand.u32 %s8, 1
        %s72 = smul.addr %s71, 4
        %s73 = scalar_lea.vmem [#allocation1], %s72
        %s74 = sand.u32 %s8, 1
        %s75 = sand.u32 %s8, 1
        %s76 = smul.addr %s75, 4
        %s77 = scalar_lea.vmem [#allocation3], %s76
        %s79 = sshllo.u32 0, 4
        %v80 = vld [vmem:[%s73] sm:%s79]
        %81 = vst [vmem:[#allocation0] sm:%s79] %v80
        %v82 = vlaneseq
        %v83 = vand.u32 %v82, 127
        %v84 = vlaneseq
        %v85 = vshrl.u32 %v84, 7
        %vm87 = vcmp.eq.s32.totalorder %v83, %v85
        %v88 = vld [vmem:[#allocation0] sm:$0xff]
        %v89 = vlaneseq
        %v90 = vand.u32 %v89, 127
        %vm91 = vcmp.eq.s32.totalorder %v90, 0
        %v92 = vsel %vm91, %v88, 1.0
        %v93 = vsel %vm87, %v92, 0.0
        %s94 = scalar_lea.vmem [#allocation0], 1
        %v95 = vld [vmem:[%s94] ss:$0 sm:$0xff]
        %vm96 = vcmask 23552
        %v97 = vsel %vm96, %v95, 0.0
        %v98 = vlaneseq
        %v99 = vand.u32 %v98, 127
        %vm100 = vcmp.eq.s32.totalorder %v99, 1
        %v101 = vmul.f32 %v97, %v93
        %102 = vadd.xlane.f32.xlu0 %v101
        %v103 = vpop.xlane.xlu0 %102
        %v104 = vsel %vm100, %v103, %v93
        %s105 = scalar_lea.vmem [#allocation0], 2
        %v106 = vld [vmem:[%s105] ss:$0 sm:$0xff]
        %vm107 = vcmask 23552
        %v108 = vsel %vm107, %v106, 0.0
        %v109 = vlaneseq
        %v110 = vand.u32 %v109, 127
        %vm111 = vcmp.eq.s32.totalorder %v110, 2
        %v112 = vmul.f32 %v108, %v104
        %113 = vadd.xlane.f32.xlu0 %v112
        %v114 = vpop.xlane.xlu0 %113
        %v115 = vsel %vm111, %v114, %v104
        %116 = vst [vmem:[#allocation2] sm:$0xff] %v115
        %s118 = sshllo.u32 0, 4
        %v120 = vld [vmem:[#allocation2] sm:%s118]
        %s121 = sshllo.u32 0, 4
        %122 = vst [vmem:[%s77] sm:%s121] %v120
        %s123 = sand.u32 %s8, 1
        %s124 = sand.u32 %s8, 1
        %s125 = smul.addr %s124, 4
        %s126 = scalar_lea.vmem [#allocation3], %s125
        %s127 = smul.addr %s8, 4
        %s128 = scalar_lea.vmem %s1, %s127
        // Predicated region
        $region51: #{custom-call.58} parent=49 // pred_check
          _
        $region52: #{custom-call.58} parent=49 // pred_check_branch
          %130 = sbr.rel (0) target = $region54
        $region53: #{custom-call.58} parent=49 // pred_region
          // Predicated region
          $region55: #{custom-call.58} parent=53 // pred_check
            _
          $region56: #{custom-call.58} parent=53 // pred_check_branch
            %132 = sbr.rel target = $region58
          $region57: #{custom-call.58} parent=53 // pred_region
            // Predicated region
            $region70: #{custom-call.58} parent=57 // pred_check
              _
            $region71: #{custom-call.58} parent=57 // pred_check_branch
              %147 = sbr.rel (0) target = $region73
            $region72: #{custom-call.58} parent=57 // pred_region
              loop: start=0, step=1, limit=1
              $region74: #{custom-call.58} parent=72 // loop_pre_header
                _
              $region75: #{custom-call.58} parent=72 // loop_header
                %s150 = sphi 0, %s154
                %p151 = scmp.ge.s32.totalorder %s150, 1
                %s155 = sphi %s126, %s126
                %s156 = sphi %s128, %s128
              $region76: #{custom-call.58} parent=72 // loop_header_branch
                %153 = sbr.rel (%p151) target = $region80
              $region77: #{custom-call.58} parent=72 // loop_body
                %v157 = vld [vmem:[%s155] sm:$0xf]
                %158 = vst [vmem:[%s156] sm:$0xf] %v157
              $region78: #{custom-call.58} parent=72 // loop_footer
                %s154 = sadd.s32 1, %s150
              $region79: #{custom-call.58} parent=72 // loop_footer_branch
                %149 = sbr.rel target = $region75
              $region80: #{custom-call.58} parent=72 // loop_exit
                _
            $region73: #{custom-call.58} parent=57 // pred_fallthru
              _
          $region58: #{custom-call.58} parent=53 // pred_fallthru
            _
          // Predicated region
          $region59: #{custom-call.58} parent=53 // pred_check
            _
          $region60: #{custom-call.58} parent=53 // pred_check_branch
            %134 = sbr.rel (0) target = $region62
          $region61: #{custom-call.58} parent=53 // pred_region
            loop: start=0, step=1, limit=1
            $region63: #{custom-call.58} parent=61 // loop_pre_header
              _
            $region64: #{custom-call.58} parent=61 // loop_header
              %s137 = sphi 0, %s141
              %p138 = scmp.ge.s32.totalorder %s137, 1
              %s142 = sphi %s126, %s126
              %s143 = sphi %s128, %s128
            $region65: #{custom-call.58} parent=61 // loop_header_branch
              %140 = sbr.rel (%p138) target = $region69
            $region66: #{custom-call.58} parent=61 // loop_body
              %v144 = vld [vmem:[%s142] sm:$0xf]
              %145 = vst [vmem:[%s143] sm:$0xf] %v144
            $region67: #{custom-call.58} parent=61 // loop_footer
              %s141 = sadd.s32 1, %s137
            $region68: #{custom-call.58} parent=61 // loop_footer_branch
              %136 = sbr.rel target = $region64
            $region69: #{custom-call.58} parent=61 // loop_exit
              _
          $region62: #{custom-call.58} parent=53 // pred_fallthru
            _
        $region54: #{custom-call.58} parent=49 // pred_fallthru
          _
        %159 = vnop
      $region50: #{custom-call.58} parent=5 // pred_fallthru
        _
      %p160 = scmp.le.s32.totalorder 2, %s3
      // Predicated region
      $region81: #{custom-call.58} parent=5 // pred_check
        %p161 = pneg %p160
      $region82: #{custom-call.58} parent=5 // pred_check_branch
        %163 = sbr.rel (%p161) target = $region84
      $region83: #{custom-call.58} parent=5 // pred_region
        %s164 = ssub.s32 %s3, 2
        %s165 = sand.u32 %s9, 1
        %s166 = sand.u32 %s9, 1
        %s167 = smul.addr %s166, 4
        %s168 = scalar_lea.vmem [#allocation3], %s167
      $region84: #{custom-call.58} parent=5 // pred_fallthru
        _
    $region6: #{custom-call.58} parent=1 // loop_footer
      %s7 = sadd.s32 1, %s3
    $region7: #{custom-call.58} parent=1 // loop_footer_branch
      %2 = sbr.rel target = $region3
    $region8: #{custom-call.58} parent=1 // loop_exit
      _

// kernel: custom-call.50
$region0: #{custom-call.50}
  %s0 = inlined_call_operand.hbm [shape: pred[2], index: 0, kind: output, shape index: {}]

// kernel: custom-call.55
$region0: #{custom-call.55}
  %s0 = inlined_call_operand.vmem [shape: f32[2,3,3], index: 0, kind: input, shape index: {}]
  %s1 = inlined_call_operand.vmem [shape: f32[2,3,3], index: 1, kind: output, shape index: {}]
  $region1: #{custom-call.55} parent=0
    #allocation0 [shape = 'u8[4096]{0}', space=vmem, size = 0x1000, scoped, tag = 'operand span for operand 0']
    #allocation1 [shape = 'u8[4096]{0}', space=vmem, size = 0x1000, scoped, tag = 'packed  for operand 0']
    #allocation2 [shape = 'u8[4096]{0}', space=vmem, size = 0x1000, scoped, tag = 'operand span for operand 1']
    #allocation3 [shape = 'u8[4096]{0}', space=vmem, size = 0x1000, scoped, tag = 'packed  for operand 1']
    loop: start=0, step=1, limit=4
    $region2: #{custom-call.55} parent=1 // loop_pre_header
      _
    $region3: #{custom-call.55} parent=1 // loop_header
      %s3 = sphi 0, %s7
      %p4 = scmp.ge.s32.totalorder %s3, 4
      %s10 = sphi 0, %s29
      %s11 = sphi 0, %s25
      %s12 = sphi 0, %s21
      %s13 = sphi 0, %s10
      %s14 = sphi 0, %s11
      %s15 = sphi 0, %s12
      %s16 = sphi 0, %s13
      %s17 = sphi 0, %s14
      %s18 = sphi 0, %s15
    $region4: #{custom-call.55} parent=1 // loop_header_branch
      %6 = sbr.rel (%p4) target = $region8
    $region5: #{custom-call.55} parent=1 // loop_body
      %s8 = ssub.s32 %s3, 1
      %s9 = ssub.s32 %s3, 2
      %s19 = sadd.s32 1, %s12
      %p20 = scmp.ge.s32.totalorder %s19, 1
      %s21 = scalar_select %p20, 0, %s19
      %s22 = sadd.s32 1, %s11
      %s23 = scalar_select %p20, %s22, %s11
      %p24 = scmp.ge.s32.totalorder %s23, 1
      %s25 = scalar_select %p24, 0, %s23
      %s26 = sadd.s32 1, %s10
      %s27 = scalar_select %p24, %s26, %s10
      %p28 = scmp.ge.s32.totalorder %s27, 2
      %s29 = scalar_select %p28, 0, %s27
      %p30 = scmp.le.s32.totalorder 1, %s3
      %p31 = scmp.lt.s32.totalorder %s3, 3
      %p32 = pnand %p30, %p31
      %p33 = pneg %p32
      // Predicated region
      $region9: #{custom-call.55} parent=5 // pred_check
        _
      $region10: #{custom-call.55} parent=5 // pred_check_branch
        %35 = sbr.rel (%p32) target = $region12
      $region11: #{custom-call.55} parent=5 // pred_region
        %s36 = ssub.s32 %s3, 1
      $region12: #{custom-call.55} parent=5 // pred_fallthru
        _
      %p37 = scmp.lt.s32.totalorder %s3, 2
      // Predicated region
      $region13: #{custom-call.55} parent=5 // pred_check
        %p38 = pneg %p37
      $region14: #{custom-call.55} parent=5 // pred_check_branch
        %40 = sbr.rel (%p38) target = $region16
      $region15: #{custom-call.55} parent=5 // pred_region
        %s41 = sand.u32 %s3, 1
        %s42 = sand.u32 %s3, 1
        %s43 = smul.addr %s42, 4
        %s44 = scalar_lea.vmem [#allocation1], %s43
        %s45 = sadd.s32 %s12, %s11
        %s46 = sadd.s32 %s45, %s10
        %s47 = smul.addr %s46, 4
        %s48 = scalar_lea.vmem %s0, %s47
        // Predicated region
        $region17: #{custom-call.55} parent=15 // pred_check
          _
        $region18: #{custom-call.55} parent=15 // pred_check_branch
          %50 = sbr.rel (0) target = $region20
        $region19: #{custom-call.55} parent=15 // pred_region
          // Predicated region
          $region21: #{custom-call.55} parent=19 // pred_check
            _
          $region22: #{custom-call.55} parent=19 // pred_check_branch
            %52 = sbr.rel target = $region24
          $region23: #{custom-call.55} parent=19 // pred_region
            // Predicated region
            $region36: #{custom-call.55} parent=23 // pred_check
              _
            $region37: #{custom-call.55} parent=23 // pred_check_branch
              %67 = sbr.rel (0) target = $region39
            $region38: #{custom-call.55} parent=23 // pred_region
              loop: start=0, step=1, limit=1
              $region40: #{custom-call.55} parent=38 // loop_pre_header
                _
              $region41: #{custom-call.55} parent=38 // loop_header
                %s70 = sphi 0, %s74
                %p71 = scmp.ge.s32.totalorder %s70, 1
                %s75 = sphi %s48, %s48
                %s76 = sphi %s44, %s44
              $region42: #{custom-call.55} parent=38 // loop_header_branch
                %73 = sbr.rel (%p71) target = $region46
              $region43: #{custom-call.55} parent=38 // loop_body
                %v77 = vld [vmem:[%s75] sm:$0xf]
                %78 = vst [vmem:[%s76] sm:$0xf] %v77
              $region44: #{custom-call.55} parent=38 // loop_footer
                %s74 = sadd.s32 1, %s70
              $region45: #{custom-call.55} parent=38 // loop_footer_branch
                %69 = sbr.rel target = $region41
              $region46: #{custom-call.55} parent=38 // loop_exit
                _
            $region39: #{custom-call.55} parent=23 // pred_fallthru
              _
          $region24: #{custom-call.55} parent=19 // pred_fallthru
            _
          // Predicated region
          $region25: #{custom-call.55} parent=19 // pred_check
            _
          $region26: #{custom-call.55} parent=19 // pred_check_branch
            %54 = sbr.rel (0) target = $region28
          $region27: #{custom-call.55} parent=19 // pred_region
            loop: start=0, step=1, limit=1
            $region29: #{custom-call.55} parent=27 // loop_pre_header
              _
            $region30: #{custom-call.55} parent=27 // loop_header
              %s57 = sphi 0, %s61
              %p58 = scmp.ge.s32.totalorder %s57, 1
              %s62 = sphi %s48, %s48
              %s63 = sphi %s44, %s44
            $region31: #{custom-call.55} parent=27 // loop_header_branch
              %60 = sbr.rel (%p58) target = $region35
            $region32: #{custom-call.55} parent=27 // loop_body
              %v64 = vld [vmem:[%s62] sm:$0xf]
              %65 = vst [vmem:[%s63] sm:$0xf] %v64
            $region33: #{custom-call.55} parent=27 // loop_footer
              %s61 = sadd.s32 1, %s57
            $region34: #{custom-call.55} parent=27 // loop_footer_branch
              %56 = sbr.rel target = $region30
            $region35: #{custom-call.55} parent=27 // loop_exit
              _
          $region28: #{custom-call.55} parent=19 // pred_fallthru
            _
        $region20: #{custom-call.55} parent=15 // pred_fallthru
          _
        %79 = vnop
      $region16: #{custom-call.55} parent=5 // pred_fallthru
        _
      %p80 = scmp.le.s32.totalorder 1, %s3
      %p81 = scmp.lt.s32.totalorder %s3, 3
      %p82 = pnand %p80, %p81
      %p83 = pneg %p82
      // Predicated region
      $region47: #{custom-call.55} parent=5 // pred_check
        _
      $region48: #{custom-call.55} parent=5 // pred_check_branch
        %85 = sbr.rel (%p82) target = $region50
      $region49: #{custom-call.55} parent=5 // pred_region
        %s86 = ssub.s32 %s3, 1
        %s87 = sand.u32 %s8, 1
        %s88 = sand.u32 %s8, 1
        %s89 = smul.addr %s88, 4
        %s90 = scalar_lea.vmem [#allocation1], %s89
        %s91 = sand.u32 %s8, 1
        %s92 = sand.u32 %s8, 1
        %s93 = smul.addr %s92, 4
        %s94 = scalar_lea.vmem [#allocation1], %s93
        %s95 = sand.u32 %s8, 1
        %s96 = sand.u32 %s8, 1
        %s97 = smul.addr %s96, 4
        %s98 = scalar_lea.vmem [#allocation3], %s97
        %s100 = sshllo.u32 0, 4
        %v101 = vld [vmem:[%s94] sm:%s100]
        %102 = vst [vmem:[#allocation0] sm:%s100] %v101
        %103 = vst [vmem:[#allocation2] sm:$0xff] 0.0
        %vm104 = vcmask 7168
        %v105 = vld [vmem:[#allocation2] ss:$0 sm:$0xff]
        %v106 = vld [vmem:[#allocation0] ss:$0 sm:$0xff]
        %v107 = vmul.f32 %v105, %v105
        %108 = vadd.xlane.f32.xlu0 %v107
        %v109 = vpop.xlane.xlu0 %108
        %v110 = vsub.f32 %v106, %v109
        %v111 = vrsqrt.pop %v110
        %v112 = vld [vmem:[#allocation0] sm:$0xff]
        %v113 = vld [vmem:[#allocation2] sm:$0xff]
        %v114 = vmul.f32 %v113, %v105
        %115 = vadd.xlane.f32.xlu0 %v114
        %v116 = vpop.xlane.xlu0 %115
        %v117 = vsub.f32 %v112, %v116
        %v118 = vmul.f32 %v117, %v111
        %v119 = vsel %vm104, %v118, 0.0
        %v120 = vadd.f32 %v113, %v119
        %121 = vst [vmem:[#allocation2] sm:$0xff] %v120
        %vm122 = vcmask 15368
        %s123 = scalar_lea.vmem [#allocation2], 1
        %v124 = vld [vmem:[%s123] ss:$0 sm:$0xff]
        %s125 = scalar_lea.vmem [#allocation0], 1
        %v126 = vld [vmem:[%s125] ss:$0 sm:$0xff]
        %v127 = vmul.f32 %v124, %v124
        %128 = vadd.xlane.f32.xlu0 %v127
        %v129 = vpop.xlane.xlu0 %128
        %v130 = vsub.f32 %v126, %v129
        %v131 = vrsqrt.pop %v130
        %v132 = vld [vmem:[#allocation0] sm:$0xff]
        %v133 = vld [vmem:[#allocation2] sm:$0xff]
        %v134 = vmul.f32 %v133, %v124
        %135 = vadd.xlane.f32.xlu0 %v134
        %v136 = vpop.xlane.xlu0 %135
        %v137 = vsub.f32 %v132, %v136
        %v138 = vmul.f32 %v137, %v131
        %vm139 = vcmask 1047553
        %vm140 = vmand %vm122, %vm139
        %v141 = vsel %vm140, %v138, 0.0
        %v142 = vadd.f32 %v133, %v141
        %143 = vst [vmem:[#allocation2] sm:$0xff] %v142
        %vm144 = vcmask 23568
        %s145 = scalar_lea.vmem [#allocation2], 2
        %v146 = vld [vmem:[%s145] ss:$0 sm:$0xff]
        %s147 = scalar_lea.vmem [#allocation0], 2
        %v148 = vld [vmem:[%s147] ss:$0 sm:$0xff]
        %v149 = vmul.f32 %v146, %v146
        %150 = vadd.xlane.f32.xlu0 %v149
        %v151 = vpop.xlane.xlu0 %150
        %v152 = vsub.f32 %v148, %v151
        %v153 = vrsqrt.pop %v152
        %v154 = vld [vmem:[#allocation0] sm:$0xff]
        %v155 = vld [vmem:[#allocation2] sm:$0xff]
        %v156 = vmul.f32 %v155, %v146
        %157 = vadd.xlane.f32.xlu0 %v156
        %v158 = vpop.xlane.xlu0 %157
        %v159 = vsub.f32 %v154, %v158
        %v160 = vmul.f32 %v159, %v153
        %vm161 = vcmask 1047554
        %vm162 = vmand %vm144, %vm161
        %v163 = vsel %vm162, %v160, 0.0
        %v164 = vadd.f32 %v155, %v163
        %165 = vst [vmem:[#allocation2] sm:$0xff] %v164
        %s167 = sshllo.u32 0, 4
        %v169 = vld [vmem:[#allocation2] sm:%s167]
        %s170 = sshllo.u32 0, 4
        %171 = vst [vmem:[%s98] sm:%s170] %v169
        %s172 = sand.u32 %s8, 1
        %s173 = sand.u32 %s8, 1
        %s174 = smul.addr %s173, 4
        %s175 = scalar_lea.vmem [#allocation3], %s174
        %s176 = sadd.s32 %s15, %s14
        %s177 = sadd.s32 %s176, %s13
        %s178 = smul.addr %s177, 4
        %s179 = scalar_lea.vmem %s1, %s178
        // Predicated region
        $region51: #{custom-call.55} parent=49 // pred_check
          _
        $region52: #{custom-call.55} parent=49 // pred_check_branch
          %181 = sbr.rel (0) target = $region54
        $region53: #{custom-call.55} parent=49 // pred_region
          // Predicated region
          $region55: #{custom-call.55} parent=53 // pred_check
            _
          $region56: #{custom-call.55} parent=53 // pred_check_branch
            %183 = sbr.rel target = $region58
          $region57: #{custom-call.55} parent=53 // pred_region
            // Predicated region
            $region70: #{custom-call.55} parent=57 // pred_check
              _
            $region71: #{custom-call.55} parent=57 // pred_check_branch
              %198 = sbr.rel (0) target = $region73
            $region72: #{custom-call.55} parent=57 // pred_region
              loop: start=0, step=1, limit=1
              $region74: #{custom-call.55} parent=72 // loop_pre_header
                _
              $region75: #{custom-call.55} parent=72 // loop_header
                %s201 = sphi 0, %s205
                %p202 = scmp.ge.s32.totalorder %s201, 1
                %s206 = sphi %s175, %s175
                %s207 = sphi %s179, %s179
              $region76: #{custom-call.55} parent=72 // loop_header_branch
                %204 = sbr.rel (%p202) target = $region80
              $region77: #{custom-call.55} parent=72 // loop_body
                %v208 = vld [vmem:[%s206] sm:$0xf]
                %209 = vst [vmem:[%s207] sm:$0xf] %v208
              $region78: #{custom-call.55} parent=72 // loop_footer
                %s205 = sadd.s32 1, %s201
              $region79: #{custom-call.55} parent=72 // loop_footer_branch
                %200 = sbr.rel target = $region75
              $region80: #{custom-call.55} parent=72 // loop_exit
                _
            $region73: #{custom-call.55} parent=57 // pred_fallthru
              _
          $region58: #{custom-call.55} parent=53 // pred_fallthru
            _
          // Predicated region
          $region59: #{custom-call.55} parent=53 // pred_check
            _
          $region60: #{custom-call.55} parent=53 // pred_check_branch
            %185 = sbr.rel (0) target = $region62
          $region61: #{custom-call.55} parent=53 // pred_region
            loop: start=0, step=1, limit=1
            $region63: #{custom-call.55} parent=61 // loop_pre_header
              _
            $region64: #{custom-call.55} parent=61 // loop_header
              %s188 = sphi 0, %s192
              %p189 = scmp.ge.s32.totalorder %s188, 1
              %s193 = sphi %s175, %s175
              %s194 = sphi %s179, %s179
            $region65: #{custom-call.55} parent=61 // loop_header_branch
              %191 = sbr.rel (%p189) target = $region69
            $region66: #{custom-call.55} parent=61 // loop_body
              %v195 = vld [vmem:[%s193] sm:$0xf]
              %196 = vst [vmem:[%s194] sm:$0xf] %v195
            $region67: #{custom-call.55} parent=61 // loop_footer
              %s192 = sadd.s32 1, %s188
            $region68: #{custom-call.55} parent=61 // loop_footer_branch
              %187 = sbr.rel target = $region64
            $region69: #{custom-call.55} parent=61 // loop_exit
              _
          $region62: #{custom-call.55} parent=53 // pred_fallthru
            _
        $region54: #{custom-call.55} parent=49 // pred_fallthru
          _
        %210 = vnop
      $region50: #{custom-call.55} parent=5 // pred_fallthru
        _
      %p211 = scmp.le.s32.totalorder 2, %s3
      // Predicated region
      $region81: #{custom-call.55} parent=5 // pred_check
        %p212 = pneg %p211
      $region82: #{custom-call.55} parent=5 // pred_check_branch
        %214 = sbr.rel (%p212) target = $region84
      $region83: #{custom-call.55} parent=5 // pred_region
        %s215 = ssub.s32 %s3, 2
        %s216 = sand.u32 %s9, 1
        %s217 = sand.u32 %s9, 1
        %s218 = smul.addr %s217, 4
        %s219 = scalar_lea.vmem [#allocation3], %s218
      $region84: #{custom-call.55} parent=5 // pred_fallthru
        _
    $region6: #{custom-call.55} parent=1 // loop_footer
      %s7 = sadd.s32 1, %s3
    $region7: #{custom-call.55} parent=1 // loop_footer_branch
      %2 = sbr.rel target = $region3
    $region8: #{custom-call.55} parent=1 // loop_exit
      _

// kernel: custom-call.56
$region0: #{custom-call.56}
  %s0 = inlined_call_operand.vmem [shape: f32[2,1,3,3], index: 0, kind: input, shape index: {}]
  %s1 = inlined_call_operand.vmem [shape: f32[2,1,3,3], index: 1, kind: output, shape index: {}]
  $region1: #{custom-call.56} parent=0
    #allocation0 [shape = 'u8[4096]{0}', space=vmem, size = 0x1000, scoped, tag = 'operand span for operand 0']
    #allocation1 [shape = 'u8[4096]{0}', space=vmem, size = 0x1000, scoped, tag = 'packed  for operand 0']
    #allocation2 [shape = 'u8[4096]{0}', space=vmem, size = 0x1000, scoped, tag = 'operand span for operand 1']
    #allocation3 [shape = 'u8[4096]{0}', space=vmem, size = 0x1000, scoped, tag = 'packed  for operand 1']
    loop: start=0, step=1, limit=4
    $region2: #{custom-call.56} parent=1 // loop_pre_header
      _
    $region3: #{custom-call.56} parent=1 // loop_header
      %s3 = sphi 0, %s7
      %p4 = scmp.ge.s32.totalorder %s3, 4
      %s10 = sphi 0, %s36
      %s11 = sphi 0, %s32
      %s12 = sphi 0, %s28
      %s13 = sphi 0, %s24
      %s14 = sphi 0, %s10
      %s15 = sphi 0, %s11
      %s16 = sphi 0, %s12
      %s17 = sphi 0, %s13
      %s18 = sphi 0, %s14
      %s19 = sphi 0, %s15
      %s20 = sphi 0, %s16
      %s21 = sphi 0, %s17
    $region4: #{custom-call.56} parent=1 // loop_header_branch
      %6 = sbr.rel (%p4) target = $region8
    $region5: #{custom-call.56} parent=1 // loop_body
      %s8 = ssub.s32 %s3, 1
      %s9 = ssub.s32 %s3, 2
      %s22 = sadd.s32 1, %s13
      %p23 = scmp.ge.s32.totalorder %s22, 1
      %s24 = scalar_select %p23, 0, %s22
      %s25 = sadd.s32 1, %s12
      %s26 = scalar_select %p23, %s25, %s12
      %p27 = scmp.ge.s32.totalorder %s26, 1
      %s28 = scalar_select %p27, 0, %s26
      %s29 = sadd.s32 1, %s11
      %s30 = scalar_select %p27, %s29, %s11
      %p31 = scmp.ge.s32.totalorder %s30, 1
      %s32 = scalar_select %p31, 0, %s30
      %s33 = sadd.s32 1, %s10
      %s34 = scalar_select %p31, %s33, %s10
      %p35 = scmp.ge.s32.totalorder %s34, 2
      %s36 = scalar_select %p35, 0, %s34
      %p37 = scmp.le.s32.totalorder 1, %s3
      %p38 = scmp.lt.s32.totalorder %s3, 3
      %p39 = pnand %p37, %p38
      %p40 = pneg %p39
      // Predicated region
      $region9: #{custom-call.56} parent=5 // pred_check
        _
      $region10: #{custom-call.56} parent=5 // pred_check_branch
        %42 = sbr.rel (%p39) target = $region12
      $region11: #{custom-call.56} parent=5 // pred_region
        %s43 = ssub.s32 %s3, 1
      $region12: #{custom-call.56} parent=5 // pred_fallthru
        _
      %p44 = scmp.lt.s32.totalorder %s3, 2
      // Predicated region
      $region13: #{custom-call.56} parent=5 // pred_check
        %p45 = pneg %p44
      $region14: #{custom-call.56} parent=5 // pred_check_branch
        %47 = sbr.rel (%p45) target = $region16
      $region15: #{custom-call.56} parent=5 // pred_region
        %s48 = sand.u32 %s3, 1
        %s49 = sand.u32 %s3, 1
        %s50 = smul.addr %s49, 4
        %s51 = scalar_lea.vmem [#allocation1], %s50
        %s52 = sadd.s32 %s13, %s12
        %s53 = sadd.s32 %s52, %s11
        %s54 = sadd.s32 %s53, %s10
        %s55 = smul.addr %s54, 4
        %s56 = scalar_lea.vmem %s0, %s55
        // Predicated region
        $region17: #{custom-call.56} parent=15 // pred_check
          _
        $region18: #{custom-call.56} parent=15 // pred_check_branch
          %58 = sbr.rel (0) target = $region20
        $region19: #{custom-call.56} parent=15 // pred_region
          // Predicated region
          $region21: #{custom-call.56} parent=19 // pred_check
            _
          $region22: #{custom-call.56} parent=19 // pred_check_branch
            %60 = sbr.rel target = $region24
          $region23: #{custom-call.56} parent=19 // pred_region
            // Predicated region
            $region36: #{custom-call.56} parent=23 // pred_check
              _
            $region37: #{custom-call.56} parent=23 // pred_check_branch
              %75 = sbr.rel (0) target = $region39
            $region38: #{custom-call.56} parent=23 // pred_region
              loop: start=0, step=1, limit=1
              $region40: #{custom-call.56} parent=38 // loop_pre_header
                _
              $region41: #{custom-call.56} parent=38 // loop_header
                %s78 = sphi 0, %s82
                %p79 = scmp.ge.s32.totalorder %s78, 1
                %s83 = sphi %s56, %s56
                %s84 = sphi %s51, %s51
              $region42: #{custom-call.56} parent=38 // loop_header_branch
                %81 = sbr.rel (%p79) target = $region46
              $region43: #{custom-call.56} parent=38 // loop_body
                %v85 = vld [vmem:[%s83] sm:$0xf]
                %86 = vst [vmem:[%s84] sm:$0xf] %v85
              $region44: #{custom-call.56} parent=38 // loop_footer
                %s82 = sadd.s32 1, %s78
              $region45: #{custom-call.56} parent=38 // loop_footer_branch
                %77 = sbr.rel target = $region41
              $region46: #{custom-call.56} parent=38 // loop_exit
                _
            $region39: #{custom-call.56} parent=23 // pred_fallthru
              _
          $region24: #{custom-call.56} parent=19 // pred_fallthru
            _
          // Predicated region
          $region25: #{custom-call.56} parent=19 // pred_check
            _
          $region26: #{custom-call.56} parent=19 // pred_check_branch
            %62 = sbr.rel (0) target = $region28
          $region27: #{custom-call.56} parent=19 // pred_region
            loop: start=0, step=1, limit=1
            $region29: #{custom-call.56} parent=27 // loop_pre_header
              _
            $region30: #{custom-call.56} parent=27 // loop_header
              %s65 = sphi 0, %s69
              %p66 = scmp.ge.s32.totalorder %s65, 1
              %s70 = sphi %s56, %s56
              %s71 = sphi %s51, %s51
            $region31: #{custom-call.56} parent=27 // loop_header_branch
              %68 = sbr.rel (%p66) target = $region35
            $region32: #{custom-call.56} parent=27 // loop_body
              %v72 = vld [vmem:[%s70] sm:$0xf]
              %73 = vst [vmem:[%s71] sm:$0xf] %v72
            $region33: #{custom-call.56} parent=27 // loop_footer
              %s69 = sadd.s32 1, %s65
            $region34: #{custom-call.56} parent=27 // loop_footer_branch
              %64 = sbr.rel target = $region30
            $region35: #{custom-call.56} parent=27 // loop_exit
              _
          $region28: #{custom-call.56} parent=19 // pred_fallthru
            _
        $region20: #{custom-call.56} parent=15 // pred_fallthru
          _
        %87 = vnop
      $region16: #{custom-call.56} parent=5 // pred_fallthru
        _
      %p88 = scmp.le.s32.totalorder 1, %s3
      %p89 = scmp.lt.s32.totalorder %s3, 3
      %p90 = pnand %p88, %p89
      %p91 = pneg %p90
      // Predicated region
      $region47: #{custom-call.56} parent=5 // pred_check
        _
      $region48: #{custom-call.56} parent=5 // pred_check_branch
        %93 = sbr.rel (%p90) target = $region50
      $region49: #{custom-call.56} parent=5 // pred_region
        #allocation4 [shape = 'f32[3,3]{1,0}', space=vmem, size = 0x1000, scoped, tag = 'rescaled input a']
        %s94 = ssub.s32 %s3, 1
        %s95 = sand.u32 %s8, 1
        %s96 = sand.u32 %s8, 1
        %s97 = smul.addr %s96, 4
        %s98 = scalar_lea.vmem [#allocation1], %s97
        %s99 = sand.u32 %s8, 1
        %s100 = sand.u32 %s8, 1
        %s101 = smul.addr %s100, 4
        %s102 = scalar_lea.vmem [#allocation1], %s101
        %s103 = sand.u32 %s8, 1
        %s104 = sand.u32 %s8, 1
        %s105 = smul.addr %s104, 4
        %s106 = scalar_lea.vmem [#allocation3], %s105
        %s108 = sshllo.u32 0, 4
        %v109 = vld [vmem:[%s102] sm:%s108]
        %110 = vst [vmem:[#allocation0] sm:%s108] %v109
        %v111 = vlaneseq
        %v112 = vand.u32 %v111, 127
        %vm113 = vcmp.lt.s32.totalorder %v112, 3
        %v114 = vlaneseq
        %v115 = vshrl.u32 %v114, 7
        %vm117 = vcmp.eq.s32.totalorder %v115, %v112
        %v118 = vld [vmem:[#allocation0] sm:$0xff]
        %v119 = vsel %vm117, %v118, 0.0
        %120 = vadd.xlane.f32.xlu0 %v119
        %v121 = vpop.xlane.xlu0 %120
        %vm122 = vcmp.ge.s32.totalorder %v115, %v112
        %vm123 = vmand %vm122, %vm113
        %v124 = vsel %vm123, %v118, 0.0
        %v125 = vrcp.pop %v121
        %v126 = vmul.f32 %v124, %v125
        %127 = vst [vmem:[#allocation4] sm:$0xff] %v126
        %v128 = vlaneseq
        %v129 = vand.u32 %v128, 127
        %v130 = vlaneseq
        %v131 = vshrl.u32 %v130, 7
        %vm133 = vcmp.eq.s32.totalorder %v129, %v131
        %v134 = vlaneseq
        %v135 = vand.u32 %v134, 127
        %vm136 = vcmp.eq.s32.totalorder %v135, 0
        %v137 = vsel %vm136, 1.0, -1.0
        %v138 = vsel %vm133, %v137, 0.0
        %s139 = scalar_lea.vmem [#allocation4], 1
        %v140 = vld [vmem:[%s139] ss:$0 sm:$0xff]
        %v141 = vxor.u32 %v140, 2147483648
        %v142 = vlaneseq
        %v143 = vand.u32 %v142, 127
        %vm144 = vcmp.eq.s32.totalorder %v143, 1
        %v145 = vmul.f32 %v141, %v138
        %146 = vadd.xlane.f32.xlu0 %v145
        %v147 = vpop.xlane.xlu0 %146
        %v148 = vsel %vm144, %v147, %v138
        %s149 = scalar_lea.vmem [#allocation4], 2
        %v150 = vld [vmem:[%s149] ss:$0 sm:$0xff]
        %v151 = vxor.u32 %v150, 2147483648
        %v152 = vlaneseq
        %v153 = vand.u32 %v152, 127
        %vm154 = vcmp.eq.s32.totalorder %v153, 2
        %v155 = vmul.f32 %v151, %v148
        %156 = vadd.xlane.f32.xlu0 %v155
        %v157 = vpop.xlane.xlu0 %156
        %v158 = vsel %vm154, %v157, %v148
        %v159 = vrcp.pop %v121
        %v160 = vmul.f32 %v158, %v159
        %vm161 = vweird.f32 %v121
        %v162 = vsel %vm161, %v158, %v160
        %163 = vst [vmem:[#allocation2] sm:$0xff] %v162
        %s165 = sshllo.u32 0, 4
        %v167 = vld [vmem:[#allocation2] sm:%s165]
        %s168 = sshllo.u32 0, 4
        %169 = vst [vmem:[%s106] sm:%s168] %v167
        %s170 = sand.u32 %s8, 1
        %s171 = sand.u32 %s8, 1
        %s172 = smul.addr %s171, 4
        %s173 = scalar_lea.vmem [#allocation3], %s172
        %s174 = sadd.s32 %s17, %s16
        %s175 = sadd.s32 %s174, %s15
        %s176 = sadd.s32 %s175, %s14
        %s177 = smul.addr %s176, 4
        %s178 = scalar_lea.vmem %s1, %s177
        // Predicated region
        $region51: #{custom-call.56} parent=49 // pred_check
          _
        $region52: #{custom-call.56} parent=49 // pred_check_branch
          %180 = sbr.rel (0) target = $region54
        $region53: #{custom-call.56} parent=49 // pred_region
          // Predicated region
          $region55: #{custom-call.56} parent=53 // pred_check
            _
          $region56: #{custom-call.56} parent=53 // pred_check_branch
            %182 = sbr.rel target = $region58
          $region57: #{custom-call.56} parent=53 // pred_region
            // Predicated region
            $region70: #{custom-call.56} parent=57 // pred_check
              _
            $region71: #{custom-call.56} parent=57 // pred_check_branch
              %197 = sbr.rel (0) target = $region73
            $region72: #{custom-call.56} parent=57 // pred_region
              loop: start=0, step=1, limit=1
              $region74: #{custom-call.56} parent=72 // loop_pre_header
                _
              $region75: #{custom-call.56} parent=72 // loop_header
                %s200 = sphi 0, %s204
                %p201 = scmp.ge.s32.totalorder %s200, 1
                %s205 = sphi %s173, %s173
                %s206 = sphi %s178, %s178
              $region76: #{custom-call.56} parent=72 // loop_header_branch
                %203 = sbr.rel (%p201) target = $region80
              $region77: #{custom-call.56} parent=72 // loop_body
                %v207 = vld [vmem:[%s205] sm:$0xf]
                %208 = vst [vmem:[%s206] sm:$0xf] %v207
              $region78: #{custom-call.56} parent=72 // loop_footer
                %s204 = sadd.s32 1, %s200
              $region79: #{custom-call.56} parent=72 // loop_footer_branch
                %199 = sbr.rel target = $region75
              $region80: #{custom-call.56} parent=72 // loop_exit
                _
            $region73: #{custom-call.56} parent=57 // pred_fallthru
              _
          $region58: #{custom-call.56} parent=53 // pred_fallthru
            _
          // Predicated region
          $region59: #{custom-call.56} parent=53 // pred_check
            _
          $region60: #{custom-call.56} parent=53 // pred_check_branch
            %184 = sbr.rel (0) target = $region62
          $region61: #{custom-call.56} parent=53 // pred_region
            loop: start=0, step=1, limit=1
            $region63: #{custom-call.56} parent=61 // loop_pre_header
              _
            $region64: #{custom-call.56} parent=61 // loop_header
              %s187 = sphi 0, %s191
              %p188 = scmp.ge.s32.totalorder %s187, 1
              %s192 = sphi %s173, %s173
              %s193 = sphi %s178, %s178
            $region65: #{custom-call.56} parent=61 // loop_header_branch
              %190 = sbr.rel (%p188) target = $region69
            $region66: #{custom-call.56} parent=61 // loop_body
              %v194 = vld [vmem:[%s192] sm:$0xf]
              %195 = vst [vmem:[%s193] sm:$0xf] %v194
            $region67: #{custom-call.56} parent=61 // loop_footer
              %s191 = sadd.s32 1, %s187
            $region68: #{custom-call.56} parent=61 // loop_footer_branch
              %186 = sbr.rel target = $region64
            $region69: #{custom-call.56} parent=61 // loop_exit
              _
          $region62: #{custom-call.56} parent=53 // pred_fallthru
            _
        $region54: #{custom-call.56} parent=49 // pred_fallthru
          _
        %209 = vnop
      $region50: #{custom-call.56} parent=5 // pred_fallthru
        _
      %p210 = scmp.le.s32.totalorder 2, %s3
      // Predicated region
      $region81: #{custom-call.56} parent=5 // pred_check
        %p211 = pneg %p210
      $region82: #{custom-call.56} parent=5 // pred_check_branch
        %213 = sbr.rel (%p211) target = $region84
      $region83: #{custom-call.56} parent=5 // pred_region
        %s214 = ssub.s32 %s3, 2
        %s215 = sand.u32 %s9, 1
        %s216 = sand.u32 %s9, 1
        %s217 = smul.addr %s216, 4
        %s218 = scalar_lea.vmem [#allocation3], %s217
      $region84: #{custom-call.56} parent=5 // pred_fallthru
        _
    $region6: #{custom-call.56} parent=1 // loop_footer
      %s7 = sadd.s32 1, %s3
    $region7: #{custom-call.56} parent=1 // loop_footer_branch
      %2 = sbr.rel target = $region3
    $region8: #{custom-call.56} parent=1 // loop_exit
      _

// kernel: pairwise_reg_forward.1
$region0: #{pairwise_reg_forward.1}
  #allocation0 [shape = 'u32[]', space=smem, size = 0x4, offset = 0x4, fixed_abs, tag = 'smem constant byte address 0x4 - core index']
  #allocation1 [shape = 'u32[144,128]{1,0:T(1,128)}', space=vmem, size = 0x12000, scoped, tag = 'internal scratch']
  #allocation2 [shape = 'f32[1,1]{1,0:T(1,128)S(1)}', space=vmem, size = 0x200, scoped, tag = 'scoped memory for pairwise_reg_forward.1']
  %s0 = inlined_call_operand.vmem [shape: f32[2,4,256], index: 0, kind: input, shape index: {}]
  %s1 = inlined_call_operand.vmem [shape: f32[2,512,4], index: 1, kind: input, shape index: {}]
  %s2 = inlined_call_operand.vmem [shape: bf16[2,256,128], index: 2, kind: input, shape index: {}]
  %s3 = inlined_call_operand.vmem [shape: bf16[2,512,128], index: 3, kind: input, shape index: {}]
  %s4 = inlined_call_operand.vmem [shape: f32[4,32], index: 4, kind: input, shape index: {}]
  %s5 = inlined_call_operand.vmem [shape: f32[4,32], index: 5, kind: input, shape index: {}]
  %s6 = inlined_call_operand.vmem [shape: f32[32,1], index: 6, kind: input, shape index: {}]
  %s7 = inlined_call_operand.vmem [shape: f32[32,1], index: 7, kind: input, shape index: {}]
  %s8 = inlined_call_operand.<no memory space> [shape: f32[1,1], index: 8, kind: input, shape index: {}]
  %s9 = inlined_call_operand.vmem [shape: f32[2,4,256], index: 9, kind: output, shape index: {0}]
  %s10 = inlined_call_operand.vmem [shape: f32[2,1,256], index: 10, kind: output, shape index: {1}]
  %s11 = inlined_call_operand.vmem [shape: f32[2,2,4,4], index: 11, kind: output, shape index: {2}]
  %12 = xla_tuple %s9, %s10, %s11
  %s13 = sld [smem:[#allocation0]]
  $region85: #{pairwise_reg_forward.1} parent=0
    _
  %s15 = ssub.s32 1, %s13
  %s16 = scalar_select 0, %s15, %s13
  %v17 = vstv %s8
  %18 = vst [vmem:[#allocation2] sm:$0x1] %v17
  loop: start=0, step=1, limit=6
  $region2: #{pairwise_reg_forward.1} parent=0 // loop_pre_header
    _
  $region3: #{pairwise_reg_forward.1} parent=0 // loop_header
    %s20 = sphi 0, %s24
    %p21 = scmp.ge.s32.totalorder %s20, 6
    %s27 = sphi 0, %s39
    %s28 = sphi 0, %s35
    %s29 = sphi 0, %s27
    %s30 = sphi 0, %s28
    %s31 = sphi 0, %s29
    %s32 = sphi 0, %s30
    %s44 = sphi 0, %s46
    %s47 = sphi 0, %s44
    %s48 = sphi 0, %s47
    %s64 = sphi 0, %s48
    %s70 = sphi 0, %s72
    %s73 = sphi 0, %s70
    %s74 = sphi 0, %s73
    %s90 = sphi 0, %s74
    %s98 = sphi 0, %s100
    %s101 = sphi 0, %s98
    %s102 = sphi 0, %s101
    %s118 = sphi 0, %s102
    %s124 = sphi 0, %s126
    %s127 = sphi 0, %s124
    %s128 = sphi 0, %s127
    %s144 = sphi 0, %s128
    %s148 = sphi 0, %s148
    %s150 = sphi 0, %s148
    %s151 = sphi 0, %s150
    %s165 = sphi 0, %s151
    %s169 = sphi 0, %s169
    %s171 = sphi 0, %s169
    %s172 = sphi 0, %s171
    %s186 = sphi 0, %s172
    %s190 = sphi 0, %s190
    %s192 = sphi 0, %s190
    %s193 = sphi 0, %s192
    %s207 = sphi 0, %s193
    %s211 = sphi 0, %s211
    %s213 = sphi 0, %s211
    %s214 = sphi 0, %s213
    %s228 = sphi 0, %s214
    %s232 = sphi 0, %s232
    %s234 = sphi 0, %s232
    %s235 = sphi 0, %s234
    %s249 = sphi 0, %s235
    %s257 = sphi 0, %s259
    %s260 = sphi 0, %s257
    %s261 = sphi 0, %s260
    %s277 = sphi 0, %s261
    %s285 = sphi 0, %s287
    %s288 = sphi 0, %s285
    %s289 = sphi 0, %s288
    %s305 = sphi 0, %s289
    %s313 = sphi 0, %s315
    %s316 = sphi 0, %s313
    %s317 = sphi 0, %s316
    %s333 = sphi 0, %s317
  $region4: #{pairwise_reg_forward.1} parent=0 // loop_header_branch
    %23 = sbr.rel (%p21) target = $region8
  $region5: #{pairwise_reg_forward.1} parent=0 // loop_body
    %s25 = ssub.s32 %s20, 1
    %s26 = ssub.s32 %s20, 2
    %s33 = sadd.s32 1, %s28
    %p34 = scmp.ge.s32.totalorder %s33, 2
    %s35 = scalar_select %p34, 0, %s33
    %s36 = sadd.s32 1, %s27
    %s37 = scalar_select %p34, %s36, %s27
    %p38 = scmp.ge.s32.totalorder %s37, 2
    %s39 = scalar_select %p38, 0, %s37
    %s40 = ssub.s32 %s27, %s39
    %s41 = ssub.s32 %s28, %s35
    %s42 = sor.u32 %s40, %s41
    %p43 = scmp.eq.s32.totalorder %s42, 0
    %s45 = sadd.s32 %s44, 1
    %s46 = scalar_select %p43, %s44, %s45
    %p49 = pneg %p43
    %p50 = scmp.eq.s32.totalorder %s20, 3
    %p51 = por %p49, %p50
    %p52 = scmp.ne.s32.totalorder %s44, %s47
    %p53 = scmp.eq.s32.totalorder %s20, 0
    %p54 = por %p52, %p53
    %p55 = scmp.ne.s32.totalorder %s44, %s47
    %p56 = scmp.eq.s32.totalorder %s25, 3
    %p57 = por %p55, %p56
    %p58 = scmp.ne.s32.totalorder %s47, %s48
    %p59 = scmp.eq.s32.totalorder %s25, 0
    %p60 = por %p58, %p59
    %p61 = scmp.ne.s32.totalorder %s47, %s48
    %p62 = scmp.eq.s32.totalorder %s26, 3
    %p63 = por %p61, %p62
    %p65 = scmp.ne.s32.totalorder %s48, %s64
    %p66 = scmp.eq.s32.totalorder %s26, 0
    %p67 = por %p65, %p66
    %s68 = ssub.s32 %s27, %s39
    %p69 = scmp.eq.s32.totalorder %s68, 0
    %s71 = sadd.s32 %s70, 1
    %s72 = scalar_select %p69, %s70, %s71
    %p75 = pneg %p69
    %p76 = scmp.eq.s32.totalorder %s20, 3
    %p77 = por %p75, %p76
    %p78 = scmp.ne.s32.totalorder %s70, %s73
    %p79 = scmp.eq.s32.totalorder %s20, 0
    %p80 = por %p78, %p79
    %p81 = scmp.ne.s32.totalorder %s70, %s73
    %p82 = scmp.eq.s32.totalorder %s25, 3
    %p83 = por %p81, %p82
    %p84 = scmp.ne.s32.totalorder %s73, %s74
    %p85 = scmp.eq.s32.totalorder %s25, 0
    %p86 = por %p84, %p85
    %p87 = scmp.ne.s32.totalorder %s73, %s74
    %p88 = scmp.eq.s32.totalorder %s26, 3
    %p89 = por %p87, %p88
    %p91 = scmp.ne.s32.totalorder %s74, %s90
    %p92 = scmp.eq.s32.totalorder %s26, 0
    %p93 = por %p91, %p92
    %s94 = ssub.s32 %s27, %s39
    %s95 = ssub.s32 %s28, %s35
    %s96 = sor.u32 %s94, %s95
    %p97 = scmp.eq.s32.totalorder %s96, 0
    %s99 = sadd.s32 %s98, 1
    %s100 = scalar_select %p97, %s98, %s99
    %p103 = pneg %p97
    %p104 = scmp.eq.s32.totalorder %s20, 3
    %p105 = por %p103, %p104
    %p106 = scmp.ne.s32.totalorder %s98, %s101
    %p107 = scmp.eq.s32.totalorder %s20, 0
    %p108 = por %p106, %p107
    %p109 = scmp.ne.s32.totalorder %s98, %s101
    %p110 = scmp.eq.s32.totalorder %s25, 3
    %p111 = por %p109, %p110
    %p112 = scmp.ne.s32.totalorder %s101, %s102
    %p113 = scmp.eq.s32.totalorder %s25, 0
    %p114 = por %p112, %p113
    %p115 = scmp.ne.s32.totalorder %s101, %s102
    %p116 = scmp.eq.s32.totalorder %s26, 3
    %p117 = por %p115, %p116
    %p119 = scmp.ne.s32.totalorder %s102, %s118
    %p120 = scmp.eq.s32.totalorder %s26, 0
    %p121 = por %p119, %p120
    %s122 = ssub.s32 %s27, %s39
    %p123 = scmp.eq.s32.totalorder %s122, 0
    %s125 = sadd.s32 %s124, 1
    %s126 = scalar_select %p123, %s124, %s125
    %p129 = pneg %p123
    %p130 = scmp.eq.s32.totalorder %s20, 3
    %p131 = por %p129, %p130
    %p132 = scmp.ne.s32.totalorder %s124, %s127
    %p133 = scmp.eq.s32.totalorder %s20, 0
    %p134 = por %p132, %p133
    %p135 = scmp.ne.s32.totalorder %s124, %s127
    %p136 = scmp.eq.s32.totalorder %s25, 3
    %p137 = por %p135, %p136
    %p138 = scmp.ne.s32.totalorder %s127, %s128
    %p139 = scmp.eq.s32.totalorder %s25, 0
    %p140 = por %p138, %p139
    %p141 = scmp.ne.s32.totalorder %s127, %s128
    %p142 = scmp.eq.s32.totalorder %s26, 3
    %p143 = por %p141, %p142
    %p145 = scmp.ne.s32.totalorder %s128, %s144
    %p146 = scmp.eq.s32.totalorder %s26, 0
    %p147 = por %p145, %p146
    %s149 = sadd.s32 %s148, 1
    %p152 = scmp.eq.s32.totalorder %s20, 3
    %p153 = scmp.ne.s32.totalorder %s148, %s150
    %p154 = scmp.eq.s32.totalorder %s20, 0
    %p155 = por %p153, %p154
    %p156 = scmp.ne.s32.totalorder %s148, %s150
    %p157 = scmp.eq.s32.totalorder %s25, 3
    %p158 = por %p156, %p157
    %p159 = scmp.ne.s32.totalorder %s150, %s151
    %p160 = scmp.eq.s32.totalorder %s25, 0
    %p161 = por %p159, %p160
    %p162 = scmp.ne.s32.totalorder %s150, %s151
    %p163 = scmp.eq.s32.totalorder %s26, 3
    %p164 = por %p162, %p163
    %p166 = scmp.ne.s32.totalorder %s151, %s165
    %p167 = scmp.eq.s32.totalorder %s26, 0
    %p168 = por %p166, %p167
    %s170 = sadd.s32 %s169, 1
    %p173 = scmp.eq.s32.totalorder %s20, 3
    %p174 = scmp.ne.s32.totalorder %s169, %s171
    %p175 = scmp.eq.s32.totalorder %s20, 0
    %p176 = por %p174, %p175
    %p177 = scmp.ne.s32.totalorder %s169, %s171
    %p178 = scmp.eq.s32.totalorder %s25, 3
    %p179 = por %p177, %p178
    %p180 = scmp.ne.s32.totalorder %s171, %s172
    %p181 = scmp.eq.s32.totalorder %s25, 0
    %p182 = por %p180, %p181
    %p183 = scmp.ne.s32.totalorder %s171, %s172
    %p184 = scmp.eq.s32.totalorder %s26, 3
    %p185 = por %p183, %p184
    %p187 = scmp.ne.s32.totalorder %s172, %s186
    %p188 = scmp.eq.s32.totalorder %s26, 0
    %p189 = por %p187, %p188
    %s191 = sadd.s32 %s190, 1
    %p194 = scmp.eq.s32.totalorder %s20, 3
    %p195 = scmp.ne.s32.totalorder %s190, %s192
    %p196 = scmp.eq.s32.totalorder %s20, 0
    %p197 = por %p195, %p196
    %p198 = scmp.ne.s32.totalorder %s190, %s192
    %p199 = scmp.eq.s32.totalorder %s25, 3
    %p200 = por %p198, %p199
    %p201 = scmp.ne.s32.totalorder %s192, %s193
    %p202 = scmp.eq.s32.totalorder %s25, 0
    %p203 = por %p201, %p202
    %p204 = scmp.ne.s32.totalorder %s192, %s193
    %p205 = scmp.eq.s32.totalorder %s26, 3
    %p206 = por %p204, %p205
    %p208 = scmp.ne.s32.totalorder %s193, %s207
    %p209 = scmp.eq.s32.totalorder %s26, 0
    %p210 = por %p208, %p209
    %s212 = sadd.s32 %s211, 1
    %p215 = scmp.eq.s32.totalorder %s20, 3
    %p216 = scmp.ne.s32.totalorder %s211, %s213
    %p217 = scmp.eq.s32.totalorder %s20, 0
    %p218 = por %p216, %p217
    %p219 = scmp.ne.s32.totalorder %s211, %s213
    %p220 = scmp.eq.s32.totalorder %s25, 3
    %p221 = por %p219, %p220
    %p222 = scmp.ne.s32.totalorder %s213, %s214
    %p223 = scmp.eq.s32.totalorder %s25, 0
    %p224 = por %p222, %p223
    %p225 = scmp.ne.s32.totalorder %s213, %s214
    %p226 = scmp.eq.s32.totalorder %s26, 3
    %p227 = por %p225, %p226
    %p229 = scmp.ne.s32.totalorder %s214, %s228
    %p230 = scmp.eq.s32.totalorder %s26, 0
    %p231 = por %p229, %p230
    %s233 = sadd.s32 %s232, 1
    %p236 = scmp.eq.s32.totalorder %s20, 3
    %p237 = scmp.ne.s32.totalorder %s232, %s234
    %p238 = scmp.eq.s32.totalorder %s20, 0
    %p239 = por %p237, %p238
    %p240 = scmp.ne.s32.totalorder %s232, %s234
    %p241 = scmp.eq.s32.totalorder %s25, 3
    %p242 = por %p240, %p241
    %p243 = scmp.ne.s32.totalorder %s234, %s235
    %p244 = scmp.eq.s32.totalorder %s25, 0
    %p245 = por %p243, %p244
    %p246 = scmp.ne.s32.totalorder %s234, %s235
    %p247 = scmp.eq.s32.totalorder %s26, 3
    %p248 = por %p246, %p247
    %p250 = scmp.ne.s32.totalorder %s235, %s249
    %p251 = scmp.eq.s32.totalorder %s26, 0
    %p252 = por %p250, %p251
    %s253 = ssub.s32 %s27, %s39
    %s254 = ssub.s32 %s28, %s35
    %s255 = sor.u32 %s253, %s254
    %p256 = scmp.eq.s32.totalorder %s255, 0
    %s258 = sadd.s32 %s257, 1
    %s259 = scalar_select %p256, %s257, %s258
    %p262 = pneg %p256
    %p263 = scmp.eq.s32.totalorder %s20, 3
    %p264 = por %p262, %p263
    %p265 = scmp.ne.s32.totalorder %s257, %s260
    %p266 = scmp.eq.s32.totalorder %s20, 0
    %p267 = por %p265, %p266
    %p268 = scmp.ne.s32.totalorder %s257, %s260
    %p269 = scmp.eq.s32.totalorder %s25, 3
    %p270 = por %p268, %p269
    %p271 = scmp.ne.s32.totalorder %s260, %s261
    %p272 = scmp.eq.s32.totalorder %s25, 0
    %p273 = por %p271, %p272
    %p274 = scmp.ne.s32.totalorder %s260, %s261
    %p275 = scmp.eq.s32.totalorder %s26, 3
    %p276 = por %p274, %p275
    %p278 = scmp.ne.s32.totalorder %s261, %s277
    %p279 = scmp.eq.s32.totalorder %s26, 0
    %p280 = por %p278, %p279
    %s281 = ssub.s32 %s27, %s39
    %s282 = ssub.s32 %s28, %s35
    %s283 = sor.u32 %s281, %s282
    %p284 = scmp.eq.s32.totalorder %s283, 0
    %s286 = sadd.s32 %s285, 1
    %s287 = scalar_select %p284, %s285, %s286
    %p290 = pneg %p284
    %p291 = scmp.eq.s32.totalorder %s20, 3
    %p292 = por %p290, %p291
    %p293 = scmp.ne.s32.totalorder %s285, %s288
    %p294 = scmp.eq.s32.totalorder %s20, 0
    %p295 = por %p293, %p294
    %p296 = scmp.ne.s32.totalorder %s285, %s288
    %p297 = scmp.eq.s32.totalorder %s25, 3
    %p298 = por %p296, %p297
    %p299 = scmp.ne.s32.totalorder %s288, %s289
    %p300 = scmp.eq.s32.totalorder %s25, 0
    %p301 = por %p299, %p300
    %p302 = scmp.ne.s32.totalorder %s288, %s289
    %p303 = scmp.eq.s32.totalorder %s26, 3
    %p304 = por %p302, %p303
    %p306 = scmp.ne.s32.totalorder %s289, %s305
    %p307 = scmp.eq.s32.totalorder %s26, 0
    %p308 = por %p306, %p307
    %s309 = ssub.s32 %s27, %s39
    %s310 = ssub.s32 %s28, %s35
    %s311 = sor.u32 %s309, %s310
    %p312 = scmp.eq.s32.totalorder %s311, 0
    %s314 = sadd.s32 %s313, 1
    %s315 = scalar_select %p312, %s313, %s314
    %p318 = pneg %p312
    %p319 = scmp.eq.s32.totalorder %s20, 3
    %p320 = por %p318, %p319
    %p321 = scmp.ne.s32.totalorder %s313, %s316
    %p322 = scmp.eq.s32.totalorder %s20, 0
    %p323 = por %p321, %p322
    %p324 = scmp.ne.s32.totalorder %s313, %s316
    %p325 = scmp.eq.s32.totalorder %s25, 3
    %p326 = por %p324, %p325
    %p327 = scmp.ne.s32.totalorder %s316, %s317
    %p328 = scmp.eq.s32.totalorder %s25, 0
    %p329 = por %p327, %p328
    %p330 = scmp.ne.s32.totalorder %s316, %s317
    %p331 = scmp.eq.s32.totalorder %s26, 3
    %p332 = por %p330, %p331
    %p334 = scmp.ne.s32.totalorder %s317, %s333
    %p335 = scmp.eq.s32.totalorder %s26, 0
    %p336 = por %p334, %p335
    %p337 = scmp.le.s32.totalorder 1, %s20
    %p338 = scmp.lt.s32.totalorder %s20, 5
    %p339 = pnand %p337, %p338
    %p340 = pneg %p339
    // Predicated region
    $region9: #{pairwise_reg_forward.1} parent=5 // pred_check
      _
    $region10: #{pairwise_reg_forward.1} parent=5 // pred_check_branch
      %342 = sbr.rel (%p339) target = $region12
    $region11: #{pairwise_reg_forward.1} parent=5 // pred_region
      %s343 = ssub.s32 %s20, 1
      // Predicated region
      $region13: #{pairwise_reg_forward.1} parent=11 // pred_check
        %p344 = pneg %p161
      $region14: #{pairwise_reg_forward.1} parent=11 // pred_check_branch
        %346 = sbr.rel (%p344) target = $region16
      $region15: #{pairwise_reg_forward.1} parent=11 // pred_region
        _
      $region16: #{pairwise_reg_forward.1} parent=11 // pred_fallthru
        _
      // Predicated region
      $region17: #{pairwise_reg_forward.1} parent=11 // pred_check
        %p347 = pneg %p182
      $region18: #{pairwise_reg_forward.1} parent=11 // pred_check_branch
        %349 = sbr.rel (%p347) target = $region20
      $region19: #{pairwise_reg_forward.1} parent=11 // pred_region
        _
      $region20: #{pairwise_reg_forward.1} parent=11 // pred_fallthru
        _
      // Predicated region
      $region21: #{pairwise_reg_forward.1} parent=11 // pred_check
        %p350 = pneg %p203
      $region22: #{pairwise_reg_forward.1} parent=11 // pred_check_branch
        %352 = sbr.rel (%p350) target = $region24
      $region23: #{pairwise_reg_forward.1} parent=11 // pred_region
        _
      $region24: #{pairwise_reg_forward.1} parent=11 // pred_fallthru
        _
      // Predicated region
      $region25: #{pairwise_reg_forward.1} parent=11 // pred_check
        %p353 = pneg %p224
      $region26: #{pairwise_reg_forward.1} parent=11 // pred_check_branch
        %355 = sbr.rel (%p353) target = $region28
      $region27: #{pairwise_reg_forward.1} parent=11 // pred_region
        _
      $region28: #{pairwise_reg_forward.1} parent=11 // pred_fallthru
        _
      // Predicated region
      $region29: #{pairwise_reg_forward.1} parent=11 // pred_check
        %p356 = pneg %p245
      $region30: #{pairwise_reg_forward.1} parent=11 // pred_check_branch
        %358 = sbr.rel (%p356) target = $region32
      $region31: #{pairwise_reg_forward.1} parent=11 // pred_region
        _
      $region32: #{pairwise_reg_forward.1} parent=11 // pred_fallthru
        _
    $region12: #{pairwise_reg_forward.1} parent=5 // pred_fallthru
      _
    %p359 = scmp.lt.s32.totalorder %s20, 4
    // Predicated region
    $region33: #{pairwise_reg_forward.1} parent=5 // pred_check
      %p360 = pneg %p359
    $region34: #{pairwise_reg_forward.1} parent=5 // pred_check_branch
      %362 = sbr.rel (%p360) target = $region36
    $region35: #{pairwise_reg_forward.1} parent=5 // pred_region
      // Predicated region
      $region37: #{pairwise_reg_forward.1} parent=35 // pred_check
        %p363 = pneg %p54
      $region38: #{pairwise_reg_forward.1} parent=35 // pred_check_branch
        %365 = sbr.rel (%p363) target = $region40
      $region39: #{pairwise_reg_forward.1} parent=35 // pred_region
        %p366 = scmp.lt.s32.totalorder %s27, 1
        %s367 = scalar_select %p366, %s27, 1
        %p368 = scmp.lt.s32.totalorder %s28, 1
        %s369 = scalar_select %p368, %s28, 1
        %s370 = smul.addr %s367, 2
        %s371 = sadd.s32 %s369, %s370
        %s372 = smul.addr %s371, 4
        %s373 = scalar_lea.vmem %s0, %s372
      $region40: #{pairwise_reg_forward.1} parent=35 // pred_fallthru
        _
      // Predicated region
      $region41: #{pairwise_reg_forward.1} parent=35 // pred_check
        %p374 = pneg %p80
      $region42: #{pairwise_reg_forward.1} parent=35 // pred_check_branch
        %376 = sbr.rel (%p374) target = $region44
      $region43: #{pairwise_reg_forward.1} parent=35 // pred_region
        %p377 = scmp.lt.s32.totalorder %s27, 1
        %s378 = scalar_select %p377, %s27, 1
        %s379 = smul.addr %s378, 64
        %s380 = smul.addr %s379, 8
        %s381 = scalar_lea.vmem %s1, %s380
      $region44: #{pairwise_reg_forward.1} parent=35 // pred_fallthru
        _
      // Predicated region
      $region45: #{pairwise_reg_forward.1} parent=35 // pred_check
        %p382 = pneg %p108
      $region46: #{pairwise_reg_forward.1} parent=35 // pred_check_branch
        %384 = sbr.rel (%p382) target = $region48
      $region47: #{pairwise_reg_forward.1} parent=35 // pred_region
        %s385 = smul.u32 16, %s28
        %p386 = scmp.lt.s32.totalorder %s27, 1
        %s387 = scalar_select %p386, %s27, 1
        %p388 = scmp.lt.s32.totalorder %s385, 31
        %s389 = scalar_select %p388, %s385, 31
        %s390 = smul.addr %s387, 32
        %s391 = sadd.s32 %s389, %s390
        %s392 = smul.addr %s391, 4
        %s393 = scalar_lea.vmem %s2, %s392
        %s394 = smul.u32 16, %s28
      $region48: #{pairwise_reg_forward.1} parent=35 // pred_fallthru
        _
      // Predicated region
      $region49: #{pairwise_reg_forward.1} parent=35 // pred_check
        %p395 = pneg %p134
      $region50: #{pairwise_reg_forward.1} parent=35 // pred_check_branch
        %397 = sbr.rel (%p395) target = $region52
      $region51: #{pairwise_reg_forward.1} parent=35 // pred_region
        %p398 = scmp.lt.s32.totalorder %s27, 1
        %s399 = scalar_select %p398, %s27, 1
        %s400 = smul.addr %s399, 64
        %s401 = smul.addr %s400, 4
        %s402 = scalar_lea.vmem %s3, %s401
      $region52: #{pairwise_reg_forward.1} parent=35 // pred_fallthru
        _
    $region36: #{pairwise_reg_forward.1} parent=5 // pred_fallthru
      _
    %p403 = scmp.le.s32.totalorder 1, %s20
    %p404 = scmp.lt.s32.totalorder %s20, 5
    %p405 = pnand %p403, %p404
    %p406 = pneg %p405
    // Predicated region
    $region53: #{pairwise_reg_forward.1} parent=5 // pred_check
      _
    $region54: #{pairwise_reg_forward.1} parent=5 // pred_check_branch
      %408 = sbr.rel (%p405) target = $region56
    $region55: #{pairwise_reg_forward.1} parent=5 // pred_region
      %s409 = ssub.s32 %s20, 1
      %p410 = scmp.lt.s32.totalorder %s29, 1
      %s411 = scalar_select %p410, %s29, 1
      %p412 = scmp.lt.s32.totalorder %s30, 1
      %s413 = scalar_select %p412, %s30, 1
      %s414 = smul.addr %s411, 2
      %s415 = sadd.s32 %s413, %s414
      %s416 = smul.addr %s415, 4
      %s417 = scalar_lea.vmem %s0, %s416
      %p418 = pneg %p60
      %p419 = pneg %p57
      %p420 = scmp.lt.s32.totalorder %s29, 1
      %s421 = scalar_select %p420, %s29, 1
      %s422 = smul.addr %s421, 64
      %s423 = smul.addr %s422, 8
      %s424 = scalar_lea.vmem %s1, %s423
      %p425 = pneg %p86
      %p426 = pneg %p83
      %s427 = smul.u32 16, %s30
      %p428 = scmp.lt.s32.totalorder %s29, 1
      %s429 = scalar_select %p428, %s29, 1
      %p430 = scmp.lt.s32.totalorder %s427, 31
      %s431 = scalar_select %p430, %s427, 31
      %s432 = smul.addr %s429, 32
      %s433 = sadd.s32 %s431, %s432
      %s434 = smul.addr %s433, 4
      %s435 = scalar_lea.vmem %s2, %s434
      %p436 = pneg %p114
      %p437 = pneg %p111
      %p438 = scmp.lt.s32.totalorder %s29, 1
      %s439 = scalar_select %p438, %s29, 1
      %s440 = smul.addr %s439, 64
      %s441 = smul.addr %s440, 4
      %s442 = scalar_lea.vmem %s3, %s441
      %p443 = pneg %p140
      %p444 = pneg %p137
      %p445 = pneg %p161
      %p446 = pneg %p158
      %p447 = pneg %p182
      %p448 = pneg %p179
      %p449 = pneg %p203
      %p450 = pneg %p200
      %p451 = pneg %p224
      %p452 = pneg %p221
      %p453 = pneg %p245
      %p454 = pneg %p242
      %p455 = pneg %p273
      %p456 = pneg %p270
      %p457 = scmp.lt.s32.totalorder %s29, 1
      %s458 = scalar_select %p457, %s29, 1
      %p459 = scmp.lt.s32.totalorder %s30, 1
      %s460 = scalar_select %p459, %s30, 1
      %s461 = smul.addr %s458, 2
      %s462 = sadd.s32 %s460, %s461
      %s463 = smul.addr %s462, 4
      %s464 = scalar_lea.vmem %s9, %s463
      %p465 = pneg %p301
      %p466 = pneg %p298
      %p467 = scmp.lt.s32.totalorder %s29, 1
      %s468 = scalar_select %p467, %s29, 1
      %p469 = scmp.lt.s32.totalorder %s30, 1
      %s470 = scalar_select %p469, %s30, 1
      %s471 = smul.addr %s468, 2
      %s472 = sadd.s32 %s470, %s471
      %s473 = scalar_lea.vmem %s10, %s472
      %p474 = pneg %p329
      %p475 = pneg %p326
      %p476 = scmp.lt.s32.totalorder %s29, 1
      %s477 = scalar_select %p476, %s29, 1
      %p478 = scmp.lt.s32.totalorder %s30, 1
      %s479 = scalar_select %p478, %s30, 1
      %s480 = smul.addr %s477, 2
      %s481 = sadd.s32 %s479, %s480
      %s482 = smul.addr %s481, 4
      %s483 = scalar_lea.vmem %s11, %s482
      %p484 = scmp.lt.s32.totalorder %s29, 1
      %s485 = scalar_select %p484, %s29, 1
      %p486 = scmp.lt.s32.totalorder %s30, 1
      %s487 = scalar_select %p486, %s30, 1
      %s488 = smul.addr %s485, 2
      %s489 = sadd.s32 %s487, %s488
      %s490 = smul.addr %s489, 4
      %s491 = scalar_lea.vmem %s0, %s490
      %p492 = scmp.lt.s32.totalorder %s29, 1
      %s493 = scalar_select %p492, %s29, 1
      %s494 = smul.addr %s493, 64
      %s495 = smul.addr %s494, 8
      %s496 = scalar_lea.vmem %s1, %s495
      %s497 = smul.u32 16, %s30
      %p498 = scmp.lt.s32.totalorder %s29, 1
      %s499 = scalar_select %p498, %s29, 1
      %p500 = scmp.lt.s32.totalorder %s497, 31
      %s501 = scalar_select %p500, %s497, 31
      %s502 = smul.addr %s499, 32
      %s503 = sadd.s32 %s501, %s502
      %s504 = smul.addr %s503, 4
      %s505 = scalar_lea.vmem %s2, %s504
      %s506 = smul.u32 16, %s30
      %p507 = scmp.lt.s32.totalorder %s29, 1
      %s508 = scalar_select %p507, %s29, 1
      %s509 = smul.addr %s508, 64
      %s510 = smul.addr %s509, 4
      %s511 = scalar_lea.vmem %s3, %s510
      %p512 = scmp.lt.s32.totalorder %s29, 1
      %s513 = scalar_select %p512, %s29, 1
      %p514 = scmp.lt.s32.totalorder %s30, 1
      %s515 = scalar_select %p514, %s30, 1
      %s516 = smul.addr %s513, 2
      %s517 = sadd.s32 %s515, %s516
      %s518 = smul.addr %s517, 4
      %s519 = scalar_lea.vmem %s9, %s518
      %p520 = scmp.lt.s32.totalorder %s29, 1
      %s521 = scalar_select %p520, %s29, 1
      %p522 = scmp.lt.s32.totalorder %s30, 1
      %s523 = scalar_select %p522, %s30, 1
      %s524 = smul.addr %s521, 2
      %s525 = sadd.s32 %s523, %s524
      %s526 = scalar_lea.vmem %s10, %s525
      %p527 = scmp.lt.s32.totalorder %s29, 1
      %s528 = scalar_select %p527, %s29, 1
      %p529 = scmp.lt.s32.totalorder %s30, 1
      %s530 = scalar_select %p529, %s30, 1
      %s531 = smul.addr %s528, 2
      %s532 = sadd.s32 %s530, %s531
      %s533 = smul.addr %s532, 4
      %s534 = scalar_lea.vmem %s11, %s533
      %v536 = vld [vmem:[%s505] sm:$0xf]
      %v537 = vld [vmem:[%s505 + $0x4] sm:$0xf]
      %v538 = vld [vmem:[%s505 + $0x8] sm:$0xf]
      %v539 = vld [vmem:[%s505 + $0xc] sm:$0xf]
      %v540 = vld [vmem:[%s505 + $0x10] sm:$0xf]
      %v541 = vld [vmem:[%s505 + $0x14] sm:$0xf]
      %v542 = vld [vmem:[%s505 + $0x18] sm:$0xf]
      %v543 = vld [vmem:[%s505 + $0x1c] sm:$0xf]
      %v544 = vld [vmem:[%s505 + $0x20] sm:$0xf]
      %v545 = vld [vmem:[%s505 + $0x24] sm:$0xf]
      %v546 = vld [vmem:[%s505 + $0x28] sm:$0xf]
      %v547 = vld [vmem:[%s505 + $0x2c] sm:$0xf]
      %v548 = vld [vmem:[%s505 + $0x30] sm:$0xf]
      %v549 = vld [vmem:[%s505 + $0x34] sm:$0xf]
      %v550 = vld [vmem:[%s505 + $0x38] sm:$0xf]
      %v551 = vld [vmem:[%s505 + $0x3c] sm:$0xf]
      %v552 = vld [vmem:[%s511] sm:$0xf]
      %v553 = vld [vmem:[%s511 + $0x4] sm:$0xf]
      %v554 = vld [vmem:[%s511 + $0x8] sm:$0xf]
      %v555 = vld [vmem:[%s511 + $0xc] sm:$0xf]
      %v556 = vld [vmem:[%s511 + $0x10] sm:$0xf]
      %v557 = vld [vmem:[%s511 + $0x14] sm:$0xf]
      %v558 = vld [vmem:[%s511 + $0x18] sm:$0xf]
      %v559 = vld [vmem:[%s511 + $0x1c] sm:$0xf]
      %v560 = vld [vmem:[%s511 + $0x20] sm:$0xf]
      %v561 = vld [vmem:[%s511 + $0x24] sm:$0xf]
      %v562 = vld [vmem:[%s511 + $0x28] sm:$0xf]
      %v563 = vld [vmem:[%s511 + $0x2c] sm:$0xf]
      %v564 = vld [vmem:[%s511 + $0x30] sm:$0xf]
      %v565 = vld [vmem:[%s511 + $0x34] sm:$0xf]
      %v566 = vld [vmem:[%s511 + $0x38] sm:$0xf]
      %v567 = vld [vmem:[%s511 + $0x3c] sm:$0xf]
      %v568 = vld [vmem:[%s511 + $0x40] sm:$0xf]
      %v569 = vld [vmem:[%s511 + $0x44] sm:$0xf]
      %v570 = vld [vmem:[%s511 + $0x48] sm:$0xf]
      %v571 = vld [vmem:[%s511 + $0x4c] sm:$0xf]
      %v572 = vld [vmem:[%s511 + $0x50] sm:$0xf]
      %v573 = vld [vmem:[%s511 + $0x54] sm:$0xf]
      %v574 = vld [vmem:[%s511 + $0x58] sm:$0xf]
      %v575 = vld [vmem:[%s511 + $0x5c] sm:$0xf]
      %v576 = vld [vmem:[%s511 + $0x60] sm:$0xf]
      %v577 = vld [vmem:[%s511 + $0x64] sm:$0xf]
      %v578 = vld [vmem:[%s511 + $0x68] sm:$0xf]
      %v579 = vld [vmem:[%s511 + $0x6c] sm:$0xf]
      %v580 = vld [vmem:[%s511 + $0x70] sm:$0xf]
      %v581 = vld [vmem:[%s511 + $0x74] sm:$0xf]
      %v582 = vld [vmem:[%s511 + $0x78] sm:$0xf]
      %v583 = vld [vmem:[%s511 + $0x7c] sm:$0xf]
      %v584 = vld [vmem:[%s511 + $0x80] sm:$0xf]
      %v585 = vld [vmem:[%s511 + $0x84] sm:$0xf]
      %v586 = vld [vmem:[%s511 + $0x88] sm:$0xf]
      %v587 = vld [vmem:[%s511 + $0x8c] sm:$0xf]
      %v588 = vld [vmem:[%s511 + $0x90] sm:$0xf]
      %v589 = vld [vmem:[%s511 + $0x94] sm:$0xf]
      %v590 = vld [vmem:[%s511 + $0x98] sm:$0xf]
      %v591 = vld [vmem:[%s511 + $0x9c] sm:$0xf]
      %v592 = vld [vmem:[%s511 + $0xa0] sm:$0xf]
      %v593 = vld [vmem:[%s511 + $0xa4] sm:$0xf]
      %v594 = vld [vmem:[%s511 + $0xa8] sm:$0xf]
      %v595 = vld [vmem:[%s511 + $0xac] sm:$0xf]
      %v596 = vld [vmem:[%s511 + $0xb0] sm:$0xf]
      %v597 = vld [vmem:[%s511 + $0xb4] sm:$0xf]
      %v598 = vld [vmem:[%s511 + $0xb8] sm:$0xf]
      %v599 = vld [vmem:[%s511 + $0xbc] sm:$0xf]
      %v600 = vld [vmem:[%s511 + $0xc0] sm:$0xf]
      %v601 = vld [vmem:[%s511 + $0xc4] sm:$0xf]
      %v602 = vld [vmem:[%s511 + $0xc8] sm:$0xf]
      %v603 = vld [vmem:[%s511 + $0xcc] sm:$0xf]
      %v604 = vld [vmem:[%s511 + $0xd0] sm:$0xf]
      %v605 = vld [vmem:[%s511 + $0xd4] sm:$0xf]
      %v606 = vld [vmem:[%s511 + $0xd8] sm:$0xf]
      %v607 = vld [vmem:[%s511 + $0xdc] sm:$0xf]
      %v608 = vld [vmem:[%s511 + $0xe0] sm:$0xf]
      %v609 = vld [vmem:[%s511 + $0xe4] sm:$0xf]
      %v610 = vld [vmem:[%s511 + $0xe8] sm:$0xf]
      %v611 = vld [vmem:[%s511 + $0xec] sm:$0xf]
      %v612 = vld [vmem:[%s511 + $0xf0] sm:$0xf]
      %v613 = vld [vmem:[%s511 + $0xf4] sm:$0xf]
      %v614 = vld [vmem:[%s511 + $0xf8] sm:$0xf]
      %v615 = vld [vmem:[%s511 + $0xfc] sm:$0xf]
      %v616 = vld [vmem:[%s496] sm:$0xff]
      %v617 = vld [vmem:[%s496 + $0x8] sm:$0xff]
      %v618 = vld [vmem:[%s496 + $0x10] sm:$0xff]
      %v619 = vld [vmem:[%s496 + $0x18] sm:$0xff]
      %v620 = vld [vmem:[%s496 + $0x20] sm:$0xff]
      %v621 = vld [vmem:[%s496 + $0x28] sm:$0xff]
      %v622 = vld [vmem:[%s496 + $0x30] sm:$0xff]
      %v623 = vld [vmem:[%s496 + $0x38] sm:$0xff]
      %v624 = vld [vmem:[%s496 + $0x40] sm:$0xff]
      %v625 = vld [vmem:[%s496 + $0x48] sm:$0xff]
      %v626 = vld [vmem:[%s496 + $0x50] sm:$0xff]
      %v627 = vld [vmem:[%s496 + $0x58] sm:$0xff]
      %v628 = vld [vmem:[%s496 + $0x60] sm:$0xff]
      %v629 = vld [vmem:[%s496 + $0x68] sm:$0xff]
      %v630 = vld [vmem:[%s496 + $0x70] sm:$0xff]
      %v631 = vld [vmem:[%s496 + $0x78] sm:$0xff]
      %v632 = vld [vmem:[%s496 + $0x80] sm:$0xff]
      %v633 = vld [vmem:[%s496 + $0x88] sm:$0xff]
      %v634 = vld [vmem:[%s496 + $0x90] sm:$0xff]
      %v635 = vld [vmem:[%s496 + $0x98] sm:$0xff]
      %v636 = vld [vmem:[%s496 + $0xa0] sm:$0xff]
      %v637 = vld [vmem:[%s496 + $0xa8] sm:$0xff]
      %v638 = vld [vmem:[%s496 + $0xb0] sm:$0xff]
      %v639 = vld [vmem:[%s496 + $0xb8] sm:$0xff]
      %v640 = vld [vmem:[%s496 + $0xc0] sm:$0xff]
      %v641 = vld [vmem:[%s496 + $0xc8] sm:$0xff]
      %v642 = vld [vmem:[%s496 + $0xd0] sm:$0xff]
      %v643 = vld [vmem:[%s496 + $0xd8] sm:$0xff]
      %v644 = vld [vmem:[%s496 + $0xe0] sm:$0xff]
      %v645 = vld [vmem:[%s496 + $0xe8] sm:$0xff]
      %v646 = vld [vmem:[%s496 + $0xf0] sm:$0xff]
      %v647 = vld [vmem:[%s496 + $0xf8] sm:$0xff]
      %v648 = vld [vmem:[%s496 + $0x100] sm:$0xff]
      %v649 = vld [vmem:[%s496 + $0x108] sm:$0xff]
      %v650 = vld [vmem:[%s496 + $0x110] sm:$0xff]
      %v651 = vld [vmem:[%s496 + $0x118] sm:$0xff]
      %v652 = vld [vmem:[%s496 + $0x120] sm:$0xff]
      %v653 = vld [vmem:[%s496 + $0x128] sm:$0xff]
      %v654 = vld [vmem:[%s496 + $0x130] sm:$0xff]
      %v655 = vld [vmem:[%s496 + $0x138] sm:$0xff]
      %v656 = vld [vmem:[%s496 + $0x140] sm:$0xff]
      %v657 = vld [vmem:[%s496 + $0x148] sm:$0xff]
      %v658 = vld [vmem:[%s496 + $0x150] sm:$0xff]
      %v659 = vld [vmem:[%s496 + $0x158] sm:$0xff]
      %v660 = vld [vmem:[%s496 + $0x160] sm:$0xff]
      %v661 = vld [vmem:[%s496 + $0x168] sm:$0xff]
      %v662 = vld [vmem:[%s496 + $0x170] sm:$0xff]
      %v663 = vld [vmem:[%s496 + $0x178] sm:$0xff]
      %v664 = vld [vmem:[%s496 + $0x180] sm:$0xff]
      %v665 = vld [vmem:[%s496 + $0x188] sm:$0xff]
      %v666 = vld [vmem:[%s496 + $0x190] sm:$0xff]
      %v667 = vld [vmem:[%s496 + $0x198] sm:$0xff]
      %v668 = vld [vmem:[%s496 + $0x1a0] sm:$0xff]
      %v669 = vld [vmem:[%s496 + $0x1a8] sm:$0xff]
      %v670 = vld [vmem:[%s496 + $0x1b0] sm:$0xff]
      %v671 = vld [vmem:[%s496 + $0x1b8] sm:$0xff]
      %v672 = vld [vmem:[%s496 + $0x1c0] sm:$0xff]
      %v673 = vld [vmem:[%s496 + $0x1c8] sm:$0xff]
      %v674 = vld [vmem:[%s496 + $0x1d0] sm:$0xff]
      %v675 = vld [vmem:[%s496 + $0x1d8] sm:$0xff]
      %v676 = vld [vmem:[%s496 + $0x1e0] sm:$0xff]
      %v677 = vld [vmem:[%s496 + $0x1e8] sm:$0xff]
      %v678 = vld [vmem:[%s496 + $0x1f0] sm:$0xff]
      %v679 = vld [vmem:[%s496 + $0x1f8] sm:$0xff]
      %v680 = vld [vmem:[%s491] sm:$0xf]
      %v745 = vunpack.c.l.b16 %v552
      %v746 = vunpack.c.l.b16 %v553
      %v747 = vunpack.c.l.b16 %v554
      %v748 = vunpack.c.l.b16 %v555
      %v749 = vunpack.c.l.b16 %v556
      %v750 = vunpack.c.l.b16 %v557
      %v751 = vunpack.c.l.b16 %v558
      %v752 = vunpack.c.l.b16 %v559
      %v753 = vunpack.c.l.b16 %v560
      %v754 = vunpack.c.l.b16 %v561
      %v755 = vunpack.c.l.b16 %v562
      %v756 = vunpack.c.l.b16 %v563
      %v757 = vunpack.c.l.b16 %v564
      %v758 = vunpack.c.l.b16 %v565
      %v759 = vunpack.c.l.b16 %v566
      %v760 = vunpack.c.l.b16 %v567
      %v761 = vunpack.c.l.b16 %v568
      %v762 = vunpack.c.l.b16 %v569
      %v763 = vunpack.c.l.b16 %v570
      %v764 = vunpack.c.l.b16 %v571
      %v765 = vunpack.c.l.b16 %v572
      %v766 = vunpack.c.l.b16 %v573
      %v767 = vunpack.c.l.b16 %v574
      %v768 = vunpack.c.l.b16 %v575
      %v769 = vunpack.c.l.b16 %v576
      %v770 = vunpack.c.l.b16 %v577
      %v771 = vunpack.c.l.b16 %v578
      %v772 = vunpack.c.l.b16 %v579
      %v773 = vunpack.c.l.b16 %v580
      %v774 = vunpack.c.l.b16 %v581
      %v775 = vunpack.c.l.b16 %v582
      %v776 = vunpack.c.l.b16 %v583
      %v777 = vunpack.c.l.b16 %v584
      %v778 = vunpack.c.l.b16 %v585
      %v779 = vunpack.c.l.b16 %v586
      %v780 = vunpack.c.l.b16 %v587
      %v781 = vunpack.c.l.b16 %v588
      %v782 = vunpack.c.l.b16 %v589
      %v783 = vunpack.c.l.b16 %v590
      %v784 = vunpack.c.l.b16 %v591
      %v785 = vunpack.c.l.b16 %v592
      %v786 = vunpack.c.l.b16 %v593
      %v787 = vunpack.c.l.b16 %v594
      %v788 = vunpack.c.l.b16 %v595
      %v789 = vunpack.c.l.b16 %v596
      %v790 = vunpack.c.l.b16 %v597
      %v791 = vunpack.c.l.b16 %v598
      %v792 = vunpack.c.l.b16 %v599
      %v793 = vunpack.c.l.b16 %v600
      %v794 = vunpack.c.l.b16 %v601
      %v795 = vunpack.c.l.b16 %v602
      %v796 = vunpack.c.l.b16 %v603
      %v797 = vunpack.c.l.b16 %v604
      %v798 = vunpack.c.l.b16 %v605
      %v799 = vunpack.c.l.b16 %v606
      %v800 = vunpack.c.l.b16 %v607
      %v801 = vunpack.c.l.b16 %v608
      %v802 = vunpack.c.l.b16 %v609
      %v803 = vunpack.c.l.b16 %v610
      %v804 = vunpack.c.l.b16 %v611
      %v805 = vunpack.c.l.b16 %v612
      %v806 = vunpack.c.l.b16 %v613
      %v807 = vunpack.c.l.b16 %v614
      %v808 = vunpack.c.l.b16 %v615
      %v809 = vpack.c.b16 %v746, %v745
      %v810 = vpack.c.b16 %v748, %v747
      %v811 = vpack.c.b16 %v750, %v749
      %v812 = vpack.c.b16 %v752, %v751
      %v813 = vpack.c.b16 %v754, %v753
      %v814 = vpack.c.b16 %v756, %v755
      %v815 = vpack.c.b16 %v758, %v757
      %v816 = vpack.c.b16 %v760, %v759
      %v817 = vpack.c.b16 %v762, %v761
      %v818 = vpack.c.b16 %v764, %v763
      %v819 = vpack.c.b16 %v766, %v765
      %v820 = vpack.c.b16 %v768, %v767
      %v821 = vpack.c.b16 %v770, %v769
      %v822 = vpack.c.b16 %v772, %v771
      %v823 = vpack.c.b16 %v774, %v773
      %v824 = vpack.c.b16 %v776, %v775
      %v825 = vpack.c.b16 %v778, %v777
      %v826 = vpack.c.b16 %v780, %v779
      %v827 = vpack.c.b16 %v782, %v781
      %v828 = vpack.c.b16 %v784, %v783
      %v829 = vpack.c.b16 %v786, %v785
      %v830 = vpack.c.b16 %v788, %v787
      %v831 = vpack.c.b16 %v790, %v789
      %v832 = vpack.c.b16 %v792, %v791
      %v833 = vpack.c.b16 %v794, %v793
      %v834 = vpack.c.b16 %v796, %v795
      %v835 = vpack.c.b16 %v798, %v797
      %v836 = vpack.c.b16 %v800, %v799
      %v837 = vpack.c.b16 %v802, %v801
      %v838 = vpack.c.b16 %v804, %v803
      %v839 = vpack.c.b16 %v806, %v805
      %v840 = vpack.c.b16 %v808, %v807
      %v889 = vunpack.c.l.b16 %v536
      %v890 = vunpack.c.l.b16 %v537
      %v891 = vunpack.c.l.b16 %v538
      %v892 = vunpack.c.l.b16 %v539
      %v893 = vunpack.c.l.b16 %v540
      %v894 = vunpack.c.l.b16 %v541
      %v895 = vunpack.c.l.b16 %v542
      %v896 = vunpack.c.l.b16 %v543
      %v897 = vunpack.c.l.b16 %v544
      %v898 = vunpack.c.l.b16 %v545
      %v899 = vunpack.c.l.b16 %v546
      %v900 = vunpack.c.l.b16 %v547
      %v901 = vunpack.c.l.b16 %v548
      %v902 = vunpack.c.l.b16 %v549
      %v903 = vunpack.c.l.b16 %v550
      %v904 = vunpack.c.l.b16 %v551
      %v905 = vpack.c.b16 %v890, %v889
      %v906 = vpack.c.b16 %v892, %v891
      %v907 = vpack.c.b16 %v894, %v893
      %v908 = vpack.c.b16 %v896, %v895
      %v909 = vpack.c.b16 %v898, %v897
      %v910 = vpack.c.b16 %v900, %v899
      %v911 = vpack.c.b16 %v902, %v901
      %v912 = vpack.c.b16 %v904, %v903
      %921 = vmatprep.subr.bf16.mxu0 0
      %922 = vmatpush1.bf16.xpose.msra.mxu0 %v905
      %923 = vmatprep.subr.bf16.mxu0 0
      %924 = vmatpush1.bf16.xpose.msra.mxu0 %v906
      %925 = vmatprep.subr.bf16.mxu0 0
      %926 = vmatpush1.bf16.xpose.msra.mxu0 %v907
      %927 = vmatprep.subr.bf16.mxu0 0
      %928 = vmatpush1.bf16.xpose.msra.mxu0 %v908
      %929 = vmatprep.subr.bf16.mxu0 0
      %930 = vmatpush1.bf16.xpose.msra.mxu0 %v909
      %931 = vmatprep.subr.bf16.mxu0 0
      %932 = vmatpush1.bf16.xpose.msra.mxu0 %v910
      %933 = vmatprep.subr.bf16.mxu0 0
      %934 = vmatpush1.bf16.xpose.msra.mxu0 %v911
      %935 = vmatprep.subr.bf16.mxu0 0
      %936 = vmatpush1.bf16.xpose.msra.mxu0 %v912
      %937 = vmatprep.subr.bf16.mxu0 0
      %938 = vmatpush1.bf16.xpose.msra.mxu0 0
      %939 = vmatprep.subr.bf16.mxu0 0
      %940 = vmatpush1.bf16.xpose.msra.mxu0 0
      %941 = vmatprep.subr.bf16.mxu0 0
      %942 = vmatpush1.bf16.xpose.msra.mxu0 0
      %943 = vmatprep.subr.bf16.mxu0 0
      %944 = vmatpush1.bf16.xpose.msra.mxu0 0
      %945 = vmatprep.subr.bf16.mxu0 0
      %946 = vmatpush1.bf16.xpose.msra.mxu0 0
      %947 = vmatprep.subr.bf16.mxu0 0
      %948 = vmatpush1.bf16.xpose.msra.mxu0 0
      %949 = vmatprep.subr.bf16.mxu0 0
      %950 = vmatpush1.bf16.xpose.msra.mxu0 0
      %951 = vmatprep.subr.bf16.mxu0 0
      %952 = vmatpush1.bf16.xpose.msra.mxu0 0
      %953 = vmatprep.mubr.bf16.mxu0 0
      %954 = vmatmul.mubr.bf16.gmra.mrb[0].mxu0 %v809
      %v955 = vpop.f32.mrb[0].mxu0
      %v956 = vadd.f32 0.0, %v955
      %v957 = vpop.f32.mrb[0].mxu0
      %v958 = vpop.f32.mrb[0].mxu0
      %v959 = vadd.f32 0.0, %v958
      %v960 = vpop.f32.mrb[0].mxu0
      %961 = vmatprep.mubr.bf16.mxu0 0
      %962 = vmatmul.mubr.bf16.gmra.mrb[0].mxu0 %v810
      %v963 = vpop.f32.mrb[0].mxu0
      %v964 = vadd.f32 0.0, %v963
      %v965 = vpop.f32.mrb[0].mxu0
      %v966 = vpop.f32.mrb[0].mxu0
      %v967 = vadd.f32 0.0, %v966
      %v968 = vpop.f32.mrb[0].mxu0
      %969 = vmatprep.mubr.bf16.mxu0 0
      %970 = vmatmul.mubr.bf16.gmra.mrb[0].mxu0 %v811
      %v971 = vpop.f32.mrb[0].mxu0
      %v972 = vadd.f32 0.0, %v971
      %v973 = vpop.f32.mrb[0].mxu0
      %v974 = vpop.f32.mrb[0].mxu0
      %v975 = vadd.f32 0.0, %v974
      %v976 = vpop.f32.mrb[0].mxu0
      %977 = vmatprep.mubr.bf16.mxu0 0
      %978 = vmatmul.mubr.bf16.gmra.mrb[0].mxu0 %v812
      %v979 = vpop.f32.mrb[0].mxu0
      %v980 = vadd.f32 0.0, %v979
      %v981 = vpop.f32.mrb[0].mxu0
      %v982 = vpop.f32.mrb[0].mxu0
      %v983 = vadd.f32 0.0, %v982
      %v984 = vpop.f32.mrb[0].mxu0
      %985 = vmatprep.mubr.bf16.mxu0 0
      %986 = vmatmul.mubr.bf16.gmra.mrb[0].mxu0 %v813
      %v987 = vpop.f32.mrb[0].mxu0
      %v988 = vadd.f32 0.0, %v987
      %v989 = vpop.f32.mrb[0].mxu0
      %v990 = vpop.f32.mrb[0].mxu0
      %v991 = vadd.f32 0.0, %v990
      %v992 = vpop.f32.mrb[0].mxu0
      %993 = vmatprep.mubr.bf16.mxu0 0
      %994 = vmatmul.mubr.bf16.gmra.mrb[0].mxu0 %v814
      %v995 = vpop.f32.mrb[0].mxu0
      %v996 = vadd.f32 0.0, %v995
      %v997 = vpop.f32.mrb[0].mxu0
      %v998 = vpop.f32.mrb[0].mxu0
      %v999 = vadd.f32 0.0, %v998
      %v1000 = vpop.f32.mrb[0].mxu0
      %1001 = vmatprep.mubr.bf16.mxu0 0
      %1002 = vmatmul.mubr.bf16.gmra.mrb[0].mxu0 %v815
      %v1003 = vpop.f32.mrb[0].mxu0
      %v1004 = vadd.f32 0.0, %v1003
      %v1005 = vpop.f32.mrb[0].mxu0
      %v1006 = vpop.f32.mrb[0].mxu0
      %v1007 = vadd.f32 0.0, %v1006
      %v1008 = vpop.f32.mrb[0].mxu0
      %1009 = vmatprep.mubr.bf16.mxu0 0
      %1010 = vmatmul.mubr.bf16.gmra.mrb[0].mxu0 %v816
      %v1011 = vpop.f32.mrb[0].mxu0
      %v1012 = vadd.f32 0.0, %v1011
      %v1013 = vpop.f32.mrb[0].mxu0
      %v1014 = vpop.f32.mrb[0].mxu0
      %v1015 = vadd.f32 0.0, %v1014
      %v1016 = vpop.f32.mrb[0].mxu0
      %1017 = vmatprep.mubr.bf16.mxu0 0
      %1018 = vmatmul.mubr.bf16.gmra.mrb[0].mxu0 %v817
      %v1019 = vpop.f32.mrb[0].mxu0
      %v1020 = vadd.f32 0.0, %v1019
      %v1021 = vpop.f32.mrb[0].mxu0
      %v1022 = vpop.f32.mrb[0].mxu0
      %v1023 = vadd.f32 0.0, %v1022
      %v1024 = vpop.f32.mrb[0].mxu0
      %1025 = vmatprep.mubr.bf16.mxu0 0
      %1026 = vmatmul.mubr.bf16.gmra.mrb[0].mxu0 %v818
      %v1027 = vpop.f32.mrb[0].mxu0
      %v1028 = vadd.f32 0.0, %v1027
      %v1029 = vpop.f32.mrb[0].mxu0
      %v1030 = vpop.f32.mrb[0].mxu0
      %v1031 = vadd.f32 0.0, %v1030
      %v1032 = vpop.f32.mrb[0].mxu0
      %1033 = vmatprep.mubr.bf16.mxu0 0
      %1034 = vmatmul.mubr.bf16.gmra.mrb[0].mxu0 %v819
      %v1035 = vpop.f32.mrb[0].mxu0
      %v1036 = vadd.f32 0.0, %v1035
      %v1037 = vpop.f32.mrb[0].mxu0
      %v1038 = vpop.f32.mrb[0].mxu0
      %v1039 = vadd.f32 0.0, %v1038
      %v1040 = vpop.f32.mrb[0].mxu0
      %1041 = vmatprep.mubr.bf16.mxu0 0
      %1042 = vmatmul.mubr.bf16.gmra.mrb[0].mxu0 %v820
      %v1043 = vpop.f32.mrb[0].mxu0
      %v1044 = vadd.f32 0.0, %v1043
      %v1045 = vpop.f32.mrb[0].mxu0
      %v1046 = vpop.f32.mrb[0].mxu0
      %v1047 = vadd.f32 0.0, %v1046
      %v1048 = vpop.f32.mrb[0].mxu0
      %1049 = vmatprep.mubr.bf16.mxu0 0
      %1050 = vmatmul.mubr.bf16.gmra.mrb[0].mxu0 %v821
      %v1051 = vpop.f32.mrb[0].mxu0
      %v1052 = vadd.f32 0.0, %v1051
      %v1053 = vpop.f32.mrb[0].mxu0
      %v1054 = vpop.f32.mrb[0].mxu0
      %v1055 = vadd.f32 0.0, %v1054
      %v1056 = vpop.f32.mrb[0].mxu0
      %1057 = vmatprep.mubr.bf16.mxu0 0
      %1058 = vmatmul.mubr.bf16.gmra.mrb[0].mxu0 %v822
      %v1059 = vpop.f32.mrb[0].mxu0
      %v1060 = vadd.f32 0.0, %v1059
      %v1061 = vpop.f32.mrb[0].mxu0
      %v1062 = vpop.f32.mrb[0].mxu0
      %v1063 = vadd.f32 0.0, %v1062
      %v1064 = vpop.f32.mrb[0].mxu0
      %1065 = vmatprep.mubr.bf16.mxu0 0
      %1066 = vmatmul.mubr.bf16.gmra.mrb[0].mxu0 %v823
      %v1067 = vpop.f32.mrb[0].mxu0
      %v1068 = vadd.f32 0.0, %v1067
      %v1069 = vpop.f32.mrb[0].mxu0
      %v1070 = vpop.f32.mrb[0].mxu0
      %v1071 = vadd.f32 0.0, %v1070
      %v1072 = vpop.f32.mrb[0].mxu0
      %1073 = vmatprep.mubr.bf16.mxu0 0
      %1074 = vmatmul.mubr.bf16.gmra.mrb[0].mxu0 %v824
      %v1075 = vpop.f32.mrb[0].mxu0
      %v1076 = vadd.f32 0.0, %v1075
      %v1077 = vpop.f32.mrb[0].mxu0
      %v1078 = vpop.f32.mrb[0].mxu0
      %v1079 = vadd.f32 0.0, %v1078
      %v1080 = vpop.f32.mrb[0].mxu0
      %1081 = vmatprep.mubr.bf16.mxu0 0
      %1082 = vmatmul.mubr.bf16.gmra.mrb[0].mxu0 %v825
      %v1083 = vpop.f32.mrb[0].mxu0
      %v1084 = vadd.f32 0.0, %v1083
      %v1085 = vpop.f32.mrb[0].mxu0
      %v1086 = vpop.f32.mrb[0].mxu0
      %v1087 = vadd.f32 0.0, %v1086
      %v1088 = vpop.f32.mrb[0].mxu0
      %1089 = vmatprep.mubr.bf16.mxu0 0
      %1090 = vmatmul.mubr.bf16.gmra.mrb[0].mxu0 %v826
      %v1091 = vpop.f32.mrb[0].mxu0
      %v1092 = vadd.f32 0.0, %v1091
      %v1093 = vpop.f32.mrb[0].mxu0
      %v1094 = vpop.f32.mrb[0].mxu0
      %v1095 = vadd.f32 0.0, %v1094
      %v1096 = vpop.f32.mrb[0].mxu0
      %1097 = vmatprep.mubr.bf16.mxu0 0
      %1098 = vmatmul.mubr.bf16.gmra.mrb[0].mxu0 %v827
      %v1099 = vpop.f32.mrb[0].mxu0
      %v1100 = vadd.f32 0.0, %v1099
      %v1101 = vpop.f32.mrb[0].mxu0
      %v1102 = vpop.f32.mrb[0].mxu0
      %v1103 = vadd.f32 0.0, %v1102
      %v1104 = vpop.f32.mrb[0].mxu0
      %1105 = vmatprep.mubr.bf16.mxu0 0
      %1106 = vmatmul.mubr.bf16.gmra.mrb[0].mxu0 %v828
      %v1107 = vpop.f32.mrb[0].mxu0
      %v1108 = vadd.f32 0.0, %v1107
      %v1109 = vpop.f32.mrb[0].mxu0
      %v1110 = vpop.f32.mrb[0].mxu0
      %v1111 = vadd.f32 0.0, %v1110
      %v1112 = vpop.f32.mrb[0].mxu0
      %1113 = vmatprep.mubr.bf16.mxu0 0
      %1114 = vmatmul.mubr.bf16.gmra.mrb[0].mxu0 %v829
      %v1115 = vpop.f32.mrb[0].mxu0
      %v1116 = vadd.f32 0.0, %v1115
      %v1117 = vpop.f32.mrb[0].mxu0
      %v1118 = vpop.f32.mrb[0].mxu0
      %v1119 = vadd.f32 0.0, %v1118
      %v1120 = vpop.f32.mrb[0].mxu0
      %1121 = vmatprep.mubr.bf16.mxu0 0
      %1122 = vmatmul.mubr.bf16.gmra.mrb[0].mxu0 %v830
      %v1123 = vpop.f32.mrb[0].mxu0
      %v1124 = vadd.f32 0.0, %v1123
      %v1125 = vpop.f32.mrb[0].mxu0
      %v1126 = vpop.f32.mrb[0].mxu0
      %v1127 = vadd.f32 0.0, %v1126
      %v1128 = vpop.f32.mrb[0].mxu0
      %1129 = vmatprep.mubr.bf16.mxu0 0
      %1130 = vmatmul.mubr.bf16.gmra.mrb[0].mxu0 %v831
      %v1131 = vpop.f32.mrb[0].mxu0
      %v1132 = vadd.f32 0.0, %v1131
      %v1133 = vpop.f32.mrb[0].mxu0
      %v1134 = vpop.f32.mrb[0].mxu0
      %v1135 = vadd.f32 0.0, %v1134
      %v1136 = vpop.f32.mrb[0].mxu0
      %1137 = vmatprep.mubr.bf16.mxu0 0
      %1138 = vmatmul.mubr.bf16.gmra.mrb[0].mxu0 %v832
      %v1139 = vpop.f32.mrb[0].mxu0
      %v1140 = vadd.f32 0.0, %v1139
      %v1141 = vpop.f32.mrb[0].mxu0
      %v1142 = vpop.f32.mrb[0].mxu0
      %v1143 = vadd.f32 0.0, %v1142
      %v1144 = vpop.f32.mrb[0].mxu0
      %1145 = vmatprep.mubr.bf16.mxu0 0
      %1146 = vmatmul.mubr.bf16.gmra.mrb[0].mxu0 %v833
      %v1147 = vpop.f32.mrb[0].mxu0
      %v1148 = vadd.f32 0.0, %v1147
      %v1149 = vpop.f32.mrb[0].mxu0
      %v1150 = vpop.f32.mrb[0].mxu0
      %v1151 = vadd.f32 0.0, %v1150
      %v1152 = vpop.f32.mrb[0].mxu0
      %1153 = vmatprep.mubr.bf16.mxu0 0
      %1154 = vmatmul.mubr.bf16.gmra.mrb[0].mxu0 %v834
      %v1155 = vpop.f32.mrb[0].mxu0
      %v1156 = vadd.f32 0.0, %v1155
      %v1157 = vpop.f32.mrb[0].mxu0
      %v1158 = vpop.f32.mrb[0].mxu0
      %v1159 = vadd.f32 0.0, %v1158
      %v1160 = vpop.f32.mrb[0].mxu0
      %1161 = vmatprep.mubr.bf16.mxu0 0
      %1162 = vmatmul.mubr.bf16.gmra.mrb[0].mxu0 %v835
      %v1163 = vpop.f32.mrb[0].mxu0
      %v1164 = vadd.f32 0.0, %v1163
      %v1165 = vpop.f32.mrb[0].mxu0
      %v1166 = vpop.f32.mrb[0].mxu0
      %v1167 = vadd.f32 0.0, %v1166
      %v1168 = vpop.f32.mrb[0].mxu0
      %1169 = vmatprep.mubr.bf16.mxu0 0
      %1170 = vmatmul.mubr.bf16.gmra.mrb[0].mxu0 %v836
      %v1171 = vpop.f32.mrb[0].mxu0
      %v1172 = vadd.f32 0.0, %v1171
      %v1173 = vpop.f32.mrb[0].mxu0
      %v1174 = vpop.f32.mrb[0].mxu0
      %v1175 = vadd.f32 0.0, %v1174
      %v1176 = vpop.f32.mrb[0].mxu0
      %1177 = vmatprep.mubr.bf16.mxu0 0
      %1178 = vmatmul.mubr.bf16.gmra.mrb[0].mxu0 %v837
      %v1179 = vpop.f32.mrb[0].mxu0
      %v1180 = vadd.f32 0.0, %v1179
      %v1181 = vpop.f32.mrb[0].mxu0
      %v1182 = vpop.f32.mrb[0].mxu0
      %v1183 = vadd.f32 0.0, %v1182
      %v1184 = vpop.f32.mrb[0].mxu0
      %1185 = vmatprep.mubr.bf16.mxu0 0
      %1186 = vmatmul.mubr.bf16.gmra.mrb[0].mxu0 %v838
      %v1187 = vpop.f32.mrb[0].mxu0
      %v1188 = vadd.f32 0.0, %v1187
      %v1189 = vpop.f32.mrb[0].mxu0
      %v1190 = vpop.f32.mrb[0].mxu0
      %v1191 = vadd.f32 0.0, %v1190
      %v1192 = vpop.f32.mrb[0].mxu0
      %1193 = vmatprep.mubr.bf16.mxu0 0
      %1194 = vmatmul.mubr.bf16.gmra.mrb[0].mxu0 %v839
      %v1195 = vpop.f32.mrb[0].mxu0
      %v1196 = vadd.f32 0.0, %v1195
      %v1197 = vpop.f32.mrb[0].mxu0
      %v1198 = vpop.f32.mrb[0].mxu0
      %v1199 = vadd.f32 0.0, %v1198
      %v1200 = vpop.f32.mrb[0].mxu0
      %1201 = vmatprep.mubr.bf16.mxu0 0
      %1202 = vmatmul.mubr.bf16.gmra.mrb[0].mxu0 %v840
      %v1203 = vpop.f32.mrb[0].mxu0
      %v1204 = vadd.f32 0.0, %v1203
      %v1205 = vpop.f32.mrb[0].mxu0
      %v1206 = vpop.f32.mrb[0].mxu0
      %v1207 = vadd.f32 0.0, %v1206
      %v1208 = vpop.f32.mrb[0].mxu0
      %1209 = vdwg.mxu0
      %v1210 = vmax.f32 %v956, %v972
      %v1211 = vmax.f32 %v959, %v975
      %v1212 = vmax.f32 %v964, %v980
      %v1213 = vmax.f32 %v967, %v983
      %v1214 = vmax.f32 %v1210, %v988
      %v1215 = vmax.f32 %v1211, %v991
      %v1216 = vmax.f32 %v1212, %v996
      %v1217 = vmax.f32 %v1213, %v999
      %v1218 = vmax.f32 %v1214, %v1004
      %v1219 = vmax.f32 %v1215, %v1007
      %v1220 = vmax.f32 %v1216, %v1012
      %v1221 = vmax.f32 %v1217, %v1015
      %v1222 = vmax.f32 %v1218, %v1020
      %v1223 = vmax.f32 %v1219, %v1023
      %v1224 = vmax.f32 %v1220, %v1028
      %v1225 = vmax.f32 %v1221, %v1031
      %v1226 = vmax.f32 %v1222, %v1036
      %v1227 = vmax.f32 %v1223, %v1039
      %v1228 = vmax.f32 %v1224, %v1044
      %v1229 = vmax.f32 %v1225, %v1047
      %v1230 = vmax.f32 %v1226, %v1052
      %v1231 = vmax.f32 %v1227, %v1055
      %v1232 = vmax.f32 %v1228, %v1060
      %v1233 = vmax.f32 %v1229, %v1063
      %v1234 = vmax.f32 %v1230, %v1068
      %v1235 = vmax.f32 %v1231, %v1071
      %v1236 = vmax.f32 %v1232, %v1076
      %v1237 = vmax.f32 %v1233, %v1079
      %v1238 = vmax.f32 %v1234, %v1084
      %v1239 = vmax.f32 %v1235, %v1087
      %v1240 = vmax.f32 %v1236, %v1092
      %v1241 = vmax.f32 %v1237, %v1095
      %v1242 = vmax.f32 %v1238, %v1100
      %v1243 = vmax.f32 %v1239, %v1103
      %v1244 = vmax.f32 %v1240, %v1108
      %v1245 = vmax.f32 %v1241, %v1111
      %v1246 = vmax.f32 %v1242, %v1116
      %v1247 = vmax.f32 %v1243, %v1119
      %v1248 = vmax.f32 %v1244, %v1124
      %v1249 = vmax.f32 %v1245, %v1127
      %v1250 = vmax.f32 %v1246, %v1132
      %v1251 = vmax.f32 %v1247, %v1135
      %v1252 = vmax.f32 %v1248, %v1140
      %v1253 = vmax.f32 %v1249, %v1143
      %v1254 = vmax.f32 %v1250, %v1148
      %v1255 = vmax.f32 %v1251, %v1151
      %v1256 = vmax.f32 %v1252, %v1156
      %v1257 = vmax.f32 %v1253, %v1159
      %v1258 = vmax.f32 %v1254, %v1164
      %v1259 = vmax.f32 %v1255, %v1167
      %v1260 = vmax.f32 %v1256, %v1172
      %v1261 = vmax.f32 %v1257, %v1175
      %v1262 = vmax.f32 %v1258, %v1180
      %v1263 = vmax.f32 %v1259, %v1183
      %v1264 = vmax.f32 %v1260, %v1188
      %v1265 = vmax.f32 %v1261, %v1191
      %v1266 = vmax.f32 %v1262, %v1196
      %v1267 = vmax.f32 %v1263, %v1199
      %v1268 = vmax.f32 %v1264, %v1204
      %v1269 = vmax.f32 %v1265, %v1207
      %v1270 = vmax.f32 %v1266, %v1267
      %v1271 = vmax.f32 %v1268, %v1269
      %v1272 = vmax.f32 %v1270, %v1271
      %v1273 = vrot.slane %v1272, 4
      %v1274 = vmax.f32 %v1272, %v1273
      %v1275 = vrot.slane %v1274, 2
      %v1276 = vmax.f32 %v1274, %v1275
      %v1277 = vrot.slane %v1276, 1
      %v1278 = vmax.f32 %v1276, %v1277
      %v1279 = vsub.f32 %v956, %v1278
      %v1280 = vsub.f32 %v959, %v1278
      %v1281 = vsub.f32 %v964, %v1278
      %v1282 = vsub.f32 %v967, %v1278
      %v1283 = vsub.f32 %v972, %v1278
      %v1284 = vsub.f32 %v975, %v1278
      %v1285 = vsub.f32 %v980, %v1278
      %v1286 = vsub.f32 %v983, %v1278
      %v1287 = vsub.f32 %v988, %v1278
      %v1288 = vsub.f32 %v991, %v1278
      %v1289 = vsub.f32 %v996, %v1278
      %v1290 = vsub.f32 %v999, %v1278
      %v1291 = vsub.f32 %v1004, %v1278
      %v1292 = vsub.f32 %v1007, %v1278
      %v1293 = vsub.f32 %v1012, %v1278
      %v1294 = vsub.f32 %v1015, %v1278
      %v1295 = vsub.f32 %v1020, %v1278
      %v1296 = vsub.f32 %v1023, %v1278
      %v1297 = vsub.f32 %v1028, %v1278
      %v1298 = vsub.f32 %v1031, %v1278
      %v1299 = vsub.f32 %v1036, %v1278
      %v1300 = vsub.f32 %v1039, %v1278
      %v1301 = vsub.f32 %v1044, %v1278
      %v1302 = vsub.f32 %v1047, %v1278
      %v1303 = vsub.f32 %v1052, %v1278
      %v1304 = vsub.f32 %v1055, %v1278
      %v1305 = vsub.f32 %v1060, %v1278
      %v1306 = vsub.f32 %v1063, %v1278
      %v1307 = vsub.f32 %v1068, %v1278
      %v1308 = vsub.f32 %v1071, %v1278
      %v1309 = vsub.f32 %v1076, %v1278
      %v1310 = vsub.f32 %v1079, %v1278
      %v1311 = vsub.f32 %v1084, %v1278
      %v1312 = vsub.f32 %v1087, %v1278
      %v1313 = vsub.f32 %v1092, %v1278
      %v1314 = vsub.f32 %v1095, %v1278
      %v1315 = vsub.f32 %v1100, %v1278
      %v1316 = vsub.f32 %v1103, %v1278
      %v1317 = vsub.f32 %v1108, %v1278
      %v1318 = vsub.f32 %v1111, %v1278
      %v1319 = vsub.f32 %v1116, %v1278
      %v1320 = vsub.f32 %v1119, %v1278
      %v1321 = vsub.f32 %v1124, %v1278
      %v1322 = vsub.f32 %v1127, %v1278
      %v1323 = vsub.f32 %v1132, %v1278
      %v1324 = vsub.f32 %v1135, %v1278
      %v1325 = vsub.f32 %v1140, %v1278
      %v1326 = vsub.f32 %v1143, %v1278
      %v1327 = vsub.f32 %v1148, %v1278
      %v1328 = vsub.f32 %v1151, %v1278
      %v1329 = vsub.f32 %v1156, %v1278
      %v1330 = vsub.f32 %v1159, %v1278
      %v1331 = vsub.f32 %v1164, %v1278
      %v1332 = vsub.f32 %v1167, %v1278
      %v1333 = vsub.f32 %v1172, %v1278
      %v1334 = vsub.f32 %v1175, %v1278
      %v1335 = vsub.f32 %v1180, %v1278
      %v1336 = vsub.f32 %v1183, %v1278
      %v1337 = vsub.f32 %v1188, %v1278
      %v1338 = vsub.f32 %v1191, %v1278
      %v1339 = vsub.f32 %v1196, %v1278
      %v1340 = vsub.f32 %v1199, %v1278
      %v1341 = vsub.f32 %v1204, %v1278
      %v1342 = vsub.f32 %v1207, %v1278
      %v1343 = vmul.f32 %v1279, 1.442695
      %v1344 = vpow.pop %v1343
      %v1345 = vmul.f32 %v1280, 1.442695
      %v1346 = vpow.pop %v1345
      %v1347 = vmul.f32 %v1281, 1.442695
      %v1348 = vpow.pop %v1347
      %v1349 = vmul.f32 %v1282, 1.442695
      %v1350 = vpow.pop %v1349
      %v1351 = vmul.f32 %v1283, 1.442695
      %v1352 = vpow.pop %v1351
      %v1353 = vmul.f32 %v1284, 1.442695
      %v1354 = vpow.pop %v1353
      %v1355 = vmul.f32 %v1285, 1.442695
      %v1356 = vpow.pop %v1355
      %v1357 = vmul.f32 %v1286, 1.442695
      %v1358 = vpow.pop %v1357
      %v1359 = vmul.f32 %v1287, 1.442695
      %v1360 = vpow.pop %v1359
      %v1361 = vmul.f32 %v1288, 1.442695
      %v1362 = vpow.pop %v1361
      %v1363 = vmul.f32 %v1289, 1.442695
      %v1364 = vpow.pop %v1363
      %v1365 = vmul.f32 %v1290, 1.442695
      %v1366 = vpow.pop %v1365
      %v1367 = vmul.f32 %v1291, 1.442695
      %v1368 = vpow.pop %v1367
      %v1369 = vmul.f32 %v1292, 1.442695
      %v1370 = vpow.pop %v1369
      %v1371 = vmul.f32 %v1293, 1.442695
      %v1372 = vpow.pop %v1371
      %v1373 = vmul.f32 %v1294, 1.442695
      %v1374 = vpow.pop %v1373
      %v1375 = vmul.f32 %v1295, 1.442695
      %v1376 = vpow.pop %v1375
      %v1377 = vmul.f32 %v1296, 1.442695
      %v1378 = vpow.pop %v1377
      %v1379 = vmul.f32 %v1297, 1.442695
      %v1380 = vpow.pop %v1379
      %v1381 = vmul.f32 %v1298, 1.442695
      %v1382 = vpow.pop %v1381
      %v1383 = vmul.f32 %v1299, 1.442695
      %v1384 = vpow.pop %v1383
      %v1385 = vmul.f32 %v1300, 1.442695
      %v1386 = vpow.pop %v1385
      %v1387 = vmul.f32 %v1301, 1.442695
      %v1388 = vpow.pop %v1387
      %v1389 = vmul.f32 %v1302, 1.442695
      %v1390 = vpow.pop %v1389
      %v1391 = vmul.f32 %v1303, 1.442695
      %v1392 = vpow.pop %v1391
      %v1393 = vmul.f32 %v1304, 1.442695
      %v1394 = vpow.pop %v1393
      %v1395 = vmul.f32 %v1305, 1.442695
      %v1396 = vpow.pop %v1395
      %v1397 = vmul.f32 %v1306, 1.442695
      %v1398 = vpow.pop %v1397
      %v1399 = vmul.f32 %v1307, 1.442695
      %v1400 = vpow.pop %v1399
      %v1401 = vmul.f32 %v1308, 1.442695
      %v1402 = vpow.pop %v1401
      %v1403 = vmul.f32 %v1309, 1.442695
      %v1404 = vpow.pop %v1403
      %v1405 = vmul.f32 %v1310, 1.442695
      %v1406 = vpow.pop %v1405
      %v1407 = vmul.f32 %v1311, 1.442695
      %v1408 = vpow.pop %v1407
      %v1409 = vmul.f32 %v1312, 1.442695
      %v1410 = vpow.pop %v1409
      %v1411 = vmul.f32 %v1313, 1.442695
      %v1412 = vpow.pop %v1411
      %v1413 = vmul.f32 %v1314, 1.442695
      %v1414 = vpow.pop %v1413
      %v1415 = vmul.f32 %v1315, 1.442695
      %v1416 = vpow.pop %v1415
      %v1417 = vmul.f32 %v1316, 1.442695
      %v1418 = vpow.pop %v1417
      %v1419 = vmul.f32 %v1317, 1.442695
      %v1420 = vpow.pop %v1419
      %v1421 = vmul.f32 %v1318, 1.442695
      %v1422 = vpow.pop %v1421
      %v1423 = vmul.f32 %v1319, 1.442695
      %v1424 = vpow.pop %v1423
      %v1425 = vmul.f32 %v1320, 1.442695
      %v1426 = vpow.pop %v1425
      %v1427 = vmul.f32 %v1321, 1.442695
      %v1428 = vpow.pop %v1427
      %v1429 = vmul.f32 %v1322, 1.442695
      %v1430 = vpow.pop %v1429
      %v1431 = vmul.f32 %v1323, 1.442695
      %v1432 = vpow.pop %v1431
      %v1433 = vmul.f32 %v1324, 1.442695
      %v1434 = vpow.pop %v1433
      %v1435 = vmul.f32 %v1325, 1.442695
      %v1436 = vpow.pop %v1435
      %v1437 = vmul.f32 %v1326, 1.442695
      %v1438 = vpow.pop %v1437
      %v1439 = vmul.f32 %v1327, 1.442695
      %v1440 = vpow.pop %v1439
      %v1441 = vmul.f32 %v1328, 1.442695
      %v1442 = vpow.pop %v1441
      %v1443 = vmul.f32 %v1329, 1.442695
      %v1444 = vpow.pop %v1443
      %v1445 = vmul.f32 %v1330, 1.442695
      %v1446 = vpow.pop %v1445
      %v1447 = vmul.f32 %v1331, 1.442695
      %v1448 = vpow.pop %v1447
      %v1449 = vmul.f32 %v1332, 1.442695
      %v1450 = vpow.pop %v1449
      %v1451 = vmul.f32 %v1333, 1.442695
      %v1452 = vpow.pop %v1451
      %v1453 = vmul.f32 %v1334, 1.442695
      %v1454 = vpow.pop %v1453
      %v1455 = vmul.f32 %v1335, 1.442695
      %v1456 = vpow.pop %v1455
      %v1457 = vmul.f32 %v1336, 1.442695
      %v1458 = vpow.pop %v1457
      %v1459 = vmul.f32 %v1337, 1.442695
      %v1460 = vpow.pop %v1459
      %v1461 = vmul.f32 %v1338, 1.442695
      %v1462 = vpow.pop %v1461
      %v1463 = vmul.f32 %v1339, 1.442695
      %v1464 = vpow.pop %v1463
      %v1465 = vmul.f32 %v1340, 1.442695
      %v1466 = vpow.pop %v1465
      %v1467 = vmul.f32 %v1341, 1.442695
      %v1468 = vpow.pop %v1467
      %v1469 = vmul.f32 %v1342, 1.442695
      %v1470 = vpow.pop %v1469
      %1471 = vxpose.xlu0.b32.start [1/16] %v616, 128
      %1472 = vxpose.xlu0.b32.cont [2/16] %v617, 128
      %1473 = vxpose.xlu0.b32.cont [3/16] %v618, 128
      %1474 = vxpose.xlu0.b32.cont [4/16] %v619, 128
      %1475 = vxpose.xlu0.b32.cont [5/16] %v620, 128
      %1476 = vxpose.xlu0.b32.cont [6/16] %v621, 128
      %1477 = vxpose.xlu0.b32.cont [7/16] %v622, 128
      %1478 = vxpose.xlu0.b32.cont [8/16] %v623, 128
      %1479 = vxpose.xlu0.b32.cont [9/16] %v624, 128
      %1480 = vxpose.xlu0.b32.cont [10/16] %v625, 128
      %1481 = vxpose.xlu0.b32.cont [11/16] %v626, 128
      %1482 = vxpose.xlu0.b32.cont [12/16] %v627, 128
      %1483 = vxpose.xlu0.b32.cont [13/16] %v628, 128
      %1484 = vxpose.xlu0.b32.cont [14/16] %v629, 128
      %1485 = vxpose.xlu0.b32.cont [15/16] %v630, 128
      %1486 = vxpose.xlu0.b32.end [16/16] %v631, 128
      %v1487 = vpop.trf.xlu0
      %v1488 = vpop.trf.xlu0
      %v1489 = vpop.trf.xlu0
      %v1490 = vpop.trf.xlu0
      %v1491 = vpop.trf.xlu0
      %v1492 = vpop.trf.xlu0
      %v1493 = vpop.trf.xlu0
      %v1494 = vpop.trf.xlu0
      %v1495 = vpop.trf.xlu0
      %v1496 = vpop.trf.xlu0
      %v1497 = vpop.trf.xlu0
      %v1498 = vpop.trf.xlu0
      %v1499 = vpop.trf.xlu0
      %v1500 = vpop.trf.xlu0
      %v1501 = vpop.trf.xlu0
      %v1502 = vpop.trf.xlu0
      %1503 = vxpose.xlu0.b32.start [1/16] %v632, 128
      %1504 = vxpose.xlu0.b32.cont [2/16] %v633, 128
      %1505 = vxpose.xlu0.b32.cont [3/16] %v634, 128
      %1506 = vxpose.xlu0.b32.cont [4/16] %v635, 128
      %1507 = vxpose.xlu0.b32.cont [5/16] %v636, 128
      %1508 = vxpose.xlu0.b32.cont [6/16] %v637, 128
      %1509 = vxpose.xlu0.b32.cont [7/16] %v638, 128
      %1510 = vxpose.xlu0.b32.cont [8/16] %v639, 128
      %1511 = vxpose.xlu0.b32.cont [9/16] %v640, 128
      %1512 = vxpose.xlu0.b32.cont [10/16] %v641, 128
      %1513 = vxpose.xlu0.b32.cont [11/16] %v642, 128
      %1514 = vxpose.xlu0.b32.cont [12/16] %v643, 128
      %1515 = vxpose.xlu0.b32.cont [13/16] %v644, 128
      %1516 = vxpose.xlu0.b32.cont [14/16] %v645, 128
      %1517 = vxpose.xlu0.b32.cont [15/16] %v646, 128
      %1518 = vxpose.xlu0.b32.end [16/16] %v647, 128
      %v1519 = vpop.trf.xlu0
      %v1520 = vpop.trf.xlu0
      %v1521 = vpop.trf.xlu0
      %v1522 = vpop.trf.xlu0
      %v1523 = vpop.trf.xlu0
      %v1524 = vpop.trf.xlu0
      %v1525 = vpop.trf.xlu0
      %v1526 = vpop.trf.xlu0
      %v1527 = vpop.trf.xlu0
      %v1528 = vpop.trf.xlu0
      %v1529 = vpop.trf.xlu0
      %v1530 = vpop.trf.xlu0
      %v1531 = vpop.trf.xlu0
      %v1532 = vpop.trf.xlu0
      %v1533 = vpop.trf.xlu0
      %v1534 = vpop.trf.xlu0
      %1535 = vxpose.xlu0.b32.start [1/16] %v648, 128
      %1536 = vxpose.xlu0.b32.cont [2/16] %v649, 128
      %1537 = vxpose.xlu0.b32.cont [3/16] %v650, 128
      %1538 = vxpose.xlu0.b32.cont [4/16] %v651, 128
      %1539 = vxpose.xlu0.b32.cont [5/16] %v652, 128
      %1540 = vxpose.xlu0.b32.cont [6/16] %v653, 128
      %1541 = vxpose.xlu0.b32.cont [7/16] %v654, 128
      %1542 = vxpose.xlu0.b32.cont [8/16] %v655, 128
      %1543 = vxpose.xlu0.b32.cont [9/16] %v656, 128
      %1544 = vxpose.xlu0.b32.cont [10/16] %v657, 128
      %1545 = vxpose.xlu0.b32.cont [11/16] %v658, 128
      %1546 = vxpose.xlu0.b32.cont [12/16] %v659, 128
      %1547 = vxpose.xlu0.b32.cont [13/16] %v660, 128
      %1548 = vxpose.xlu0.b32.cont [14/16] %v661, 128
      %1549 = vxpose.xlu0.b32.cont [15/16] %v662, 128
      %1550 = vxpose.xlu0.b32.end [16/16] %v663, 128
      %v1551 = vpop.trf.xlu0
      %v1552 = vpop.trf.xlu0
      %v1553 = vpop.trf.xlu0
      %v1554 = vpop.trf.xlu0
      %v1555 = vpop.trf.xlu0
      %v1556 = vpop.trf.xlu0
      %v1557 = vpop.trf.xlu0
      %v1558 = vpop.trf.xlu0
      %v1559 = vpop.trf.xlu0
      %v1560 = vpop.trf.xlu0
      %v1561 = vpop.trf.xlu0
      %v1562 = vpop.trf.xlu0
      %v1563 = vpop.trf.xlu0
      %v1564 = vpop.trf.xlu0
      %v1565 = vpop.trf.xlu0
      %v1566 = vpop.trf.xlu0
      %1567 = vxpose.xlu0.b32.start [1/16] %v664, 128
      %1568 = vxpose.xlu0.b32.cont [2/16] %v665, 128
      %1569 = vxpose.xlu0.b32.cont [3/16] %v666, 128
      %1570 = vxpose.xlu0.b32.cont [4/16] %v667, 128
      %1571 = vxpose.xlu0.b32.cont [5/16] %v668, 128
      %1572 = vxpose.xlu0.b32.cont [6/16] %v669, 128
      %1573 = vxpose.xlu0.b32.cont [7/16] %v670, 128
      %1574 = vxpose.xlu0.b32.cont [8/16] %v671, 128
      %1575 = vxpose.xlu0.b32.cont [9/16] %v672, 128
      %1576 = vxpose.xlu0.b32.cont [10/16] %v673, 128
      %1577 = vxpose.xlu0.b32.cont [11/16] %v674, 128
      %1578 = vxpose.xlu0.b32.cont [12/16] %v675, 128
      %1579 = vxpose.xlu0.b32.cont [13/16] %v676, 128
      %1580 = vxpose.xlu0.b32.cont [14/16] %v677, 128
      %1581 = vxpose.xlu0.b32.cont [15/16] %v678, 128
      %1582 = vxpose.xlu0.b32.end [16/16] %v679, 128
      %v1583 = vpop.trf.xlu0
      %v1584 = vpop.trf.xlu0
      %v1585 = vpop.trf.xlu0
      %v1586 = vpop.trf.xlu0
      %v1587 = vpop.trf.xlu0
      %v1588 = vpop.trf.xlu0
      %v1589 = vpop.trf.xlu0
      %v1590 = vpop.trf.xlu0
      %v1591 = vpop.trf.xlu0
      %v1592 = vpop.trf.xlu0
      %v1593 = vpop.trf.xlu0
      %v1594 = vpop.trf.xlu0
      %v1595 = vpop.trf.xlu0
      %v1596 = vpop.trf.xlu0
      %v1597 = vpop.trf.xlu0
      %v1598 = vpop.trf.xlu0
      %1599 = vmatprep.subr.mxu0 0.0
      %1600 = vmatpush1.msra.mxu0 %v1344
      %1601 = vmatprep.subr.mxu0 0.0
      %1602 = vmatpush1.msra.mxu0 %v1346
      %1603 = vmatprep.subr.mxu0 0.0
      %1604 = vmatpush1.msra.mxu0 %v1348
      %1605 = vmatprep.subr.mxu0 0.0
      %1606 = vmatpush1.msra.mxu0 %v1350
      %1607 = vmatprep.subr.mxu0 0.0
      %1608 = vmatpush1.msra.mxu0 %v1352
      %1609 = vmatprep.subr.mxu0 0.0
      %1610 = vmatpush1.msra.mxu0 %v1354
      %1611 = vmatprep.subr.mxu0 0.0
      %1612 = vmatpush1.msra.mxu0 %v1356
      %1613 = vmatprep.subr.mxu0 0.0
      %1614 = vmatpush1.msra.mxu0 %v1358
      %1615 = vmatprep.subr.mxu0 0.0
      %1616 = vmatpush1.msra.mxu0 %v1360
      %1617 = vmatprep.subr.mxu0 0.0
      %1618 = vmatpush1.msra.mxu0 %v1362
      %1619 = vmatprep.subr.mxu0 0.0
      %1620 = vmatpush1.msra.mxu0 %v1364
      %1621 = vmatprep.subr.mxu0 0.0
      %1622 = vmatpush1.msra.mxu0 %v1366
      %1623 = vmatprep.subr.mxu0 0.0
      %1624 = vmatpush1.msra.mxu0 %v1368
      %1625 = vmatprep.subr.mxu0 0.0
      %1626 = vmatpush1.msra.mxu0 %v1370
      %1627 = vmatprep.subr.mxu0 0.0
      %1628 = vmatpush1.msra.mxu0 %v1372
      %1629 = vmatprep.subr.mxu0 0.0
      %1630 = vmatpush1.msra.mxu0 %v1374
      %1631 = vmatprep.subr.mxu0 0.0
      %1632 = vmatpush1.msra.mxu0 %v1376
      %1633 = vmatprep.subr.mxu0 0.0
      %1634 = vmatpush1.msra.mxu0 %v1378
      %1635 = vmatprep.subr.mxu0 0.0
      %1636 = vmatpush1.msra.mxu0 %v1380
      %1637 = vmatprep.subr.mxu0 0.0
      %1638 = vmatpush1.msra.mxu0 %v1382
      %1639 = vmatprep.subr.mxu0 0.0
      %1640 = vmatpush1.msra.mxu0 %v1384
      %1641 = vmatprep.subr.mxu0 0.0
      %1642 = vmatpush1.msra.mxu0 %v1386
      %1643 = vmatprep.subr.mxu0 0.0
      %1644 = vmatpush1.msra.mxu0 %v1388
      %1645 = vmatprep.subr.mxu0 0.0
      %1646 = vmatpush1.msra.mxu0 %v1390
      %1647 = vmatprep.subr.mxu0 0.0
      %1648 = vmatpush1.msra.mxu0 %v1392
      %1649 = vmatprep.subr.mxu0 0.0
      %1650 = vmatpush1.msra.mxu0 %v1394
      %1651 = vmatprep.subr.mxu0 0.0
      %1652 = vmatpush1.msra.mxu0 %v1396
      %1653 = vmatprep.subr.mxu0 0.0
      %1654 = vmatpush1.msra.mxu0 %v1398
      %1655 = vmatprep.subr.mxu0 0.0
      %1656 = vmatpush1.msra.mxu0 %v1400
      %1657 = vmatprep.subr.mxu0 0.0
      %1658 = vmatpush1.msra.mxu0 %v1402
      %1659 = vmatprep.subr.mxu0 0.0
      %1660 = vmatpush1.msra.mxu0 %v1404
      %1661 = vmatprep.subr.mxu0 0.0
      %1662 = vmatpush1.msra.mxu0 %v1406
      %1663 = vmatprep.mubr.f32.mxu0 %v1519
      %1664 = vmatmul.mubr.f32.gmra.mrb[0].mxu0 %v1487
      %v1665 = vpop.f32.mrb[0].mxu0
      %v1666 = vadd.f32 0.0, %v1665
      %v1667 = vpop.f32.mrb[0].mxu0
      %1668 = vdwg.mxu0
      %1669 = vmatprep.subr.mxu0 0.0
      %1670 = vmatpush1.msra.mxu0 %v1408
      %1671 = vmatprep.subr.mxu0 0.0
      %1672 = vmatpush1.msra.mxu0 %v1410
      %1673 = vmatprep.subr.mxu0 0.0
      %1674 = vmatpush1.msra.mxu0 %v1412
      %1675 = vmatprep.subr.mxu0 0.0
      %1676 = vmatpush1.msra.mxu0 %v1414
      %1677 = vmatprep.subr.mxu0 0.0
      %1678 = vmatpush1.msra.mxu0 %v1416
      %1679 = vmatprep.subr.mxu0 0.0
      %1680 = vmatpush1.msra.mxu0 %v1418
      %1681 = vmatprep.subr.mxu0 0.0
      %1682 = vmatpush1.msra.mxu0 %v1420
      %1683 = vmatprep.subr.mxu0 0.0
      %1684 = vmatpush1.msra.mxu0 %v1422
      %1685 = vmatprep.subr.mxu0 0.0
      %1686 = vmatpush1.msra.mxu0 %v1424
      %1687 = vmatprep.subr.mxu0 0.0
      %1688 = vmatpush1.msra.mxu0 %v1426
      %1689 = vmatprep.subr.mxu0 0.0
      %1690 = vmatpush1.msra.mxu0 %v1428
      %1691 = vmatprep.subr.mxu0 0.0
      %1692 = vmatpush1.msra.mxu0 %v1430
      %1693 = vmatprep.subr.mxu0 0.0
      %1694 = vmatpush1.msra.mxu0 %v1432
      %1695 = vmatprep.subr.mxu0 0.0
      %1696 = vmatpush1.msra.mxu0 %v1434
      %1697 = vmatprep.subr.mxu0 0.0
      %1698 = vmatpush1.msra.mxu0 %v1436
      %1699 = vmatprep.subr.mxu0 0.0
      %1700 = vmatpush1.msra.mxu0 %v1438
      %1701 = vmatprep.subr.mxu0 0.0
      %1702 = vmatpush1.msra.mxu0 %v1440
      %1703 = vmatprep.subr.mxu0 0.0
      %1704 = vmatpush1.msra.mxu0 %v1442
      %1705 = vmatprep.subr.mxu0 0.0
      %1706 = vmatpush1.msra.mxu0 %v1444
      %1707 = vmatprep.subr.mxu0 0.0
      %1708 = vmatpush1.msra.mxu0 %v1446
      %1709 = vmatprep.subr.mxu0 0.0
      %1710 = vmatpush1.msra.mxu0 %v1448
      %1711 = vmatprep.subr.mxu0 0.0
      %1712 = vmatpush1.msra.mxu0 %v1450
      %1713 = vmatprep.subr.mxu0 0.0
      %1714 = vmatpush1.msra.mxu0 %v1452
      %1715 = vmatprep.subr.mxu0 0.0
      %1716 = vmatpush1.msra.mxu0 %v1454
      %1717 = vmatprep.subr.mxu0 0.0
      %1718 = vmatpush1.msra.mxu0 %v1456
      %1719 = vmatprep.subr.mxu0 0.0
      %1720 = vmatpush1.msra.mxu0 %v1458
      %1721 = vmatprep.subr.mxu0 0.0
      %1722 = vmatpush1.msra.mxu0 %v1460
      %1723 = vmatprep.subr.mxu0 0.0
      %1724 = vmatpush1.msra.mxu0 %v1462
      %1725 = vmatprep.subr.mxu0 0.0
      %1726 = vmatpush1.msra.mxu0 %v1464
      %1727 = vmatprep.subr.mxu0 0.0
      %1728 = vmatpush1.msra.mxu0 %v1466
      %1729 = vmatprep.subr.mxu0 0.0
      %1730 = vmatpush1.msra.mxu0 %v1468
      %1731 = vmatprep.subr.mxu0 0.0
      %1732 = vmatpush1.msra.mxu0 %v1470
      %1733 = vmatprep.mubr.f32.mxu0 %v1583
      %1734 = vmatmul.mubr.f32.gmra.mrb[0].mxu0 %v1551
      %v1735 = vpop.f32.mrb[0].mxu0
      %v1736 = vadd.f32 %v1666, %v1735
      %v1737 = vpop.f32.mrb[0].mxu0
      %1738 = vdwg.mxu0
      %v1739 = vrcp.pop %v1736
      %v1740 = vmul.f32 1.0, %v1739
      %v1741 = vlaneseq
      %v1742 = vshrl.u32 %v1741, 7
      %v1743 = vsub.s32 3, %v1742
      %v1744 = vrot.slane %v1740, %v1743
      %v1745 = vmul.f32 %v1736, %v1744
      %v1746 = vld [vmem:[%s4] sm:$0xf]
      %v1747 = vld [vmem:[%s5] sm:$0xf]
      %1748 = vxpose.xlu0.b32.start [1/16] %v1747, 128
      %1749 = vxpose.xlu0.b32.cont [2/16] 0.0, 128
      %1750 = vxpose.xlu0.b32.cont [3/16] 0.0, 128
      %1751 = vxpose.xlu0.b32.cont [4/16] 0.0, 128
      %1752 = vxpose.xlu0.b32.cont [5/16] 0.0, 128
      %1753 = vxpose.xlu0.b32.cont [6/16] 0.0, 128
      %1754 = vxpose.xlu0.b32.cont [7/16] 0.0, 128
      %1755 = vxpose.xlu0.b32.cont [8/16] 0.0, 128
      %1756 = vxpose.xlu0.b32.cont [9/16] 0.0, 128
      %1757 = vxpose.xlu0.b32.cont [10/16] 0.0, 128
      %1758 = vxpose.xlu0.b32.cont [11/16] 0.0, 128
      %1759 = vxpose.xlu0.b32.cont [12/16] 0.0, 128
      %1760 = vxpose.xlu0.b32.cont [13/16] 0.0, 128
      %1761 = vxpose.xlu0.b32.cont [14/16] 0.0, 128
      %1762 = vxpose.xlu0.b32.cont [15/16] 0.0, 128
      %1763 = vxpose.xlu0.b32.end [16/16] 0.0, 128
      %v1764 = vpop.trf.xlu0
      %v1765 = vpop.trf.xlu0
      %v1766 = vpop.trf.xlu0
      %v1767 = vpop.trf.xlu0
      %v1768 = vpop.trf.xlu0
      %v1769 = vpop.trf.xlu0
      %v1770 = vpop.trf.xlu0
      %v1771 = vpop.trf.xlu0
      %v1772 = vpop.trf.xlu0
      %v1773 = vpop.trf.xlu0
      %v1774 = vpop.trf.xlu0
      %v1775 = vpop.trf.xlu0
      %v1776 = vpop.trf.xlu0
      %v1777 = vpop.trf.xlu0
      %v1778 = vpop.trf.xlu0
      %v1779 = vpop.trf.xlu0
      %vm1780 = vcmask 31744
      %v1782 = vsel %vm1780, %v1764, 0
      %v1785 = vsel %vm1780, %v1765, 0
      %v1788 = vsel %vm1780, %v1766, 0
      %v1791 = vsel %vm1780, %v1767, 0
      %vm1793 = vcmask 1043456
      %v1795 = vsel %vm1793, %v1745, 0
      %1797 = vmatprep.subr.mxu0 0.0
      %1798 = vmatpush1.msra.mxu0 %v1795
      %1799 = vmatprep.subr.mxu0 0.0
      %1800 = vmatpush1.msra.mxu0 0.0
      %1801 = vmatprep.subr.mxu0 0.0
      %1802 = vmatpush1.msra.mxu0 0.0
      %1803 = vmatprep.subr.mxu0 0.0
      %1804 = vmatpush1.msra.mxu0 0.0
      %1805 = vmatprep.subr.mxu0 0.0
      %1806 = vmatpush1.msra.mxu0 0.0
      %1807 = vmatprep.subr.mxu0 0.0
      %1808 = vmatpush1.msra.mxu0 0.0
      %1809 = vmatprep.subr.mxu0 0.0
      %1810 = vmatpush1.msra.mxu0 0.0
      %1811 = vmatprep.subr.mxu0 0.0
      %1812 = vmatpush1.msra.mxu0 0.0
      %1813 = vmatprep.subr.mxu0 0.0
      %1814 = vmatpush1.msra.mxu0 0.0
      %1815 = vmatprep.subr.mxu0 0.0
      %1816 = vmatpush1.msra.mxu0 0.0
      %1817 = vmatprep.subr.mxu0 0.0
      %1818 = vmatpush1.msra.mxu0 0.0
      %1819 = vmatprep.subr.mxu0 0.0
      %1820 = vmatpush1.msra.mxu0 0.0
      %1821 = vmatprep.subr.mxu0 0.0
      %1822 = vmatpush1.msra.mxu0 0.0
      %1823 = vmatprep.subr.mxu0 0.0
      %1824 = vmatpush1.msra.mxu0 0.0
      %1825 = vmatprep.subr.mxu0 0.0
      %1826 = vmatpush1.msra.mxu0 0.0
      %1827 = vmatprep.subr.mxu0 0.0
      %1828 = vmatpush1.msra.mxu0 0.0
      %1829 = vmatprep.subr.mxu0 0.0
      %1830 = vmatpush1.msra.mxu0 0.0
      %1831 = vmatprep.subr.mxu0 0.0
      %1832 = vmatpush1.msra.mxu0 0.0
      %1833 = vmatprep.subr.mxu0 0.0
      %1834 = vmatpush1.msra.mxu0 0.0
      %1835 = vmatprep.subr.mxu0 0.0
      %1836 = vmatpush1.msra.mxu0 0.0
      %1837 = vmatprep.subr.mxu0 0.0
      %1838 = vmatpush1.msra.mxu0 0.0
      %1839 = vmatprep.subr.mxu0 0.0
      %1840 = vmatpush1.msra.mxu0 0.0
      %1841 = vmatprep.subr.mxu0 0.0
      %1842 = vmatpush1.msra.mxu0 0.0
      %1843 = vmatprep.subr.mxu0 0.0
      %1844 = vmatpush1.msra.mxu0 0.0
      %1845 = vmatprep.subr.mxu0 0.0
      %1846 = vmatpush1.msra.mxu0 0.0
      %1847 = vmatprep.subr.mxu0 0.0
      %1848 = vmatpush1.msra.mxu0 0.0
      %1849 = vmatprep.subr.mxu0 0.0
      %1850 = vmatpush1.msra.mxu0 0.0
      %1851 = vmatprep.subr.mxu0 0.0
      %1852 = vmatpush1.msra.mxu0 0.0
      %1853 = vmatprep.subr.mxu0 0.0
      %1854 = vmatpush1.msra.mxu0 0.0
      %1855 = vmatprep.subr.mxu0 0.0
      %1856 = vmatpush1.msra.mxu0 0.0
      %1857 = vmatprep.subr.mxu0 0.0
      %1858 = vmatpush1.msra.mxu0 0.0
      %1859 = vmatprep.subr.mxu0 0.0
      %1860 = vmatpush1.msra.mxu0 0.0
      %1861 = vmatprep.mubr.f32.mxu0 0.0
      %1862 = vmatmul.mubr.f32.gmra.mrb[0].mxu0 %v1782
      %v1863 = vpop.f32.mrb[0].mxu0
      %v1864 = vadd.f32 0.0, %v1863
      %v1865 = vpop.f32.mrb[0].mxu0
      %1866 = vmatprep.mubr.f32.mxu0 0.0
      %1867 = vmatmul.mubr.f32.gmra.mrb[0].mxu0 %v1785
      %v1868 = vpop.f32.mrb[0].mxu0
      %v1869 = vadd.f32 0.0, %v1868
      %v1870 = vpop.f32.mrb[0].mxu0
      %1871 = vmatprep.mubr.f32.mxu0 0.0
      %1872 = vmatmul.mubr.f32.gmra.mrb[0].mxu0 %v1788
      %v1873 = vpop.f32.mrb[0].mxu0
      %v1874 = vadd.f32 0.0, %v1873
      %v1875 = vpop.f32.mrb[0].mxu0
      %1876 = vmatprep.mubr.f32.mxu0 0.0
      %1877 = vmatmul.mubr.f32.gmra.mrb[0].mxu0 %v1791
      %v1878 = vpop.f32.mrb[0].mxu0
      %v1879 = vadd.f32 0.0, %v1878
      %v1880 = vpop.f32.mrb[0].mxu0
      %1881 = vdwg.mxu0
      %1882 = vxpose.xlu0.b32.start [1/16] %v1746, 128
      %1883 = vxpose.xlu0.b32.cont [2/16] 0.0, 128
      %1884 = vxpose.xlu0.b32.cont [3/16] 0.0, 128
      %1885 = vxpose.xlu0.b32.cont [4/16] 0.0, 128
      %1886 = vxpose.xlu0.b32.cont [5/16] 0.0, 128
      %1887 = vxpose.xlu0.b32.cont [6/16] 0.0, 128
      %1888 = vxpose.xlu0.b32.cont [7/16] 0.0, 128
      %1889 = vxpose.xlu0.b32.cont [8/16] 0.0, 128
      %1890 = vxpose.xlu0.b32.cont [9/16] 0.0, 128
      %1891 = vxpose.xlu0.b32.cont [10/16] 0.0, 128
      %1892 = vxpose.xlu0.b32.cont [11/16] 0.0, 128
      %1893 = vxpose.xlu0.b32.cont [12/16] 0.0, 128
      %1894 = vxpose.xlu0.b32.cont [13/16] 0.0, 128
      %1895 = vxpose.xlu0.b32.cont [14/16] 0.0, 128
      %1896 = vxpose.xlu0.b32.cont [15/16] 0.0, 128
      %1897 = vxpose.xlu0.b32.end [16/16] 0.0, 128
      %v1898 = vpop.trf.xlu0
      %v1899 = vpop.trf.xlu0
      %v1900 = vpop.trf.xlu0
      %v1901 = vpop.trf.xlu0
      %v1902 = vpop.trf.xlu0
      %v1903 = vpop.trf.xlu0
      %v1904 = vpop.trf.xlu0
      %v1905 = vpop.trf.xlu0
      %v1906 = vpop.trf.xlu0
      %v1907 = vpop.trf.xlu0
      %v1908 = vpop.trf.xlu0
      %v1909 = vpop.trf.xlu0
      %v1910 = vpop.trf.xlu0
      %v1911 = vpop.trf.xlu0
      %v1912 = vpop.trf.xlu0
      %v1913 = vpop.trf.xlu0
      %v1915 = vsel %vm1780, %v1898, 0
      %v1918 = vsel %vm1780, %v1899, 0
      %v1921 = vsel %vm1780, %v1900, 0
      %v1924 = vsel %vm1780, %v1901, 0
      %v1927 = vsel %vm1793, %v680, 0
      %1929 = vmatprep.subr.mxu0 0.0
      %1930 = vmatpush1.msra.mxu0 %v1927
      %1931 = vmatprep.subr.mxu0 0.0
      %1932 = vmatpush1.msra.mxu0 0.0
      %1933 = vmatprep.subr.mxu0 0.0
      %1934 = vmatpush1.msra.mxu0 0.0
      %1935 = vmatprep.subr.mxu0 0.0
      %1936 = vmatpush1.msra.mxu0 0.0
      %1937 = vmatprep.subr.mxu0 0.0
      %1938 = vmatpush1.msra.mxu0 0.0
      %1939 = vmatprep.subr.mxu0 0.0
      %1940 = vmatpush1.msra.mxu0 0.0
      %1941 = vmatprep.subr.mxu0 0.0
      %1942 = vmatpush1.msra.mxu0 0.0
      %1943 = vmatprep.subr.mxu0 0.0
      %1944 = vmatpush1.msra.mxu0 0.0
      %1945 = vmatprep.subr.mxu0 0.0
      %1946 = vmatpush1.msra.mxu0 0.0
      %1947 = vmatprep.subr.mxu0 0.0
      %1948 = vmatpush1.msra.mxu0 0.0
      %1949 = vmatprep.subr.mxu0 0.0
      %1950 = vmatpush1.msra.mxu0 0.0
      %1951 = vmatprep.subr.mxu0 0.0
      %1952 = vmatpush1.msra.mxu0 0.0
      %1953 = vmatprep.subr.mxu0 0.0
      %1954 = vmatpush1.msra.mxu0 0.0
      %1955 = vmatprep.subr.mxu0 0.0
      %1956 = vmatpush1.msra.mxu0 0.0
      %1957 = vmatprep.subr.mxu0 0.0
      %1958 = vmatpush1.msra.mxu0 0.0
      %1959 = vmatprep.subr.mxu0 0.0
      %1960 = vmatpush1.msra.mxu0 0.0
      %1961 = vmatprep.subr.mxu0 0.0
      %1962 = vmatpush1.msra.mxu0 0.0
      %1963 = vmatprep.subr.mxu0 0.0
      %1964 = vmatpush1.msra.mxu0 0.0
      %1965 = vmatprep.subr.mxu0 0.0
      %1966 = vmatpush1.msra.mxu0 0.0
      %1967 = vmatprep.subr.mxu0 0.0
      %1968 = vmatpush1.msra.mxu0 0.0
      %1969 = vmatprep.subr.mxu0 0.0
      %1970 = vmatpush1.msra.mxu0 0.0
      %1971 = vmatprep.subr.mxu0 0.0
      %1972 = vmatpush1.msra.mxu0 0.0
      %1973 = vmatprep.subr.mxu0 0.0
      %1974 = vmatpush1.msra.mxu0 0.0
      %1975 = vmatprep.subr.mxu0 0.0
      %1976 = vmatpush1.msra.mxu0 0.0
      %1977 = vmatprep.subr.mxu0 0.0
      %1978 = vmatpush1.msra.mxu0 0.0
      %1979 = vmatprep.subr.mxu0 0.0
      %1980 = vmatpush1.msra.mxu0 0.0
      %1981 = vmatprep.subr.mxu0 0.0
      %1982 = vmatpush1.msra.mxu0 0.0
      %1983 = vmatprep.subr.mxu0 0.0
      %1984 = vmatpush1.msra.mxu0 0.0
      %1985 = vmatprep.subr.mxu0 0.0
      %1986 = vmatpush1.msra.mxu0 0.0
      %1987 = vmatprep.subr.mxu0 0.0
      %1988 = vmatpush1.msra.mxu0 0.0
      %1989 = vmatprep.subr.mxu0 0.0
      %1990 = vmatpush1.msra.mxu0 0.0
      %1991 = vmatprep.subr.mxu0 0.0
      %1992 = vmatpush1.msra.mxu0 0.0
      %1993 = vmatprep.mubr.f32.mxu0 0.0
      %1994 = vmatmul.mubr.f32.gmra.mrb[0].mxu0 %v1915
      %v1995 = vpop.f32.mrb[0].mxu0
      %v1996 = vadd.f32 %v1864, %v1995
      %v1997 = vpop.f32.mrb[0].mxu0
      %1998 = vmatprep.mubr.f32.mxu0 0.0
      %1999 = vmatmul.mubr.f32.gmra.mrb[0].mxu0 %v1918
      %v2000 = vpop.f32.mrb[0].mxu0
      %v2001 = vadd.f32 %v1869, %v2000
      %v2002 = vpop.f32.mrb[0].mxu0
      %2003 = vmatprep.mubr.f32.mxu0 0.0
      %2004 = vmatmul.mubr.f32.gmra.mrb[0].mxu0 %v1921
      %v2005 = vpop.f32.mrb[0].mxu0
      %v2006 = vadd.f32 %v1874, %v2005
      %v2007 = vpop.f32.mrb[0].mxu0
      %2008 = vmatprep.mubr.f32.mxu0 0.0
      %2009 = vmatmul.mubr.f32.gmra.mrb[0].mxu0 %v1924
      %v2010 = vpop.f32.mrb[0].mxu0
      %v2011 = vadd.f32 %v1879, %v2010
      %v2012 = vpop.f32.mrb[0].mxu0
      %2013 = vdwg.mxu0
      %v2014 = vld [vmem:[%s6] sm:$0xff]
      %v2015 = vld [vmem:[%s6 + $0x8] sm:$0xff]
      %v2016 = vld [vmem:[%s6 + $0x10] sm:$0xff]
      %v2017 = vld [vmem:[%s6 + $0x18] sm:$0xff]
      %2019 = vset.pattern.permute.xlu0 0
      %2020 = vperm.xlu0 %2019, %v2014
      %v2021 = vpop.permute.xlu0 %2020
      %2024 = vset.pattern.permute.xlu0 0
      %2025 = vperm.xlu0 %2024, %v2015
      %v2026 = vpop.permute.xlu0 %2025
      %2029 = vset.pattern.permute.xlu0 0
      %2030 = vperm.xlu0 %2029, %v2016
      %v2031 = vpop.permute.xlu0 %2030
      %2034 = vset.pattern.permute.xlu0 0
      %2035 = vperm.xlu0 %2034, %v2017
      %v2036 = vpop.permute.xlu0 %2035
      %v2038 = vadd.f32 %v1996, %v2021
      %v2039 = vadd.f32 %v2001, %v2026
      %v2040 = vadd.f32 %v2006, %v2031
      %v2041 = vadd.f32 %v2011, %v2036
      %v2042 = vmax.f32 %v2038, 0.0
      %v2043 = vmax.f32 %v2039, 0.0
      %v2044 = vmax.f32 %v2040, 0.0
      %v2045 = vmax.f32 %v2041, 0.0
      %v2046 = vld [vmem:[%s7] sm:$0xff]
      %v2047 = vld [vmem:[%s7 + $0x8] sm:$0xff]
      %v2048 = vld [vmem:[%s7 + $0x10] sm:$0xff]
      %v2049 = vld [vmem:[%s7 + $0x18] sm:$0xff]
      %v2050 = vld [vmem:[#allocation2] sm:$0x1]
      %2052 = vset.pattern.permute.xlu0 0
      %2053 = vperm.xlu0 %2052, %v2050
      %v2054 = vpop.permute.xlu0 %2053
      %v2056 = vlaneseq
      %v2057 = vshrl.u32 %v2056, 7
      %v2058 = vsub.s32 0, %v2057
      %v2059 = vrot.slane %v2054, %v2058
      %2060 = vxpose.xlu0.b32.start [1/16] %v2046, 128
      %2061 = vxpose.xlu0.b32.cont [2/16] %v2047, 128
      %2062 = vxpose.xlu0.b32.cont [3/16] %v2048, 128
      %2063 = vxpose.xlu0.b32.cont [4/16] %v2049, 128
      %2064 = vxpose.xlu0.b32.cont [5/16] 0.0, 128
      %2065 = vxpose.xlu0.b32.cont [6/16] 0.0, 128
      %2066 = vxpose.xlu0.b32.cont [7/16] 0.0, 128
      %2067 = vxpose.xlu0.b32.cont [8/16] 0.0, 128
      %2068 = vxpose.xlu0.b32.cont [9/16] 0.0, 128
      %2069 = vxpose.xlu0.b32.cont [10/16] 0.0, 128
      %2070 = vxpose.xlu0.b32.cont [11/16] 0.0, 128
      %2071 = vxpose.xlu0.b32.cont [12/16] 0.0, 128
      %2072 = vxpose.xlu0.b32.cont [13/16] 0.0, 128
      %2073 = vxpose.xlu0.b32.cont [14/16] 0.0, 128
      %2074 = vxpose.xlu0.b32.cont [15/16] 0.0, 128
      %2075 = vxpose.xlu0.b32.end [16/16] 0.0, 128
      %v2076 = vpop.trf.xlu0
      %v2077 = vpop.trf.xlu0
      %v2078 = vpop.trf.xlu0
      %v2079 = vpop.trf.xlu0
      %v2080 = vpop.trf.xlu0
      %v2081 = vpop.trf.xlu0
      %v2082 = vpop.trf.xlu0
      %v2083 = vpop.trf.xlu0
      %v2084 = vpop.trf.xlu0
      %v2085 = vpop.trf.xlu0
      %v2086 = vpop.trf.xlu0
      %v2087 = vpop.trf.xlu0
      %v2088 = vpop.trf.xlu0
      %v2089 = vpop.trf.xlu0
      %v2090 = vpop.trf.xlu0
      %v2091 = vpop.trf.xlu0
      %vm2092 = vcmask 261120
      %v2094 = vsel %vm2092, %v2076, 0
      %2096 = vmatprep.subr.mxu0 0.0
      %2097 = vmatpush1.msra.mxu0 %v2042
      %2098 = vmatprep.subr.mxu0 0.0
      %2099 = vmatpush1.msra.mxu0 %v2043
      %2100 = vmatprep.subr.mxu0 0.0
      %2101 = vmatpush1.msra.mxu0 %v2044
      %2102 = vmatprep.subr.mxu0 0.0
      %2103 = vmatpush1.msra.mxu0 %v2045
      %2104 = vmatprep.subr.mxu0 0.0
      %2105 = vmatpush1.msra.mxu0 0.0
      %2106 = vmatprep.subr.mxu0 0.0
      %2107 = vmatpush1.msra.mxu0 0.0
      %2108 = vmatprep.subr.mxu0 0.0
      %2109 = vmatpush1.msra.mxu0 0.0
      %2110 = vmatprep.subr.mxu0 0.0
      %2111 = vmatpush1.msra.mxu0 0.0
      %2112 = vmatprep.subr.mxu0 0.0
      %2113 = vmatpush1.msra.mxu0 0.0
      %2114 = vmatprep.subr.mxu0 0.0
      %2115 = vmatpush1.msra.mxu0 0.0
      %2116 = vmatprep.subr.mxu0 0.0
      %2117 = vmatpush1.msra.mxu0 0.0
      %2118 = vmatprep.subr.mxu0 0.0
      %2119 = vmatpush1.msra.mxu0 0.0
      %2120 = vmatprep.subr.mxu0 0.0
      %2121 = vmatpush1.msra.mxu0 0.0
      %2122 = vmatprep.subr.mxu0 0.0
      %2123 = vmatpush1.msra.mxu0 0.0
      %2124 = vmatprep.subr.mxu0 0.0
      %2125 = vmatpush1.msra.mxu0 0.0
      %2126 = vmatprep.subr.mxu0 0.0
      %2127 = vmatpush1.msra.mxu0 0.0
      %2128 = vmatprep.subr.mxu0 0.0
      %2129 = vmatpush1.msra.mxu0 0.0
      %2130 = vmatprep.subr.mxu0 0.0
      %2131 = vmatpush1.msra.mxu0 0.0
      %2132 = vmatprep.subr.mxu0 0.0
      %2133 = vmatpush1.msra.mxu0 0.0
      %2134 = vmatprep.subr.mxu0 0.0
      %2135 = vmatpush1.msra.mxu0 0.0
      %2136 = vmatprep.subr.mxu0 0.0
      %2137 = vmatpush1.msra.mxu0 0.0
      %2138 = vmatprep.subr.mxu0 0.0
      %2139 = vmatpush1.msra.mxu0 0.0
      %2140 = vmatprep.subr.mxu0 0.0
      %2141 = vmatpush1.msra.mxu0 0.0
      %2142 = vmatprep.subr.mxu0 0.0
      %2143 = vmatpush1.msra.mxu0 0.0
      %2144 = vmatprep.subr.mxu0 0.0
      %2145 = vmatpush1.msra.mxu0 0.0
      %2146 = vmatprep.subr.mxu0 0.0
      %2147 = vmatpush1.msra.mxu0 0.0
      %2148 = vmatprep.subr.mxu0 0.0
      %2149 = vmatpush1.msra.mxu0 0.0
      %2150 = vmatprep.subr.mxu0 0.0
      %2151 = vmatpush1.msra.mxu0 0.0
      %2152 = vmatprep.subr.mxu0 0.0
      %2153 = vmatpush1.msra.mxu0 0.0
      %2154 = vmatprep.subr.mxu0 0.0
      %2155 = vmatpush1.msra.mxu0 0.0
      %2156 = vmatprep.subr.mxu0 0.0
      %2157 = vmatpush1.msra.mxu0 0.0
      %2158 = vmatprep.subr.mxu0 0.0
      %2159 = vmatpush1.msra.mxu0 0.0
      %2160 = vmatprep.mubr.f32.mxu0 0.0
      %2161 = vmatmul.mubr.f32.gmra.mrb[0].mxu0 %v2094
      %v2162 = vpop.f32.mrb[0].mxu0
      %v2163 = vadd.f32 %v2059, %v2162
      %v2164 = vpop.f32.mrb[0].mxu0
      %2165 = vdwg.mxu0
      %v2166 = vtanh.pop %v2163
      %v2167 = vmax.f32 %v2166, 0.0
      %2168 = vst [vmem:[%s519] sm:$0xf] %v1745
      %2169 = vst [vmem:[%s526] sm:$0x1] %v2167
      %v2170 = vlaneseq
      %v2171 = vshrl.u32 %v2170, 7
      %v2172 = vsub.s32 0, %v2171
      %v2173 = vrot.slane %v2167, %v2172
      %v2174 = vmul.f32 %v680, %v2173
      %2175 = vmatprep.subr.mxu0 0.0
      %2176 = vmatpush1.xpose.msra.mxu0 %v1745
      %2177 = vmatprep.subr.mxu0 0.0
      %2178 = vmatpush1.xpose.msra.mxu0 0.0
      %2179 = vmatprep.subr.mxu0 0.0
      %2180 = vmatpush1.xpose.msra.mxu0 0.0
      %2181 = vmatprep.subr.mxu0 0.0
      %2182 = vmatpush1.xpose.msra.mxu0 0.0
      %2183 = vmatprep.subr.mxu0 0.0
      %2184 = vmatpush1.xpose.msra.mxu0 0.0
      %2185 = vmatprep.subr.mxu0 0.0
      %2186 = vmatpush1.xpose.msra.mxu0 0.0
      %2187 = vmatprep.subr.mxu0 0.0
      %2188 = vmatpush1.xpose.msra.mxu0 0.0
      %2189 = vmatprep.subr.mxu0 0.0
      %2190 = vmatpush1.xpose.msra.mxu0 0.0
      %2191 = vmatprep.subr.mxu0 0.0
      %2192 = vmatpush1.xpose.msra.mxu0 0.0
      %2193 = vmatprep.subr.mxu0 0.0
      %2194 = vmatpush1.xpose.msra.mxu0 0.0
      %2195 = vmatprep.subr.mxu0 0.0
      %2196 = vmatpush1.xpose.msra.mxu0 0.0
      %2197 = vmatprep.subr.mxu0 0.0
      %2198 = vmatpush1.xpose.msra.mxu0 0.0
      %2199 = vmatprep.subr.mxu0 0.0
      %2200 = vmatpush1.xpose.msra.mxu0 0.0
      %2201 = vmatprep.subr.mxu0 0.0
      %2202 = vmatpush1.xpose.msra.mxu0 0.0
      %2203 = vmatprep.subr.mxu0 0.0
      %2204 = vmatpush1.xpose.msra.mxu0 0.0
      %2205 = vmatprep.subr.mxu0 0.0
      %2206 = vmatpush1.xpose.msra.mxu0 0.0
      %2207 = vmatprep.subr.mxu0 0.0
      %2208 = vmatpush1.xpose.msra.mxu0 0.0
      %2209 = vmatprep.subr.mxu0 0.0
      %2210 = vmatpush1.xpose.msra.mxu0 0.0
      %2211 = vmatprep.subr.mxu0 0.0
      %2212 = vmatpush1.xpose.msra.mxu0 0.0
      %2213 = vmatprep.subr.mxu0 0.0
      %2214 = vmatpush1.xpose.msra.mxu0 0.0
      %2215 = vmatprep.subr.mxu0 0.0
      %2216 = vmatpush1.xpose.msra.mxu0 0.0
      %2217 = vmatprep.subr.mxu0 0.0
      %2218 = vmatpush1.xpose.msra.mxu0 0.0
      %2219 = vmatprep.subr.mxu0 0.0
      %2220 = vmatpush1.xpose.msra.mxu0 0.0
      %2221 = vmatprep.subr.mxu0 0.0
      %2222 = vmatpush1.xpose.msra.mxu0 0.0
      %2223 = vmatprep.subr.mxu0 0.0
      %2224 = vmatpush1.xpose.msra.mxu0 0.0
      %2225 = vmatprep.subr.mxu0 0.0
      %2226 = vmatpush1.xpose.msra.mxu0 0.0
      %2227 = vmatprep.subr.mxu0 0.0
      %2228 = vmatpush1.xpose.msra.mxu0 0.0
      %2229 = vmatprep.subr.mxu0 0.0
      %2230 = vmatpush1.xpose.msra.mxu0 0.0
      %2231 = vmatprep.subr.mxu0 0.0
      %2232 = vmatpush1.xpose.msra.mxu0 0.0
      %2233 = vmatprep.subr.mxu0 0.0
      %2234 = vmatpush1.xpose.msra.mxu0 0.0
      %2235 = vmatprep.subr.mxu0 0.0
      %2236 = vmatpush1.xpose.msra.mxu0 0.0
      %2237 = vmatprep.subr.mxu0 0.0
      %2238 = vmatpush1.xpose.msra.mxu0 0.0
      %2239 = vmatprep.mubr.f32.mxu0 0.0
      %2240 = vmatmul.mubr.f32.gmra.mrb[0].mxu0 %v2174
      %v2241 = vpop.f32.mrb[0].mxu0
      %v2242 = vadd.f32 0.0, %v2241
      %v2243 = vpop.f32.mrb[0].mxu0
      %2244 = vdwg.mxu0
      %vm2245 = vcmask 27648
      %2246 = vst.msk [vmem:[%s534] sm:$0xf] %vm2245, %v2242
      %p2247 = scmp.lt.s32.totalorder %s29, 1
      %s2248 = scalar_select %p2247, %s29, 1
      %p2249 = scmp.lt.s32.totalorder %s30, 1
      %s2250 = scalar_select %p2249, %s30, 1
      %s2251 = smul.addr %s2248, 2
      %s2252 = sadd.s32 %s2250, %s2251
      %s2253 = smul.addr %s2252, 4
      %s2254 = scalar_lea.vmem %s9, %s2253
      %p2255 = scmp.lt.s32.totalorder %s29, 1
      %s2256 = scalar_select %p2255, %s29, 1
      %p2257 = scmp.lt.s32.totalorder %s30, 1
      %s2258 = scalar_select %p2257, %s30, 1
      %s2259 = smul.addr %s2256, 2
      %s2260 = sadd.s32 %s2258, %s2259
      %s2261 = scalar_lea.vmem %s10, %s2260
      %p2262 = scmp.lt.s32.totalorder %s29, 1
      %s2263 = scalar_select %p2262, %s29, 1
      %p2264 = scmp.lt.s32.totalorder %s30, 1
      %s2265 = scalar_select %p2264, %s30, 1
      %s2266 = smul.addr %s2263, 2
      %s2267 = sadd.s32 %s2265, %s2266
      %s2268 = smul.addr %s2267, 4
      %s2269 = scalar_lea.vmem %s11, %s2268
      // Predicated region
      $region57: #{pairwise_reg_forward.1} parent=55 // pred_check
        %p2270 = pneg %p270
      $region58: #{pairwise_reg_forward.1} parent=55 // pred_check_branch
        %2272 = sbr.rel (%p2270) target = $region60
      $region59: #{pairwise_reg_forward.1} parent=55 // pred_region
        _
      $region60: #{pairwise_reg_forward.1} parent=55 // pred_fallthru
        _
      // Predicated region
      $region61: #{pairwise_reg_forward.1} parent=55 // pred_check
        %p2273 = pneg %p298
      $region62: #{pairwise_reg_forward.1} parent=55 // pred_check_branch
        %2275 = sbr.rel (%p2273) target = $region64
      $region63: #{pairwise_reg_forward.1} parent=55 // pred_region
        _
      $region64: #{pairwise_reg_forward.1} parent=55 // pred_fallthru
        _
      // Predicated region
      $region65: #{pairwise_reg_forward.1} parent=55 // pred_check
        %p2276 = pneg %p326
      $region66: #{pairwise_reg_forward.1} parent=55 // pred_check_branch
        %2278 = sbr.rel (%p2276) target = $region68
      $region67: #{pairwise_reg_forward.1} parent=55 // pred_region
        _
      $region68: #{pairwise_reg_forward.1} parent=55 // pred_fallthru
        _
    $region56: #{pairwise_reg_forward.1} parent=5 // pred_fallthru
      _
    %p2279 = scmp.le.s32.totalorder 2, %s20
    // Predicated region
    $region69: #{pairwise_reg_forward.1} parent=5 // pred_check
      %p2280 = pneg %p2279
    $region70: #{pairwise_reg_forward.1} parent=5 // pred_check_branch
      %2282 = sbr.rel (%p2280) target = $region72
    $region71: #{pairwise_reg_forward.1} parent=5 // pred_region
      %s2283 = ssub.s32 %s20, 2
      // Predicated region
      $region73: #{pairwise_reg_forward.1} parent=71 // pred_check
        %p2284 = pneg %p276
      $region74: #{pairwise_reg_forward.1} parent=71 // pred_check_branch
        %2286 = sbr.rel (%p2284) target = $region76
      $region75: #{pairwise_reg_forward.1} parent=71 // pred_region
        %p2287 = scmp.lt.s32.totalorder %s31, 1
        %s2288 = scalar_select %p2287, %s31, 1
        %p2289 = scmp.lt.s32.totalorder %s32, 1
        %s2290 = scalar_select %p2289, %s32, 1
        %s2291 = smul.addr %s2288, 2
        %s2292 = sadd.s32 %s2290, %s2291
        %s2293 = smul.addr %s2292, 4
        %s2294 = scalar_lea.vmem %s9, %s2293
      $region76: #{pairwise_reg_forward.1} parent=71 // pred_fallthru
        _
      // Predicated region
      $region77: #{pairwise_reg_forward.1} parent=71 // pred_check
        %p2295 = pneg %p304
      $region78: #{pairwise_reg_forward.1} parent=71 // pred_check_branch
        %2297 = sbr.rel (%p2295) target = $region80
      $region79: #{pairwise_reg_forward.1} parent=71 // pred_region
        %p2298 = scmp.lt.s32.totalorder %s31, 1
        %s2299 = scalar_select %p2298, %s31, 1
        %p2300 = scmp.lt.s32.totalorder %s32, 1
        %s2301 = scalar_select %p2300, %s32, 1
        %s2302 = smul.addr %s2299, 2
        %s2303 = sadd.s32 %s2301, %s2302
        %s2304 = scalar_lea.vmem %s10, %s2303
      $region80: #{pairwise_reg_forward.1} parent=71 // pred_fallthru
        _
      // Predicated region
      $region81: #{pairwise_reg_forward.1} parent=71 // pred_check
        %p2305 = pneg %p332
      $region82: #{pairwise_reg_forward.1} parent=71 // pred_check_branch
        %2307 = sbr.rel (%p2305) target = $region84
      $region83: #{pairwise_reg_forward.1} parent=71 // pred_region
        %p2308 = scmp.lt.s32.totalorder %s31, 1
        %s2309 = scalar_select %p2308, %s31, 1
        %p2310 = scmp.lt.s32.totalorder %s32, 1
        %s2311 = scalar_select %p2310, %s32, 1
        %s2312 = smul.addr %s2309, 2
        %s2313 = sadd.s32 %s2311, %s2312
        %s2314 = smul.addr %s2313, 4
        %s2315 = scalar_lea.vmem %s11, %s2314
      $region84: #{pairwise_reg_forward.1} parent=71 // pred_fallthru
        _
    $region72: #{pairwise_reg_forward.1} parent=5 // pred_fallthru
      _
  $region6: #{pairwise_reg_forward.1} parent=0 // loop_footer
    %s24 = sadd.s32 1, %s20
  $region7: #{pairwise_reg_forward.1} parent=0 // loop_footer_branch
    %19 = sbr.rel target = $region3
  $region8: #{pairwise_reg_forward.1} parent=0 // loop_exit
    _

// kernel: custom-call.22
$region0: #{custom-call.22}
  %s0 = inlined_call_operand.vmem [shape: f32[2,2,2], index: 0, kind: input, shape index: {}]
  %s1 = inlined_call_operand.vmem [shape: f32[2,2,2], index: 1, kind: input, shape index: {}]
  %s2 = inlined_call_operand.vmem [shape: f32[2,2,2], index: 2, kind: input, shape index: {}]
  %s3 = inlined_call_operand.vmem [shape: f32[2,2,2], index: 3, kind: input, shape index: {}]
  %s4 = inlined_call_operand.vmem [shape: f32[2,2], index: 4, kind: output, shape index: {0}]
  %s5 = inlined_call_operand.vmem [shape: f32[2,2], index: 5, kind: output, shape index: {1}]
  %s6 = inlined_call_operand.vmem [shape: f32[2,2,2], index: 6, kind: output, shape index: {2}]
  %s7 = inlined_call_operand.vmem [shape: f32[2,2,2], index: 7, kind: output, shape index: {3}]
  %s8 = inlined_call_operand.vmem [shape: f32[2,2,2], index: 8, kind: output, shape index: {4}]
  %s9 = inlined_call_operand.vmem [shape: f32[2,2,2], index: 9, kind: output, shape index: {5}]
  %10 = xla_tuple %s4, %s5, %s6, %s7, %s8, %s9
  $region1: #{custom-call.22} parent=0
    #allocation0 [shape = 'u8[4096]{0}', space=vmem, size = 0x1000, scoped, tag = 'operand span for operand 0']
    #allocation1 [shape = 'u8[2048]{0}', space=vmem, size = 0x800, scoped, tag = 'packed  for operand 0']
    #allocation2 [shape = 'u8[4096]{0}', space=vmem, size = 0x1000, scoped, tag = 'operand span for operand 1']
    #allocation3 [shape = 'u8[2048]{0}', space=vmem, size = 0x800, scoped, tag = 'packed  for operand 1']
    #allocation4 [shape = 'u8[4096]{0}', space=vmem, size = 0x1000, scoped, tag = 'operand span for operand 2']
    #allocation5 [shape = 'u8[2048]{0}', space=vmem, size = 0x800, scoped, tag = 'packed  for operand 2']
    #allocation6 [shape = 'u8[4096]{0}', space=vmem, size = 0x1000, scoped, tag = 'operand span for operand 3']
    #allocation7 [shape = 'u8[2048]{0}', space=vmem, size = 0x800, scoped, tag = 'packed  for operand 3']
    #allocation8 [shape = 'u8[4096]{0}', space=vmem, size = 0x1000, scoped, tag = 'operand span for operand 4']
    #allocation9 [shape = 'u8[2048]{0}', space=vmem, size = 0x800, scoped, tag = 'packed  for operand 4']
    #allocation10 [shape = 'u8[4096]{0}', space=vmem, size = 0x1000, scoped, tag = 'operand span for operand 5']
    #allocation11 [shape = 'u8[2048]{0}', space=vmem, size = 0x800, scoped, tag = 'packed  for operand 5']
    #allocation12 [shape = 'u8[4096]{0}', space=vmem, size = 0x1000, scoped, tag = 'operand span for operand 6']
    #allocation13 [shape = 'u8[2048]{0}', space=vmem, size = 0x800, scoped, tag = 'packed  for operand 6']
    #allocation14 [shape = 'u8[4096]{0}', space=vmem, size = 0x1000, scoped, tag = 'operand span for operand 7']
    #allocation15 [shape = 'u8[2048]{0}', space=vmem, size = 0x800, scoped, tag = 'packed  for operand 7']
    #allocation16 [shape = 'u8[4096]{0}', space=vmem, size = 0x1000, scoped, tag = 'operand span for operand 8']
    #allocation17 [shape = 'u8[2048]{0}', space=vmem, size = 0x800, scoped, tag = 'packed  for operand 8']
    #allocation18 [shape = 'u8[4096]{0}', space=vmem, size = 0x1000, scoped, tag = 'operand span for operand 9']
    #allocation19 [shape = 'u8[2048]{0}', space=vmem, size = 0x800, scoped, tag = 'packed  for operand 9']
    loop: start=0, step=1, limit=4
    $region2: #{custom-call.22} parent=1 // loop_pre_header
      _
    $region3: #{custom-call.22} parent=1 // loop_header
      %s12 = sphi 0, %s16
      %p13 = scmp.ge.s32.totalorder %s12, 4
      %s24 = sphi 0, %s26
      %s27 = sphi 0, %s24
      %s28 = sphi 0, %s27
      %s44 = sphi 0, %s28
      %s52 = sphi 0, %s54
      %s55 = sphi 0, %s52
      %s56 = sphi 0, %s55
      %s72 = sphi 0, %s56
    $region4: #{custom-call.22} parent=1 // loop_header_branch
      %15 = sbr.rel (%p13) target = $region8
    $region5: #{custom-call.22} parent=1 // loop_body
      %s17 = ssub.s32 %s12, 1
      %s18 = ssub.s32 %s12, 2
      %s19 = sadd.s32 %s12, 1
      %s20 = sshrl.u32 %s12, 3
      %s21 = sshrl.u32 %s19, 3
      %s22 = ssub.s32 %s20, %s21
      %p23 = scmp.eq.s32.totalorder %s22, 0
      %s25 = sadd.s32 %s24, 1
      %s26 = scalar_select %p23, %s24, %s25
      %p29 = pneg %p23
      %p30 = scmp.eq.s32.totalorder %s12, 1
      %p31 = por %p29, %p30
      %p32 = scmp.ne.s32.totalorder %s24, %s27
      %p33 = scmp.eq.s32.totalorder %s12, 0
      %p34 = por %p32, %p33
      %p35 = scmp.ne.s32.totalorder %s24, %s27
      %p36 = scmp.eq.s32.totalorder %s17, 1
      %p37 = por %p35, %p36
      %p38 = scmp.ne.s32.totalorder %s27, %s28
      %p39 = scmp.eq.s32.totalorder %s17, 0
      %p40 = por %p38, %p39
      %p41 = scmp.ne.s32.totalorder %s27, %s28
      %p42 = scmp.eq.s32.totalorder %s18, 1
      %p43 = por %p41, %p42
      %p45 = scmp.ne.s32.totalorder %s28, %s44
      %p46 = scmp.eq.s32.totalorder %s18, 0
      %p47 = por %p45, %p46
      %s48 = sshrl.u32 %s12, 3
      %s49 = sshrl.u32 %s19, 3
      %s50 = ssub.s32 %s48, %s49
      %p51 = scmp.eq.s32.totalorder %s50, 0
      %s53 = sadd.s32 %s52, 1
      %s54 = scalar_select %p51, %s52, %s53
      %p57 = pneg %p51
      %p58 = scmp.eq.s32.totalorder %s12, 1
      %p59 = por %p57, %p58
      %p60 = scmp.ne.s32.totalorder %s52, %s55
      %p61 = scmp.eq.s32.totalorder %s12, 0
      %p62 = por %p60, %p61
      %p63 = scmp.ne.s32.totalorder %s52, %s55
      %p64 = scmp.eq.s32.totalorder %s17, 1
      %p65 = por %p63, %p64
      %p66 = scmp.ne.s32.totalorder %s55, %s56
      %p67 = scmp.eq.s32.totalorder %s17, 0
      %p68 = por %p66, %p67
      %p69 = scmp.ne.s32.totalorder %s55, %s56
      %p70 = scmp.eq.s32.totalorder %s18, 1
      %p71 = por %p69, %p70
      %p73 = scmp.ne.s32.totalorder %s56, %s72
      %p74 = scmp.eq.s32.totalorder %s18, 0
      %p75 = por %p73, %p74
      %p76 = scmp.le.s32.totalorder 1, %s12
      %p77 = scmp.lt.s32.totalorder %s12, 3
      %p78 = pnand %p76, %p77
      %p79 = pneg %p78
      // Predicated region
      $region9: #{custom-call.22} parent=5 // pred_check
        _
      $region10: #{custom-call.22} parent=5 // pred_check_branch
        %81 = sbr.rel (%p78) target = $region12
      $region11: #{custom-call.22} parent=5 // pred_region
        %s82 = ssub.s32 %s12, 1
      $region12: #{custom-call.22} parent=5 // pred_fallthru
        _
      %p83 = scmp.lt.s32.totalorder %s12, 2
      // Predicated region
      $region13: #{custom-call.22} parent=5 // pred_check
        %p84 = pneg %p83
      $region14: #{custom-call.22} parent=5 // pred_check_branch
        %86 = sbr.rel (%p84) target = $region16
      $region15: #{custom-call.22} parent=5 // pred_region
        %s87 = sand.u32 %s12, 1
        %s88 = sand.u32 %s12, 1
        %s89 = smul.addr %s88, 2
        %s90 = scalar_lea.vmem [#allocation1], %s89
        %s91 = smul.addr %s12, 2
        %s92 = scalar_lea.vmem %s0, %s91
        // Predicated region
        $region17: #{custom-call.22} parent=15 // pred_check
          _
        $region18: #{custom-call.22} parent=15 // pred_check_branch
          %94 = sbr.rel (0) target = $region20
        $region19: #{custom-call.22} parent=15 // pred_region
          // Predicated region
          $region21: #{custom-call.22} parent=19 // pred_check
            _
          $region22: #{custom-call.22} parent=19 // pred_check_branch
            %96 = sbr.rel target = $region24
          $region23: #{custom-call.22} parent=19 // pred_region
            // Predicated region
            $region36: #{custom-call.22} parent=23 // pred_check
              _
            $region37: #{custom-call.22} parent=23 // pred_check_branch
              %111 = sbr.rel (0) target = $region39
            $region38: #{custom-call.22} parent=23 // pred_region
              loop: start=0, step=1, limit=1
              $region40: #{custom-call.22} parent=38 // loop_pre_header
                _
              $region41: #{custom-call.22} parent=38 // loop_header
                %s114 = sphi 0, %s118
                %p115 = scmp.ge.s32.totalorder %s114, 1
                %s119 = sphi %s92, %s92
                %s120 = sphi %s90, %s90
              $region42: #{custom-call.22} parent=38 // loop_header_branch
                %117 = sbr.rel (%p115) target = $region46
              $region43: #{custom-call.22} parent=38 // loop_body
                %v121 = vld [vmem:[%s119] sm:$0x3]
                %122 = vst [vmem:[%s120] sm:$0x3] %v121
              $region44: #{custom-call.22} parent=38 // loop_footer
                %s118 = sadd.s32 1, %s114
              $region45: #{custom-call.22} parent=38 // loop_footer_branch
                %113 = sbr.rel target = $region41
              $region46: #{custom-call.22} parent=38 // loop_exit
                _
            $region39: #{custom-call.22} parent=23 // pred_fallthru
              _
          $region24: #{custom-call.22} parent=19 // pred_fallthru
            _
          // Predicated region
          $region25: #{custom-call.22} parent=19 // pred_check
            _
          $region26: #{custom-call.22} parent=19 // pred_check_branch
            %98 = sbr.rel (0) target = $region28
          $region27: #{custom-call.22} parent=19 // pred_region
            loop: start=0, step=1, limit=1
            $region29: #{custom-call.22} parent=27 // loop_pre_header
              _
            $region30: #{custom-call.22} parent=27 // loop_header
              %s101 = sphi 0, %s105
              %p102 = scmp.ge.s32.totalorder %s101, 1
              %s106 = sphi %s92, %s92
              %s107 = sphi %s90, %s90
            $region31: #{custom-call.22} parent=27 // loop_header_branch
              %104 = sbr.rel (%p102) target = $region35
            $region32: #{custom-call.22} parent=27 // loop_body
              %v108 = vld [vmem:[%s106] sm:$0x3]
              %109 = vst [vmem:[%s107] sm:$0x3] %v108
            $region33: #{custom-call.22} parent=27 // loop_footer
              %s105 = sadd.s32 1, %s101
            $region34: #{custom-call.22} parent=27 // loop_footer_branch
              %100 = sbr.rel target = $region30
            $region35: #{custom-call.22} parent=27 // loop_exit
              _
          $region28: #{custom-call.22} parent=19 // pred_fallthru
            _
        $region20: #{custom-call.22} parent=15 // pred_fallthru
          _
        %123 = vnop
        %s124 = sand.u32 %s12, 1
        %s125 = sand.u32 %s12, 1
        %s126 = smul.addr %s125, 2
        %s127 = scalar_lea.vmem [#allocation3], %s126
        %s128 = smul.addr %s12, 2
        %s129 = scalar_lea.vmem %s1, %s128
        // Predicated region
        $region47: #{custom-call.22} parent=15 // pred_check
          _
        $region48: #{custom-call.22} parent=15 // pred_check_branch
          %131 = sbr.rel (0) target = $region50
        $region49: #{custom-call.22} parent=15 // pred_region
          // Predicated region
          $region51: #{custom-call.22} parent=49 // pred_check
            _
          $region52: #{custom-call.22} parent=49 // pred_check_branch
            %133 = sbr.rel target = $region54
          $region53: #{custom-call.22} parent=49 // pred_region
            // Predicated region
            $region66: #{custom-call.22} parent=53 // pred_check
              _
            $region67: #{custom-call.22} parent=53 // pred_check_branch
              %148 = sbr.rel (0) target = $region69
            $region68: #{custom-call.22} parent=53 // pred_region
              loop: start=0, step=1, limit=1
              $region70: #{custom-call.22} parent=68 // loop_pre_header
                _
              $region71: #{custom-call.22} parent=68 // loop_header
                %s151 = sphi 0, %s155
                %p152 = scmp.ge.s32.totalorder %s151, 1
                %s156 = sphi %s129, %s129
                %s157 = sphi %s127, %s127
              $region72: #{custom-call.22} parent=68 // loop_header_branch
                %154 = sbr.rel (%p152) target = $region76
              $region73: #{custom-call.22} parent=68 // loop_body
                %v158 = vld [vmem:[%s156] sm:$0x3]
                %159 = vst [vmem:[%s157] sm:$0x3] %v158
              $region74: #{custom-call.22} parent=68 // loop_footer
                %s155 = sadd.s32 1, %s151
              $region75: #{custom-call.22} parent=68 // loop_footer_branch
                %150 = sbr.rel target = $region71
              $region76: #{custom-call.22} parent=68 // loop_exit
                _
            $region69: #{custom-call.22} parent=53 // pred_fallthru
              _
          $region54: #{custom-call.22} parent=49 // pred_fallthru
            _
          // Predicated region
          $region55: #{custom-call.22} parent=49 // pred_check
            _
          $region56: #{custom-call.22} parent=49 // pred_check_branch
            %135 = sbr.rel (0) target = $region58
          $region57: #{custom-call.22} parent=49 // pred_region
            loop: start=0, step=1, limit=1
            $region59: #{custom-call.22} parent=57 // loop_pre_header
              _
            $region60: #{custom-call.22} parent=57 // loop_header
              %s138 = sphi 0, %s142
              %p139 = scmp.ge.s32.totalorder %s138, 1
              %s143 = sphi %s129, %s129
              %s144 = sphi %s127, %s127
            $region61: #{custom-call.22} parent=57 // loop_header_branch
              %141 = sbr.rel (%p139) target = $region65
            $region62: #{custom-call.22} parent=57 // loop_body
              %v145 = vld [vmem:[%s143] sm:$0x3]
              %146 = vst [vmem:[%s144] sm:$0x3] %v145
            $region63: #{custom-call.22} parent=57 // loop_footer
              %s142 = sadd.s32 1, %s138
            $region64: #{custom-call.22} parent=57 // loop_footer_branch
              %137 = sbr.rel target = $region60
            $region65: #{custom-call.22} parent=57 // loop_exit
              _
          $region58: #{custom-call.22} parent=49 // pred_fallthru
            _
        $region50: #{custom-call.22} parent=15 // pred_fallthru
          _
        %160 = vnop
        %s161 = sand.u32 %s12, 1
        %s162 = sand.u32 %s12, 1
        %s163 = smul.addr %s162, 2
        %s164 = scalar_lea.vmem [#allocation5], %s163
        %s165 = smul.addr %s12, 2
        %s166 = scalar_lea.vmem %s2, %s165
        // Predicated region
        $region77: #{custom-call.22} parent=15 // pred_check
          _
        $region78: #{custom-call.22} parent=15 // pred_check_branch
          %168 = sbr.rel (0) target = $region80
        $region79: #{custom-call.22} parent=15 // pred_region
          // Predicated region
          $region81: #{custom-call.22} parent=79 // pred_check
            _
          $region82: #{custom-call.22} parent=79 // pred_check_branch
            %170 = sbr.rel target = $region84
          $region83: #{custom-call.22} parent=79 // pred_region
            // Predicated region
            $region96: #{custom-call.22} parent=83 // pred_check
              _
            $region97: #{custom-call.22} parent=83 // pred_check_branch
              %185 = sbr.rel (0) target = $region99
            $region98: #{custom-call.22} parent=83 // pred_region
              loop: start=0, step=1, limit=1
              $region100: #{custom-call.22} parent=98 // loop_pre_header
                _
              $region101: #{custom-call.22} parent=98 // loop_header
                %s188 = sphi 0, %s192
                %p189 = scmp.ge.s32.totalorder %s188, 1
                %s193 = sphi %s166, %s166
                %s194 = sphi %s164, %s164
              $region102: #{custom-call.22} parent=98 // loop_header_branch
                %191 = sbr.rel (%p189) target = $region106
              $region103: #{custom-call.22} parent=98 // loop_body
                %v195 = vld [vmem:[%s193] sm:$0x3]
                %196 = vst [vmem:[%s194] sm:$0x3] %v195
              $region104: #{custom-call.22} parent=98 // loop_footer
                %s192 = sadd.s32 1, %s188
              $region105: #{custom-call.22} parent=98 // loop_footer_branch
                %187 = sbr.rel target = $region101
              $region106: #{custom-call.22} parent=98 // loop_exit
                _
            $region99: #{custom-call.22} parent=83 // pred_fallthru
              _
          $region84: #{custom-call.22} parent=79 // pred_fallthru
            _
          // Predicated region
          $region85: #{custom-call.22} parent=79 // pred_check
            _
          $region86: #{custom-call.22} parent=79 // pred_check_branch
            %172 = sbr.rel (0) target = $region88
          $region87: #{custom-call.22} parent=79 // pred_region
            loop: start=0, step=1, limit=1
            $region89: #{custom-call.22} parent=87 // loop_pre_header
              _
            $region90: #{custom-call.22} parent=87 // loop_header
              %s175 = sphi 0, %s179
              %p176 = scmp.ge.s32.totalorder %s175, 1
              %s180 = sphi %s166, %s166
              %s181 = sphi %s164, %s164
            $region91: #{custom-call.22} parent=87 // loop_header_branch
              %178 = sbr.rel (%p176) target = $region95
            $region92: #{custom-call.22} parent=87 // loop_body
              %v182 = vld [vmem:[%s180] sm:$0x3]
              %183 = vst [vmem:[%s181] sm:$0x3] %v182
            $region93: #{custom-call.22} parent=87 // loop_footer
              %s179 = sadd.s32 1, %s175
            $region94: #{custom-call.22} parent=87 // loop_footer_branch
              %174 = sbr.rel target = $region90
            $region95: #{custom-call.22} parent=87 // loop_exit
              _
          $region88: #{custom-call.22} parent=79 // pred_fallthru
            _
        $region80: #{custom-call.22} parent=15 // pred_fallthru
          _
        %197 = vnop
        %s198 = sand.u32 %s12, 1
        %s199 = sand.u32 %s12, 1
        %s200 = smul.addr %s199, 2
        %s201 = scalar_lea.vmem [#allocation7], %s200
        %s202 = smul.addr %s12, 2
        %s203 = scalar_lea.vmem %s3, %s202
        // Predicated region
        $region107: #{custom-call.22} parent=15 // pred_check
          _
        $region108: #{custom-call.22} parent=15 // pred_check_branch
          %205 = sbr.rel (0) target = $region110
        $region109: #{custom-call.22} parent=15 // pred_region
          // Predicated region
          $region111: #{custom-call.22} parent=109 // pred_check
            _
          $region112: #{custom-call.22} parent=109 // pred_check_branch
            %207 = sbr.rel target = $region114
          $region113: #{custom-call.22} parent=109 // pred_region
            // Predicated region
            $region126: #{custom-call.22} parent=113 // pred_check
              _
            $region127: #{custom-call.22} parent=113 // pred_check_branch
              %222 = sbr.rel (0) target = $region129
            $region128: #{custom-call.22} parent=113 // pred_region
              loop: start=0, step=1, limit=1
              $region130: #{custom-call.22} parent=128 // loop_pre_header
                _
              $region131: #{custom-call.22} parent=128 // loop_header
                %s225 = sphi 0, %s229
                %p226 = scmp.ge.s32.totalorder %s225, 1
                %s230 = sphi %s203, %s203
                %s231 = sphi %s201, %s201
              $region132: #{custom-call.22} parent=128 // loop_header_branch
                %228 = sbr.rel (%p226) target = $region136
              $region133: #{custom-call.22} parent=128 // loop_body
                %v232 = vld [vmem:[%s230] sm:$0x3]
                %233 = vst [vmem:[%s231] sm:$0x3] %v232
              $region134: #{custom-call.22} parent=128 // loop_footer
                %s229 = sadd.s32 1, %s225
              $region135: #{custom-call.22} parent=128 // loop_footer_branch
                %224 = sbr.rel target = $region131
              $region136: #{custom-call.22} parent=128 // loop_exit
                _
            $region129: #{custom-call.22} parent=113 // pred_fallthru
              _
          $region114: #{custom-call.22} parent=109 // pred_fallthru
            _
          // Predicated region
          $region115: #{custom-call.22} parent=109 // pred_check
            _
          $region116: #{custom-call.22} parent=109 // pred_check_branch
            %209 = sbr.rel (0) target = $region118
          $region117: #{custom-call.22} parent=109 // pred_region
            loop: start=0, step=1, limit=1
            $region119: #{custom-call.22} parent=117 // loop_pre_header
              _
            $region120: #{custom-call.22} parent=117 // loop_header
              %s212 = sphi 0, %s216
              %p213 = scmp.ge.s32.totalorder %s212, 1
              %s217 = sphi %s203, %s203
              %s218 = sphi %s201, %s201
            $region121: #{custom-call.22} parent=117 // loop_header_branch
              %215 = sbr.rel (%p213) target = $region125
            $region122: #{custom-call.22} parent=117 // loop_body
              %v219 = vld [vmem:[%s217] sm:$0x3]
              %220 = vst [vmem:[%s218] sm:$0x3] %v219
            $region123: #{custom-call.22} parent=117 // loop_footer
              %s216 = sadd.s32 1, %s212
            $region124: #{custom-call.22} parent=117 // loop_footer_branch
              %211 = sbr.rel target = $region120
            $region125: #{custom-call.22} parent=117 // loop_exit
              _
          $region118: #{custom-call.22} parent=109 // pred_fallthru
            _
        $region110: #{custom-call.22} parent=15 // pred_fallthru
          _
        %234 = vnop
      $region16: #{custom-call.22} parent=5 // pred_fallthru
        _
      %p235 = scmp.le.s32.totalorder 1, %s12
      %p236 = scmp.lt.s32.totalorder %s12, 3
      %p237 = pnand %p235, %p236
      %p238 = pneg %p237
      // Predicated region
      $region137: #{custom-call.22} parent=5 // pred_check
        _
      $region138: #{custom-call.22} parent=5 // pred_check_branch
        %240 = sbr.rel (%p237) target = $region140
      $region139: #{custom-call.22} parent=5 // pred_region
        #allocation20 [shape = 'f32[2,2]{1,0}', space=vmem, size = 0x1000, scoped, tag = 'a top-left matrix']
        #allocation21 [shape = 'f32[2,2]{1,0}', space=vmem, size = 0x1000, scoped, tag = 'a top-right matrix']
        #allocation22 [shape = 'f32[2,2]{1,0}', space=vmem, size = 0x1000, scoped, tag = 'a bottom-left matrix']
        #allocation23 [shape = 'f32[2,2]{1,0}', space=vmem, size = 0x1000, scoped, tag = 'a bottom-right matrix']
        %s241 = ssub.s32 %s12, 1
        %s242 = sand.u32 %s17, 1
        %s243 = sand.u32 %s17, 1
        %s244 = smul.addr %s243, 2
        %s245 = scalar_lea.vmem [#allocation1], %s244
        %s246 = sand.u32 %s17, 1
        %s247 = sand.u32 %s17, 1
        %s248 = smul.addr %s247, 2
        %s249 = scalar_lea.vmem [#allocation3], %s248
        %s250 = sand.u32 %s17, 1
        %s251 = sand.u32 %s17, 1
        %s252 = smul.addr %s251, 2
        %s253 = scalar_lea.vmem [#allocation5], %s252
        %s254 = sand.u32 %s17, 1
        %s255 = sand.u32 %s17, 1
        %s256 = smul.addr %s255, 2
        %s257 = scalar_lea.vmem [#allocation7], %s256
        %s258 = sand.u32 %s17, 1
        %s259 = sand.u32 %s17, 1
        %s260 = smul.addr %s259, 2
        %s261 = scalar_lea.vmem [#allocation1], %s260
        %s262 = sand.u32 %s17, 1
        %s263 = sand.u32 %s17, 1
        %s264 = smul.addr %s263, 2
        %s265 = scalar_lea.vmem [#allocation3], %s264
        %s266 = sand.u32 %s17, 1
        %s267 = sand.u32 %s17, 1
        %s268 = smul.addr %s267, 2
        %s269 = scalar_lea.vmem [#allocation5], %s268
        %s270 = sand.u32 %s17, 1
        %s271 = sand.u32 %s17, 1
        %s272 = smul.addr %s271, 2
        %s273 = scalar_lea.vmem [#allocation7], %s272
        %p274 = pneg %p40
        %p275 = pneg %p37
        %s276 = sand.u32 %s27, 1
        %s277 = sand.u32 %s27, 1
        %s278 = smul.addr %s277, 2
        %s279 = scalar_lea.vmem [#allocation9], %s278
        %p280 = pneg %p68
        %p281 = pneg %p65
        %s282 = sand.u32 %s55, 1
        %s283 = sand.u32 %s55, 1
        %s284 = smul.addr %s283, 2
        %s285 = scalar_lea.vmem [#allocation11], %s284
        %s286 = sand.u32 %s17, 1
        %s287 = sand.u32 %s17, 1
        %s288 = smul.addr %s287, 2
        %s289 = scalar_lea.vmem [#allocation13], %s288
        %s290 = sand.u32 %s17, 1
        %s291 = sand.u32 %s17, 1
        %s292 = smul.addr %s291, 2
        %s293 = scalar_lea.vmem [#allocation15], %s292
        %s294 = sand.u32 %s17, 1
        %s295 = sand.u32 %s17, 1
        %s296 = smul.addr %s295, 2
        %s297 = scalar_lea.vmem [#allocation17], %s296
        %s298 = sand.u32 %s17, 1
        %s299 = sand.u32 %s17, 1
        %s300 = smul.addr %s299, 2
        %s301 = scalar_lea.vmem [#allocation19], %s300
        %s303 = sshllo.u32 0, 2
        %v304 = vld [vmem:[%s261] sm:%s303]
        %305 = vst [vmem:[#allocation0] sm:%s303] %v304
        %s307 = sshllo.u32 0, 2
        %v308 = vld [vmem:[%s265] sm:%s307]
        %309 = vst [vmem:[#allocation2] sm:%s307] %v308
        %s311 = sshllo.u32 0, 2
        %v312 = vld [vmem:[%s269] sm:%s311]
        %313 = vst [vmem:[#allocation4] sm:%s311] %v312
        %s315 = sshllo.u32 0, 2
        %v316 = vld [vmem:[%s273] sm:%s315]
        %317 = vst [vmem:[#allocation6] sm:%s315] %v316
        %s318 = sshrl.u32 %s17, 3
        %s319 = sshrl.u32 %s17, 3
        %s320 = smov [#allocation20]
        %v321 = vld [vmem:[#allocation0] sm:$0xff]
        %322 = vst [vmem:[%s320] sm:$0xff] %v321
        %s323 = smov [#allocation21]
        %v324 = vld [vmem:[#allocation2] sm:$0xff]
        %325 = vst [vmem:[%s323] sm:$0xff] %v324
        %s326 = smov [#allocation22]
        %v327 = vld [vmem:[#allocation4] sm:$0xff]
        %328 = vst [vmem:[%s326] sm:$0xff] %v327
        %s329 = smov [#allocation23]
        %v330 = vld [vmem:[#allocation6] sm:$0xff]
        %331 = vst [vmem:[%s329] sm:$0xff] %v330
        %332 = vst [vmem:[#allocation12] sm:$0xff] 0.0
        %333 = vst [vmem:[#allocation14] sm:$0xff] 0.0
        %334 = vst [vmem:[#allocation16] sm:$0xff] 0.0
        %335 = vst [vmem:[#allocation18] sm:$0xff] 0.0
        %s336 = smov [#allocation12]
        %v337 = vlaneseq
        %v338 = vand.u32 %v337, 127
        %v339 = vmov %v338
        %v340 = vlaneseq
        %v341 = vshrl.u32 %v340, 7
        %v342 = vmov %v341
        %v343 = vld [vmem:[%s336] sm:$0x3]
        %vm346 = vcmp.eq.s32.totalorder %v342, %v339
        %v347 = vsel %vm346, 1.0, %v343
        %348 = vst [vmem:[%s336] sm:$0x3] %v347
        %s349 = smov [#allocation18]
        %v350 = vlaneseq
        %v351 = vand.u32 %v350, 127
        %v352 = vmov %v351
        %v353 = vlaneseq
        %v354 = vshrl.u32 %v353, 7
        %v355 = vmov %v354
        %v356 = vld [vmem:[%s349] sm:$0x3]
        %vm359 = vcmp.eq.s32.totalorder %v355, %v352
        %v360 = vsel %vm359, 1.0, %v356
        %361 = vst [vmem:[%s349] sm:$0x3] %v360
        // While loop
        $region141: #{custom-call.22} parent=139 // loop_pre_header
          _
        $region142: #{custom-call.22} parent=139 // loop_header
          %s363 = sphi 0, %s905
          %v364 = vlaneseq
          %v365 = vand.u32 %v364, 127
          %v366 = vmov %v365
          %v367 = vlaneseq
          %v368 = vshrl.u32 %v367, 7
          %v369 = vmov %v368
          %s370 = smov [#allocation20]
          %v371 = vlaneseq
          %v372 = vand.u32 %v371, 127
          %vm373 = vcmp.ge.s32.totalorder %v372, 0
          %vm374 = vcmp.lt.s32.totalorder %v372, 2
          %vm375 = vmand %vm373, %vm374
          %v376 = vld [vmem:[%s370] sm:$0x3]
          %v377 = vsel %vm375, %v376, 0.0
          %v378 = vmul.f32 %v377, %v377
          %vm381 = vcmp.eq.s32.totalorder %v369, %v366
          %v382 = vsel %vm381, 0.0, %v378
          %v383 = vlaneseq
          %v384 = vand.u32 %v383, 127
          %v385 = vmov %v384
          %v386 = vlaneseq
          %v387 = vshrl.u32 %v386, 7
          %v388 = vmov %v387
          %s389 = smov [#allocation21]
          %v390 = vlaneseq
          %v391 = vand.u32 %v390, 127
          %vm392 = vcmp.ge.s32.totalorder %v391, 0
          %vm393 = vcmp.lt.s32.totalorder %v391, 2
          %vm394 = vmand %vm392, %vm393
          %v395 = vld [vmem:[%s389] sm:$0x3]
          %v396 = vsel %vm394, %v395, 0.0
          %v397 = vmul.f32 %v396, %v396
          %v398 = vadd.f32 %v382, %v397
          %v399 = vadd.f32 %v378, %v397
          %v400 = vlaneseq
          %v401 = vand.u32 %v400, 127
          %v402 = vmov %v401
          %v403 = vlaneseq
          %v404 = vshrl.u32 %v403, 7
          %v405 = vmov %v404
          %s406 = smov [#allocation22]
          %v407 = vlaneseq
          %v408 = vand.u32 %v407, 127
          %vm409 = vcmp.ge.s32.totalorder %v408, 0
          %vm410 = vcmp.lt.s32.totalorder %v408, 2
          %vm411 = vmand %vm409, %vm410
          %v412 = vld [vmem:[%s406] sm:$0x3]
          %v413 = vsel %vm411, %v412, 0.0
          %v414 = vmul.f32 %v413, %v413
          %v415 = vadd.f32 %v398, %v414
          %v416 = vadd.f32 %v399, %v414
          %v417 = vlaneseq
          %v418 = vand.u32 %v417, 127
          %v419 = vmov %v418
          %v420 = vlaneseq
          %v421 = vshrl.u32 %v420, 7
          %v422 = vmov %v421
          %s423 = smov [#allocation23]
          %v424 = vlaneseq
          %v425 = vand.u32 %v424, 127
          %vm426 = vcmp.ge.s32.totalorder %v425, 0
          %vm427 = vcmp.lt.s32.totalorder %v425, 2
          %vm428 = vmand %vm426, %vm427
          %v429 = vld [vmem:[%s423] sm:$0x3]
          %v430 = vsel %vm428, %v429, 0.0
          %v431 = vmul.f32 %v430, %v430
          %vm434 = vcmp.eq.s32.totalorder %v422, %v419
          %v435 = vsel %vm434, 0.0, %v431
          %v436 = vadd.f32 %v415, %v435
          %v437 = vadd.f32 %v416, %v431
          %438 = vadd.xlane.f32.xlu0 %v437
          %v439 = vpop.xlane.xlu0 %438
          %v440 = vrot.slane %v439, 4
          %v441 = vadd.f32 %v439, %v440
          %v442 = vrot.slane %v441, 2
          %v443 = vadd.f32 %v441, %v442
          %v444 = vrot.slane %v443, 1
          %v445 = vadd.f32 %v443, %v444
          %446 = vadd.xlane.f32.xlu0 %v436
          %v447 = vpop.xlane.xlu0 %446
          %v448 = vrot.slane %v447, 4
          %v449 = vadd.f32 %v447, %v448
          %v450 = vrot.slane %v449, 2
          %v451 = vadd.f32 %v449, %v450
          %v452 = vrot.slane %v451, 1
          %v453 = vadd.f32 %v451, %v452
          %s454 = vtos %v453
          %s455 = vtos %v445
          %s456 = smul.f32 1e-10, %s455
          %p457 = scmp.le.f32.partialorder %s454, %s456
          %p458 = scmp.ge.s32.totalorder %s363, 15
          %p459 = por %p457, %p458
        $region143: #{custom-call.22} parent=139 // loop_header_branch
          %907 = sbr.rel (%p459) target = $region147
        $region144: #{custom-call.22} parent=139 // loop_body
          loop: start=0, step=1, limit=3
          $region148: #{custom-call.22} parent=144 // loop_pre_header
            _
          $region149: #{custom-call.22} parent=144 // loop_header
            %s461 = sphi 0, %s465
            %p462 = scmp.ge.s32.totalorder %s461, 3
          $region150: #{custom-call.22} parent=144 // loop_header_branch
            %464 = sbr.rel (%p462) target = $region154
          $region151: #{custom-call.22} parent=144 // loop_body
            #allocation24 [shape = 'f32[1024]{0}', space=vmem, size = 0x1000, scoped, tag = 'a_tl_diag vmem']
            #allocation25 [shape = 'f32[1024]{0}', space=vmem, size = 0x1000, scoped, tag = 'a_tr_diag vmem']
            #allocation26 [shape = 'f32[1024]{0}', space=vmem, size = 0x1000, scoped, tag = 'a_br_diag vmem']
            #allocation27 [shape = 'f32[1024]{0}', space=vmem, size = 0x1000, scoped, tag = 'rt1 vmem']
            #allocation28 [shape = 'f32[1024]{0}', space=vmem, size = 0x1000, scoped, tag = 'rt2 vmem']
            #allocation29 [shape = 'f32[1024]{0}', space=vmem, size = 0x1000, scoped, tag = 'c vmem']
            #allocation30 [shape = 'f32[1024]{0}', space=vmem, size = 0x1000, scoped, tag = 's vmem']
            #allocation31 [shape = 'f32[4096]{0}', space=vmem, size = 0x4000, scoped, tag = 'c broadcast']
            #allocation32 [shape = 'f32[4096]{0}', space=vmem, size = 0x4000, scoped, tag = 's broadcast']
            %s466 = smov [#allocation20]
            %s467 = smov [#allocation24]
            %v468 = vlaneseq
            %v469 = vand.u32 %v468, 127
            %v470 = vmov %v469
            %v471 = vlaneseq
            %v472 = vshrl.u32 %v471, 7
            %v473 = vmov %v472
            %v474 = vld [vmem:[%s466] sm:$0x3]
            %vm477 = vcmp.eq.s32.totalorder %v473, %v470
            %v478 = vsel %vm477, %v474, 0.0
            %v479 = vrot.slane %v478, 4
            %v480 = vadd.f32 %v478, %v479
            %v481 = vrot.slane %v480, 2
            %v482 = vadd.f32 %v480, %v481
            %v483 = vrot.slane %v482, 1
            %v484 = vadd.f32 %v482, %v483
            %485 = vst [vmem:[%s467] sm:$0x1] %v484
            %s486 = smov [#allocation21]
            %s487 = smov [#allocation25]
            %v488 = vlaneseq
            %v489 = vand.u32 %v488, 127
            %v490 = vmov %v489
            %v491 = vlaneseq
            %v492 = vshrl.u32 %v491, 7
            %v493 = vmov %v492
            %v494 = vld [vmem:[%s486] sm:$0x3]
            %vm497 = vcmp.eq.s32.totalorder %v493, %v490
            %v498 = vsel %vm497, %v494, 0.0
            %v499 = vrot.slane %v498, 4
            %v500 = vadd.f32 %v498, %v499
            %v501 = vrot.slane %v500, 2
            %v502 = vadd.f32 %v500, %v501
            %v503 = vrot.slane %v502, 1
            %v504 = vadd.f32 %v502, %v503
            %505 = vst [vmem:[%s487] sm:$0x1] %v504
            %s506 = smov [#allocation23]
            %s507 = smov [#allocation26]
            %v508 = vlaneseq
            %v509 = vand.u32 %v508, 127
            %v510 = vmov %v509
            %v511 = vlaneseq
            %v512 = vshrl.u32 %v511, 7
            %v513 = vmov %v512
            %v514 = vld [vmem:[%s506] sm:$0x3]
            %vm517 = vcmp.eq.s32.totalorder %v513, %v510
            %v518 = vsel %vm517, %v514, 0.0
            %v519 = vrot.slane %v518, 4
            %v520 = vadd.f32 %v518, %v519
            %v521 = vrot.slane %v520, 2
            %v522 = vadd.f32 %v520, %v521
            %v523 = vrot.slane %v522, 1
            %v524 = vadd.f32 %v522, %v523
            %525 = vst [vmem:[%s507] sm:$0x1] %v524
            %s526 = smov [#allocation29]
            %s527 = smov [#allocation30]
            %s528 = smov [#allocation24]
            %v529 = vld [vmem:[%s528] sm:$0xff]
            %s530 = smov [#allocation25]
            %v531 = vld [vmem:[%s530] sm:$0xff]
            %s532 = smov [#allocation26]
            %v533 = vld [vmem:[%s532] sm:$0xff]
            %v534 = vsub.f32 %v533, %v529
            %v535 = vmul.f32 2.0, %v531
            %v536 = vrcp.pop %v535
            %v537 = vmul.f32 %v534, %v536
            %vm538 = vcmp.ge.f32.partialorder %v537, 0.0
            %v539 = vmul.f32 %v537, %v537
            %v540 = vadd.f32 1.0, %v539
            %v541 = vrsqrt.pop %v540
            %v542 = vmul.f32 %v540, %v541
            %vm543 = vcmp.eq.f32.partialorder %v540, inf
            %v544 = vsel %vm543, %v540, %v542
            %vm545 = vcmp.eq.f32.partialorder %v540, 0.0
            %v546 = vand.u32 %v540, 2147483648
            %v547 = vsel %vm545, %v546, %v544
            %v548 = vxor.u32 %v547, 2147483648
            %v549 = vsel %vm538, %v547, %v548
            %v550 = vadd.f32 %v537, %v549
            %v551 = vrcp.pop %v550
            %v552 = vand.u32 2147483647, %v529
            %v553 = vand.u32 2147483647, %v531
            %v554 = vand.u32 2147483647, %v533
            %v555 = vmin.f32 %v552, %v554
            %v556 = vmul.f32 1.1920929e-08, %v555
            %vm557 = vcmp.le.f32.partialorder %v553, %v556
            %v558 = vsel %vm557, 0.0, %v551
            %v559 = vmul.f32 %v558, %v558
            %v560 = vadd.f32 1.0, %v559
            %v561 = vrsqrt.pop %v560
            %v562 = vmul.f32 %v558, %v561
            %v563 = vmul.f32 %v558, %v531
            %v564 = vsub.f32 %v529, %v563
            %v565 = vmul.f32 %v558, %v531
            %v566 = vadd.f32 %v533, %v565
            %s567 = smov [#allocation27]
            %568 = vst [vmem:[%s567] sm:$0xff] %v564
            %s569 = smov [#allocation28]
            %570 = vst [vmem:[%s569] sm:$0xff] %v566
            %s571 = smov %s526
            %572 = vst [vmem:[%s571] sm:$0xff] %v561
            %s573 = smov %s527
            %574 = vst [vmem:[%s573] sm:$0xff] %v562
            %s575 = smov [#allocation29]
            %v576 = vld [vmem:[%s575] ss:$0 sm:$0xff]
            %v577 = vlaneseq
            %v578 = vand.u32 %v577, 127
            %v579 = vmov %v578
            %v580 = vlaneseq
            %v581 = vshrl.u32 %v580, 7
            %v582 = vmov %v581
            %vm584 = vcmp.eq.s32.totalorder %v582, %v579
            %v585 = vsel %vm584, %v576, 0.0
            %586 = vadd.xlane.f32.xlu0 %v585
            %v587 = vpop.xlane.xlu0 %586
            %s588 = smov [#allocation31]
            %589 = vst [vmem:[%s588] sm:$0xff] %v587
            %s590 = smov [#allocation30]
            %v591 = vld [vmem:[%s590] ss:$0 sm:$0xff]
            %v592 = vlaneseq
            %v593 = vand.u32 %v592, 127
            %v594 = vmov %v593
            %v595 = vlaneseq
            %v596 = vshrl.u32 %v595, 7
            %v597 = vmov %v596
            %vm599 = vcmp.eq.s32.totalorder %v597, %v594
            %v600 = vsel %vm599, %v591, 0.0
            %601 = vadd.xlane.f32.xlu0 %v600
            %v602 = vpop.xlane.xlu0 %601
            %s603 = smov [#allocation32]
            %604 = vst [vmem:[%s603] sm:$0xff] %v602
            %s605 = smov [#allocation31]
            %v606 = vld [vmem:[%s605] sm:$0xff]
            %s607 = smov [#allocation32]
            %v608 = vld [vmem:[%s607] sm:$0xff]
            %s609 = smov [#allocation20]
            %s610 = smov [#allocation21]
            %s611 = smov [#allocation22]
            %s612 = smov [#allocation23]
            %v613 = vld [vmem:[%s609] sm:$0x3]
            %v614 = vld [vmem:[%s610] sm:$0x3]
            %v615 = vld [vmem:[%s611] sm:$0x3]
            %v616 = vld [vmem:[%s612] sm:$0x3]
            %v617 = vmul.f32 %v606, %v613
            %v618 = vmul.f32 %v608, %v615
            %v619 = vsub.f32 %v617, %v618
            %v620 = vmul.f32 %v606, %v614
            %v621 = vmul.f32 %v608, %v616
            %v622 = vsub.f32 %v620, %v621
            %v623 = vmul.f32 %v608, %v613
            %v624 = vmul.f32 %v606, %v615
            %v625 = vadd.f32 %v623, %v624
            %v626 = vmul.f32 %v608, %v614
            %v627 = vmul.f32 %v606, %v616
            %v628 = vadd.f32 %v626, %v627
            %629 = vst [vmem:[%s609] sm:$0x3] %v619
            %630 = vst [vmem:[%s610] sm:$0x3] %v622
            %631 = vst [vmem:[%s611] sm:$0x3] %v625
            %632 = vst [vmem:[%s612] sm:$0x3] %v628
            %s633 = smov [#allocation29]
            %v634 = vld [vmem:[%s633] ss:$0 sm:$0xff]
            %s635 = smov [#allocation30]
            %v636 = vld [vmem:[%s635] ss:$0 sm:$0xff]
            %s637 = smov [#allocation20]
            %s638 = smov [#allocation21]
            %s639 = smov [#allocation22]
            %s640 = smov [#allocation23]
            %v641 = vld [vmem:[%s637] sm:$0x3]
            %v642 = vld [vmem:[%s638] sm:$0x3]
            %v643 = vld [vmem:[%s639] sm:$0x3]
            %v644 = vld [vmem:[%s640] sm:$0x3]
            %v645 = vmul.f32 %v634, %v641
            %v646 = vmul.f32 %v636, %v642
            %v647 = vsub.f32 %v645, %v646
            %v648 = vmul.f32 %v636, %v641
            %v649 = vmul.f32 %v634, %v642
            %v650 = vadd.f32 %v648, %v649
            %v651 = vmul.f32 %v634, %v643
            %v652 = vmul.f32 %v636, %v644
            %v653 = vsub.f32 %v651, %v652
            %v654 = vmul.f32 %v636, %v643
            %v655 = vmul.f32 %v634, %v644
            %v656 = vadd.f32 %v654, %v655
            %657 = vst [vmem:[%s637] sm:$0x3] %v647
            %658 = vst [vmem:[%s638] sm:$0x3] %v650
            %659 = vst [vmem:[%s639] sm:$0x3] %v653
            %660 = vst [vmem:[%s640] sm:$0x3] %v656
            %s661 = smov [#allocation20]
            %s662 = smov [#allocation27]
            %v663 = vlaneseq
            %v664 = vand.u32 %v663, 127
            %v665 = vmov %v664
            %v666 = vlaneseq
            %v667 = vshrl.u32 %v666, 7
            %v668 = vmov %v667
            %v669 = vld [vmem:[%s662] ss:$0 sm:$0xff]
            %v670 = vld [vmem:[%s661] sm:$0x3]
            %vm673 = vcmp.eq.s32.totalorder %v668, %v665
            %v674 = vsel %vm673, %v669, %v670
            %675 = vst [vmem:[%s661] sm:$0x3] %v674
            %s676 = smov [#allocation21]
            %v677 = vlaneseq
            %v678 = vand.u32 %v677, 127
            %v679 = vmov %v678
            %v680 = vlaneseq
            %v681 = vshrl.u32 %v680, 7
            %v682 = vmov %v681
            %v683 = vld [vmem:[%s676] sm:$0x3]
            %vm686 = vcmp.eq.s32.totalorder %v682, %v679
            %v687 = vsel %vm686, 0.0, %v683
            %688 = vst [vmem:[%s676] sm:$0x3] %v687
            %s689 = smov [#allocation22]
            %v690 = vlaneseq
            %v691 = vand.u32 %v690, 127
            %v692 = vmov %v691
            %v693 = vlaneseq
            %v694 = vshrl.u32 %v693, 7
            %v695 = vmov %v694
            %v696 = vld [vmem:[%s689] sm:$0x3]
            %vm699 = vcmp.eq.s32.totalorder %v695, %v692
            %v700 = vsel %vm699, 0.0, %v696
            %701 = vst [vmem:[%s689] sm:$0x3] %v700
            %s702 = smov [#allocation23]
            %s703 = smov [#allocation28]
            %v704 = vlaneseq
            %v705 = vand.u32 %v704, 127
            %v706 = vmov %v705
            %v707 = vlaneseq
            %v708 = vshrl.u32 %v707, 7
            %v709 = vmov %v708
            %v710 = vld [vmem:[%s703] ss:$0 sm:$0xff]
            %v711 = vld [vmem:[%s702] sm:$0x3]
            %vm714 = vcmp.eq.s32.totalorder %v709, %v706
            %v715 = vsel %vm714, %v710, %v711
            %716 = vst [vmem:[%s702] sm:$0x3] %v715
            %s717 = smov [#allocation20]
            %s718 = smov [#allocation21]
            %v719 = vld [vmem:[%s718] sm:$0x3]
            %720 = vrot.lane.b32.xlu0 %v719, 1
            %v721 = vpop.permute.xlu0 %720
            %v722 = vld [vmem:[%s717] sm:$0x3]
            %v723 = vld [vmem:[%s717] sm:$0x3]
            %724 = vrot.lane.b32.xlu0 %v723, 1
            %v725 = vpop.permute.xlu0 %724
            %v726 = vlaneseq
            %v727 = vand.u32 %v726, 127
            %vm728 = vcmp.eq.s32.totalorder %v727, 0
            %v729 = vsel %vm728, %v723, %v725
            %v730 = vlaneseq
            %v731 = vand.u32 %v730, 127
            %vm732 = vcmp.eq.s32.totalorder %v731, 1
            %v733 = vsel %vm732, %v721, %v729
            %v734 = vlaneseq
            %v735 = vand.u32 %v734, 127
            %vm736 = vcmp.ge.s32.totalorder %v735, 0
            %vm737 = vcmp.lt.s32.totalorder %v735, 2
            %vm738 = vmand %vm736, %vm737
            %v739 = vsel %vm738, %v733, 0.0
            %v740 = vld [vmem:[%s718] sm:$0x3]
            %741 = vrot.lane.b32.xlu0 %v740, 127
            %v742 = vpop.permute.xlu0 %741
            %v743 = vlaneseq
            %v744 = vand.u32 %v743, 127
            %vm745 = vcmp.eq.s32.totalorder %v744, 1
            %v746 = vsel %vm745, %v722, %v742
            %747 = vst [vmem:[%s717] sm:$0x3] %v739
            %748 = vst [vmem:[%s718] sm:$0x3] %v746
            %s749 = smov [#allocation22]
            %s750 = smov [#allocation23]
            %v751 = vld [vmem:[%s750] sm:$0x3]
            %752 = vrot.lane.b32.xlu0 %v751, 1
            %v753 = vpop.permute.xlu0 %752
            %v754 = vld [vmem:[%s749] sm:$0x3]
            %v755 = vld [vmem:[%s749] sm:$0x3]
            %756 = vrot.lane.b32.xlu0 %v755, 1
            %v757 = vpop.permute.xlu0 %756
            %v758 = vlaneseq
            %v759 = vand.u32 %v758, 127
            %vm760 = vcmp.eq.s32.totalorder %v759, 0
            %v761 = vsel %vm760, %v755, %v757
            %v762 = vlaneseq
            %v763 = vand.u32 %v762, 127
            %vm764 = vcmp.eq.s32.totalorder %v763, 1
            %v765 = vsel %vm764, %v753, %v761
            %v766 = vlaneseq
            %v767 = vand.u32 %v766, 127
            %vm768 = vcmp.ge.s32.totalorder %v767, 0
            %vm769 = vcmp.lt.s32.totalorder %v767, 2
            %vm770 = vmand %vm768, %vm769
            %v771 = vsel %vm770, %v765, 0.0
            %v772 = vld [vmem:[%s750] sm:$0x3]
            %773 = vrot.lane.b32.xlu0 %v772, 127
            %v774 = vpop.permute.xlu0 %773
            %v775 = vlaneseq
            %v776 = vand.u32 %v775, 127
            %vm777 = vcmp.eq.s32.totalorder %v776, 1
            %v778 = vsel %vm777, %v754, %v774
            %779 = vst [vmem:[%s749] sm:$0x3] %v771
            %780 = vst [vmem:[%s750] sm:$0x3] %v778
            %s781 = smov [#allocation20]
            %s782 = smov [#allocation22]
            %v783 = vld [vmem:[%s781] ss:$0 sm:$0xff]
            %s785 = scalar_lea.vmem %s781, 4294967295
            %v786 = vld [vmem:[%s785] sm:$0x2]
            %v787 = vlaneseq
            %v788 = vshrl.u32 %v787, 7
            %vm789 = vcmp.eq.s32.totalorder %v788, 0
            %v790 = vsel %vm789, %v783, %v786
            %s791 = scalar_lea.vmem %s781, 1
            %v792 = vld [vmem:[%s791] ss:$0 sm:$0xff]
            %793 = vst [vmem:[%s781] sm:$0x3] %v790
            %v794 = vld [vmem:[%s782] ss:$0 sm:$0xff]
            %s795 = scalar_lea.vmem %s781, 1
            %796 = vst [vmem:[%s795] sm:$0x1] %v794
            %s797 = scalar_lea.vmem %s782, 1
            %v798 = vld [vmem:[%s797] sm:$0x1]
            %v799 = vlaneseq
            %v800 = vshrl.u32 %v799, 7
            %vm801 = vcmp.eq.s32.totalorder %v800, 1
            %v802 = vsel %vm801, %v792, %v798
            %v803 = vld [vmem:[%s782] ss:$0 sm:$0xff]
            %804 = vst [vmem:[%s782] sm:$0x3] %v802
            %s805 = smov [#allocation21]
            %s806 = smov [#allocation23]
            %v807 = vld [vmem:[%s805] ss:$0 sm:$0xff]
            %s809 = scalar_lea.vmem %s805, 4294967295
            %v810 = vld [vmem:[%s809] sm:$0x2]
            %v811 = vlaneseq
            %v812 = vshrl.u32 %v811, 7
            %vm813 = vcmp.eq.s32.totalorder %v812, 0
            %v814 = vsel %vm813, %v807, %v810
            %s815 = scalar_lea.vmem %s805, 1
            %v816 = vld [vmem:[%s815] ss:$0 sm:$0xff]
            %817 = vst [vmem:[%s805] sm:$0x3] %v814
            %v818 = vld [vmem:[%s806] ss:$0 sm:$0xff]
            %s819 = scalar_lea.vmem %s805, 1
            %820 = vst [vmem:[%s819] sm:$0x1] %v818
            %s821 = scalar_lea.vmem %s806, 1
            %v822 = vld [vmem:[%s821] sm:$0x1]
            %v823 = vlaneseq
            %v824 = vshrl.u32 %v823, 7
            %vm825 = vcmp.eq.s32.totalorder %v824, 1
            %v826 = vsel %vm825, %v816, %v822
            %v827 = vld [vmem:[%s806] ss:$0 sm:$0xff]
            %828 = vst [vmem:[%s806] sm:$0x3] %v826
            %s829 = smov [#allocation31]
            %v830 = vld [vmem:[%s829] sm:$0xff]
            %s831 = smov [#allocation32]
            %v832 = vld [vmem:[%s831] sm:$0xff]
            %s833 = smov [#allocation12]
            %s834 = smov [#allocation14]
            %s835 = smov [#allocation16]
            %s836 = smov [#allocation18]
            %v837 = vld [vmem:[%s833] sm:$0x3]
            %v838 = vld [vmem:[%s834] sm:$0x3]
            %v839 = vld [vmem:[%s835] sm:$0x3]
            %v840 = vld [vmem:[%s836] sm:$0x3]
            %v841 = vmul.f32 %v830, %v837
            %v842 = vmul.f32 %v832, %v839
            %v843 = vsub.f32 %v841, %v842
            %v844 = vmul.f32 %v830, %v838
            %v845 = vmul.f32 %v832, %v840
            %v846 = vsub.f32 %v844, %v845
            %v847 = vmul.f32 %v832, %v837
            %v848 = vmul.f32 %v830, %v839
            %v849 = vadd.f32 %v847, %v848
            %v850 = vmul.f32 %v832, %v838
            %v851 = vmul.f32 %v830, %v840
            %v852 = vadd.f32 %v850, %v851
            %853 = vst [vmem:[%s833] sm:$0x3] %v843
            %854 = vst [vmem:[%s834] sm:$0x3] %v846
            %855 = vst [vmem:[%s835] sm:$0x3] %v849
            %856 = vst [vmem:[%s836] sm:$0x3] %v852
            %s857 = smov [#allocation12]
            %s858 = smov [#allocation16]
            %v859 = vld [vmem:[%s857] ss:$0 sm:$0xff]
            %s861 = scalar_lea.vmem %s857, 4294967295
            %v862 = vld [vmem:[%s861] sm:$0x2]
            %v863 = vlaneseq
            %v864 = vshrl.u32 %v863, 7
            %vm865 = vcmp.eq.s32.totalorder %v864, 0
            %v866 = vsel %vm865, %v859, %v862
            %s867 = scalar_lea.vmem %s857, 1
            %v868 = vld [vmem:[%s867] ss:$0 sm:$0xff]
            %869 = vst [vmem:[%s857] sm:$0x3] %v866
            %v870 = vld [vmem:[%s858] ss:$0 sm:$0xff]
            %s871 = scalar_lea.vmem %s857, 1
            %872 = vst [vmem:[%s871] sm:$0x1] %v870
            %s873 = scalar_lea.vmem %s858, 1
            %v874 = vld [vmem:[%s873] sm:$0x1]
            %v875 = vlaneseq
            %v876 = vshrl.u32 %v875, 7
            %vm877 = vcmp.eq.s32.totalorder %v876, 1
            %v878 = vsel %vm877, %v868, %v874
            %v879 = vld [vmem:[%s858] ss:$0 sm:$0xff]
            %880 = vst [vmem:[%s858] sm:$0x3] %v878
            %s881 = smov [#allocation14]
            %s882 = smov [#allocation18]
            %v883 = vld [vmem:[%s881] ss:$0 sm:$0xff]
            %s885 = scalar_lea.vmem %s881, 4294967295
            %v886 = vld [vmem:[%s885] sm:$0x2]
            %v887 = vlaneseq
            %v888 = vshrl.u32 %v887, 7
            %vm889 = vcmp.eq.s32.totalorder %v888, 0
            %v890 = vsel %vm889, %v883, %v886
            %s891 = scalar_lea.vmem %s881, 1
            %v892 = vld [vmem:[%s891] ss:$0 sm:$0xff]
            %893 = vst [vmem:[%s881] sm:$0x3] %v890
            %v894 = vld [vmem:[%s882] ss:$0 sm:$0xff]
            %s895 = scalar_lea.vmem %s881, 1
            %896 = vst [vmem:[%s895] sm:$0x1] %v894
            %s897 = scalar_lea.vmem %s882, 1
            %v898 = vld [vmem:[%s897] sm:$0x1]
            %v899 = vlaneseq
            %v900 = vshrl.u32 %v899, 7
            %vm901 = vcmp.eq.s32.totalorder %v900, 1
            %v902 = vsel %vm901, %v892, %v898
            %v903 = vld [vmem:[%s882] ss:$0 sm:$0xff]
            %904 = vst [vmem:[%s882] sm:$0x3] %v902
          $region152: #{custom-call.22} parent=144 // loop_footer
            %s465 = sadd.s32 1, %s461
          $region153: #{custom-call.22} parent=144 // loop_footer_branch
            %460 = sbr.rel target = $region149
          $region154: #{custom-call.22} parent=144 // loop_exit
            _
          %s905 = sadd.s32 %s363, 1
        $region145: #{custom-call.22} parent=139 // loop_footer
          _
        $region146: #{custom-call.22} parent=139 // loop_footer_branch
          %362 = sbr.rel target = $region142
        $region147: #{custom-call.22} parent=139 // loop_exit
          _
        %s908 = sand.u32 %s17, 7
        %s909 = scalar_lea.vmem [#allocation8], %s908
        %s910 = sand.u32 %s17, 7
        %s911 = scalar_lea.vmem [#allocation10], %s910
        %s912 = smov [#allocation20]
        %s913 = smov %s909
        %v914 = vlaneseq
        %v915 = vand.u32 %v914, 127
        %v916 = vmov %v915
        %v917 = vlaneseq
        %v918 = vshrl.u32 %v917, 7
        %v919 = vmov %v918
        %v920 = vld [vmem:[%s912] sm:$0x3]
        %vm923 = vcmp.eq.s32.totalorder %v919, %v916
        %v924 = vsel %vm923, %v920, 0.0
        %v925 = vrot.slane %v924, 4
        %v926 = vadd.f32 %v924, %v925
        %v927 = vrot.slane %v926, 2
        %v928 = vadd.f32 %v926, %v927
        %v929 = vrot.slane %v928, 1
        %v930 = vadd.f32 %v928, %v929
        %931 = vst [vmem:[%s913] sm:$0x1] %v930
        %s932 = smov [#allocation23]
        %s933 = smov %s911
        %v934 = vlaneseq
        %v935 = vand.u32 %v934, 127
        %v936 = vmov %v935
        %v937 = vlaneseq
        %v938 = vshrl.u32 %v937, 7
        %v939 = vmov %v938
        %v940 = vld [vmem:[%s932] sm:$0x3]
        %vm943 = vcmp.eq.s32.totalorder %v939, %v936
        %v944 = vsel %vm943, %v940, 0.0
        %v945 = vrot.slane %v944, 4
        %v946 = vadd.f32 %v944, %v945
        %v947 = vrot.slane %v946, 2
        %v948 = vadd.f32 %v946, %v947
        %v949 = vrot.slane %v948, 1
        %v950 = vadd.f32 %v948, %v949
        %951 = vst [vmem:[%s933] sm:$0x1] %v950
        %s953 = sshllo.u32 0, 2
        %v955 = vld [vmem:[#allocation8] sm:%s953]
        %s956 = sshllo.u32 0, 2
        %957 = vst [vmem:[%s279] sm:%s956] %v955
        %s959 = sshllo.u32 0, 2
        %v961 = vld [vmem:[#allocation10] sm:%s959]
        %s962 = sshllo.u32 0, 2
        %963 = vst [vmem:[%s285] sm:%s962] %v961
        %s965 = sshllo.u32 0, 2
        %v967 = vld [vmem:[#allocation12] sm:%s965]
        %s968 = sshllo.u32 0, 2
        %969 = vst [vmem:[%s289] sm:%s968] %v967
        %s971 = sshllo.u32 0, 2
        %v973 = vld [vmem:[#allocation14] sm:%s971]
        %s974 = sshllo.u32 0, 2
        %975 = vst [vmem:[%s293] sm:%s974] %v973
        %s977 = sshllo.u32 0, 2
        %v979 = vld [vmem:[#allocation16] sm:%s977]
        %s980 = sshllo.u32 0, 2
        %981 = vst [vmem:[%s297] sm:%s980] %v979
        %s983 = sshllo.u32 0, 2
        %v985 = vld [vmem:[#allocation18] sm:%s983]
        %s986 = sshllo.u32 0, 2
        %987 = vst [vmem:[%s301] sm:%s986] %v985
        %s988 = sand.u32 %s27, 1
        %s989 = sand.u32 %s27, 1
        %s990 = smul.addr %s989, 2
        %s991 = scalar_lea.vmem [#allocation9], %s990
        %s992 = sand.u32 %s55, 1
        %s993 = sand.u32 %s55, 1
        %s994 = smul.addr %s993, 2
        %s995 = scalar_lea.vmem [#allocation11], %s994
        %s996 = sand.u32 %s17, 1
        %s997 = sand.u32 %s17, 1
        %s998 = smul.addr %s997, 2
        %s999 = scalar_lea.vmem [#allocation13], %s998
        %s1000 = sand.u32 %s17, 1
        %s1001 = sand.u32 %s17, 1
        %s1002 = smul.addr %s1001, 2
        %s1003 = scalar_lea.vmem [#allocation15], %s1002
        %s1004 = sand.u32 %s17, 1
        %s1005 = sand.u32 %s17, 1
        %s1006 = smul.addr %s1005, 2
        %s1007 = scalar_lea.vmem [#allocation17], %s1006
        %s1008 = sand.u32 %s17, 1
        %s1009 = sand.u32 %s17, 1
        %s1010 = smul.addr %s1009, 2
        %s1011 = scalar_lea.vmem [#allocation19], %s1010
        // Predicated region
        $region155: #{custom-call.22} parent=139 // pred_check
          %p1012 = pneg %p37
        $region156: #{custom-call.22} parent=139 // pred_check_branch
          %1014 = sbr.rel (%p1012) target = $region158
        $region157: #{custom-call.22} parent=139 // pred_region
          %s1015 = sshrl.u32 %s17, 3
          %s1016 = smul.addr %s1015, 2
          %s1017 = scalar_lea.vmem %s4, %s1016
          // Predicated region
          $region159: #{custom-call.22} parent=157 // pred_check
            _
          $region160: #{custom-call.22} parent=157 // pred_check_branch
            %1019 = sbr.rel (0) target = $region162
          $region161: #{custom-call.22} parent=157 // pred_region
            // Predicated region
            $region163: #{custom-call.22} parent=161 // pred_check
              _
            $region164: #{custom-call.22} parent=161 // pred_check_branch
              %1021 = sbr.rel target = $region166
            $region165: #{custom-call.22} parent=161 // pred_region
              // Predicated region
              $region178: #{custom-call.22} parent=165 // pred_check
                _
              $region179: #{custom-call.22} parent=165 // pred_check_branch
                %1036 = sbr.rel (0) target = $region181
              $region180: #{custom-call.22} parent=165 // pred_region
                loop: start=0, step=1, limit=1
                $region182: #{custom-call.22} parent=180 // loop_pre_header
                  _
                $region183: #{custom-call.22} parent=180 // loop_header
                  %s1039 = sphi 0, %s1043
                  %p1040 = scmp.ge.s32.totalorder %s1039, 1
                  %s1044 = sphi %s991, %s991
                  %s1045 = sphi %s1017, %s1017
                $region184: #{custom-call.22} parent=180 // loop_header_branch
                  %1042 = sbr.rel (%p1040) target = $region188
                $region185: #{custom-call.22} parent=180 // loop_body
                  %v1046 = vld [vmem:[%s1044] sm:$0x3]
                  %1047 = vst [vmem:[%s1045] sm:$0x3] %v1046
                $region186: #{custom-call.22} parent=180 // loop_footer
                  %s1043 = sadd.s32 1, %s1039
                $region187: #{custom-call.22} parent=180 // loop_footer_branch
                  %1038 = sbr.rel target = $region183
                $region188: #{custom-call.22} parent=180 // loop_exit
                  _
              $region181: #{custom-call.22} parent=165 // pred_fallthru
                _
            $region166: #{custom-call.22} parent=161 // pred_fallthru
              _
            // Predicated region
            $region167: #{custom-call.22} parent=161 // pred_check
              _
            $region168: #{custom-call.22} parent=161 // pred_check_branch
              %1023 = sbr.rel (0) target = $region170
            $region169: #{custom-call.22} parent=161 // pred_region
              loop: start=0, step=1, limit=1
              $region171: #{custom-call.22} parent=169 // loop_pre_header
                _
              $region172: #{custom-call.22} parent=169 // loop_header
                %s1026 = sphi 0, %s1030
                %p1027 = scmp.ge.s32.totalorder %s1026, 1
                %s1031 = sphi %s991, %s991
                %s1032 = sphi %s1017, %s1017
              $region173: #{custom-call.22} parent=169 // loop_header_branch
                %1029 = sbr.rel (%p1027) target = $region177
              $region174: #{custom-call.22} parent=169 // loop_body
                %v1033 = vld [vmem:[%s1031] sm:$0x3]
                %1034 = vst [vmem:[%s1032] sm:$0x3] %v1033
              $region175: #{custom-call.22} parent=169 // loop_footer
                %s1030 = sadd.s32 1, %s1026
              $region176: #{custom-call.22} parent=169 // loop_footer_branch
                %1025 = sbr.rel target = $region172
              $region177: #{custom-call.22} parent=169 // loop_exit
                _
            $region170: #{custom-call.22} parent=161 // pred_fallthru
              _
          $region162: #{custom-call.22} parent=157 // pred_fallthru
            _
          %1048 = vnop
        $region158: #{custom-call.22} parent=139 // pred_fallthru
          _
        // Predicated region
        $region189: #{custom-call.22} parent=139 // pred_check
          %p1049 = pneg %p65
        $region190: #{custom-call.22} parent=139 // pred_check_branch
          %1051 = sbr.rel (%p1049) target = $region192
        $region191: #{custom-call.22} parent=139 // pred_region
          %s1052 = sshrl.u32 %s17, 3
          %s1053 = smul.addr %s1052, 2
          %s1054 = scalar_lea.vmem %s5, %s1053
          // Predicated region
          $region193: #{custom-call.22} parent=191 // pred_check
            _
          $region194: #{custom-call.22} parent=191 // pred_check_branch
            %1056 = sbr.rel (0) target = $region196
          $region195: #{custom-call.22} parent=191 // pred_region
            // Predicated region
            $region197: #{custom-call.22} parent=195 // pred_check
              _
            $region198: #{custom-call.22} parent=195 // pred_check_branch
              %1058 = sbr.rel target = $region200
            $region199: #{custom-call.22} parent=195 // pred_region
              // Predicated region
              $region212: #{custom-call.22} parent=199 // pred_check
                _
              $region213: #{custom-call.22} parent=199 // pred_check_branch
                %1073 = sbr.rel (0) target = $region215
              $region214: #{custom-call.22} parent=199 // pred_region
                loop: start=0, step=1, limit=1
                $region216: #{custom-call.22} parent=214 // loop_pre_header
                  _
                $region217: #{custom-call.22} parent=214 // loop_header
                  %s1076 = sphi 0, %s1080
                  %p1077 = scmp.ge.s32.totalorder %s1076, 1
                  %s1081 = sphi %s995, %s995
                  %s1082 = sphi %s1054, %s1054
                $region218: #{custom-call.22} parent=214 // loop_header_branch
                  %1079 = sbr.rel (%p1077) target = $region222
                $region219: #{custom-call.22} parent=214 // loop_body
                  %v1083 = vld [vmem:[%s1081] sm:$0x3]
                  %1084 = vst [vmem:[%s1082] sm:$0x3] %v1083
                $region220: #{custom-call.22} parent=214 // loop_footer
                  %s1080 = sadd.s32 1, %s1076
                $region221: #{custom-call.22} parent=214 // loop_footer_branch
                  %1075 = sbr.rel target = $region217
                $region222: #{custom-call.22} parent=214 // loop_exit
                  _
              $region215: #{custom-call.22} parent=199 // pred_fallthru
                _
            $region200: #{custom-call.22} parent=195 // pred_fallthru
              _
            // Predicated region
            $region201: #{custom-call.22} parent=195 // pred_check
              _
            $region202: #{custom-call.22} parent=195 // pred_check_branch
              %1060 = sbr.rel (0) target = $region204
            $region203: #{custom-call.22} parent=195 // pred_region
              loop: start=0, step=1, limit=1
              $region205: #{custom-call.22} parent=203 // loop_pre_header
                _
              $region206: #{custom-call.22} parent=203 // loop_header
                %s1063 = sphi 0, %s1067
                %p1064 = scmp.ge.s32.totalorder %s1063, 1
                %s1068 = sphi %s995, %s995
                %s1069 = sphi %s1054, %s1054
              $region207: #{custom-call.22} parent=203 // loop_header_branch
                %1066 = sbr.rel (%p1064) target = $region211
              $region208: #{custom-call.22} parent=203 // loop_body
                %v1070 = vld [vmem:[%s1068] sm:$0x3]
                %1071 = vst [vmem:[%s1069] sm:$0x3] %v1070
              $region209: #{custom-call.22} parent=203 // loop_footer
                %s1067 = sadd.s32 1, %s1063
              $region210: #{custom-call.22} parent=203 // loop_footer_branch
                %1062 = sbr.rel target = $region206
              $region211: #{custom-call.22} parent=203 // loop_exit
                _
            $region204: #{custom-call.22} parent=195 // pred_fallthru
              _
          $region196: #{custom-call.22} parent=191 // pred_fallthru
            _
          %1085 = vnop
        $region192: #{custom-call.22} parent=139 // pred_fallthru
          _
        %s1086 = smul.addr %s17, 2
        %s1087 = scalar_lea.vmem %s6, %s1086
        // Predicated region
        $region223: #{custom-call.22} parent=139 // pred_check
          _
        $region224: #{custom-call.22} parent=139 // pred_check_branch
          %1089 = sbr.rel (0) target = $region226
        $region225: #{custom-call.22} parent=139 // pred_region
          // Predicated region
          $region227: #{custom-call.22} parent=225 // pred_check
            _
          $region228: #{custom-call.22} parent=225 // pred_check_branch
            %1091 = sbr.rel target = $region230
          $region229: #{custom-call.22} parent=225 // pred_region
            // Predicated region
            $region242: #{custom-call.22} parent=229 // pred_check
              _
            $region243: #{custom-call.22} parent=229 // pred_check_branch
              %1106 = sbr.rel (0) target = $region245
            $region244: #{custom-call.22} parent=229 // pred_region
              loop: start=0, step=1, limit=1
              $region246: #{custom-call.22} parent=244 // loop_pre_header
                _
              $region247: #{custom-call.22} parent=244 // loop_header
                %s1109 = sphi 0, %s1113
                %p1110 = scmp.ge.s32.totalorder %s1109, 1
                %s1114 = sphi %s999, %s999
                %s1115 = sphi %s1087, %s1087
              $region248: #{custom-call.22} parent=244 // loop_header_branch
                %1112 = sbr.rel (%p1110) target = $region252
              $region249: #{custom-call.22} parent=244 // loop_body
                %v1116 = vld [vmem:[%s1114] sm:$0x3]
                %1117 = vst [vmem:[%s1115] sm:$0x3] %v1116
              $region250: #{custom-call.22} parent=244 // loop_footer
                %s1113 = sadd.s32 1, %s1109
              $region251: #{custom-call.22} parent=244 // loop_footer_branch
                %1108 = sbr.rel target = $region247
              $region252: #{custom-call.22} parent=244 // loop_exit
                _
            $region245: #{custom-call.22} parent=229 // pred_fallthru
              _
          $region230: #{custom-call.22} parent=225 // pred_fallthru
            _
          // Predicated region
          $region231: #{custom-call.22} parent=225 // pred_check
            _
          $region232: #{custom-call.22} parent=225 // pred_check_branch
            %1093 = sbr.rel (0) target = $region234
          $region233: #{custom-call.22} parent=225 // pred_region
            loop: start=0, step=1, limit=1
            $region235: #{custom-call.22} parent=233 // loop_pre_header
              _
            $region236: #{custom-call.22} parent=233 // loop_header
              %s1096 = sphi 0, %s1100
              %p1097 = scmp.ge.s32.totalorder %s1096, 1
              %s1101 = sphi %s999, %s999
              %s1102 = sphi %s1087, %s1087
            $region237: #{custom-call.22} parent=233 // loop_header_branch
              %1099 = sbr.rel (%p1097) target = $region241
            $region238: #{custom-call.22} parent=233 // loop_body
              %v1103 = vld [vmem:[%s1101] sm:$0x3]
              %1104 = vst [vmem:[%s1102] sm:$0x3] %v1103
            $region239: #{custom-call.22} parent=233 // loop_footer
              %s1100 = sadd.s32 1, %s1096
            $region240: #{custom-call.22} parent=233 // loop_footer_branch
              %1095 = sbr.rel target = $region236
            $region241: #{custom-call.22} parent=233 // loop_exit
              _
          $region234: #{custom-call.22} parent=225 // pred_fallthru
            _
        $region226: #{custom-call.22} parent=139 // pred_fallthru
          _
        %1118 = vnop
        %s1119 = smul.addr %s17, 2
        %s1120 = scalar_lea.vmem %s7, %s1119
        // Predicated region
        $region253: #{custom-call.22} parent=139 // pred_check
          _
        $region254: #{custom-call.22} parent=139 // pred_check_branch
          %1122 = sbr.rel (0) target = $region256
        $region255: #{custom-call.22} parent=139 // pred_region
          // Predicated region
          $region257: #{custom-call.22} parent=255 // pred_check
            _
          $region258: #{custom-call.22} parent=255 // pred_check_branch
            %1124 = sbr.rel target = $region260
          $region259: #{custom-call.22} parent=255 // pred_region
            // Predicated region
            $region272: #{custom-call.22} parent=259 // pred_check
              _
            $region273: #{custom-call.22} parent=259 // pred_check_branch
              %1139 = sbr.rel (0) target = $region275
            $region274: #{custom-call.22} parent=259 // pred_region
              loop: start=0, step=1, limit=1
              $region276: #{custom-call.22} parent=274 // loop_pre_header
                _
              $region277: #{custom-call.22} parent=274 // loop_header
                %s1142 = sphi 0, %s1146
                %p1143 = scmp.ge.s32.totalorder %s1142, 1
                %s1147 = sphi %s1003, %s1003
                %s1148 = sphi %s1120, %s1120
              $region278: #{custom-call.22} parent=274 // loop_header_branch
                %1145 = sbr.rel (%p1143) target = $region282
              $region279: #{custom-call.22} parent=274 // loop_body
                %v1149 = vld [vmem:[%s1147] sm:$0x3]
                %1150 = vst [vmem:[%s1148] sm:$0x3] %v1149
              $region280: #{custom-call.22} parent=274 // loop_footer
                %s1146 = sadd.s32 1, %s1142
              $region281: #{custom-call.22} parent=274 // loop_footer_branch
                %1141 = sbr.rel target = $region277
              $region282: #{custom-call.22} parent=274 // loop_exit
                _
            $region275: #{custom-call.22} parent=259 // pred_fallthru
              _
          $region260: #{custom-call.22} parent=255 // pred_fallthru
            _
          // Predicated region
          $region261: #{custom-call.22} parent=255 // pred_check
            _
          $region262: #{custom-call.22} parent=255 // pred_check_branch
            %1126 = sbr.rel (0) target = $region264
          $region263: #{custom-call.22} parent=255 // pred_region
            loop: start=0, step=1, limit=1
            $region265: #{custom-call.22} parent=263 // loop_pre_header
              _
            $region266: #{custom-call.22} parent=263 // loop_header
              %s1129 = sphi 0, %s1133
              %p1130 = scmp.ge.s32.totalorder %s1129, 1
              %s1134 = sphi %s1003, %s1003
              %s1135 = sphi %s1120, %s1120
            $region267: #{custom-call.22} parent=263 // loop_header_branch
              %1132 = sbr.rel (%p1130) target = $region271
            $region268: #{custom-call.22} parent=263 // loop_body
              %v1136 = vld [vmem:[%s1134] sm:$0x3]
              %1137 = vst [vmem:[%s1135] sm:$0x3] %v1136
            $region269: #{custom-call.22} parent=263 // loop_footer
              %s1133 = sadd.s32 1, %s1129
            $region270: #{custom-call.22} parent=263 // loop_footer_branch
              %1128 = sbr.rel target = $region266
            $region271: #{custom-call.22} parent=263 // loop_exit
              _
          $region264: #{custom-call.22} parent=255 // pred_fallthru
            _
        $region256: #{custom-call.22} parent=139 // pred_fallthru
          _
        %1151 = vnop
        %s1152 = smul.addr %s17, 2
        %s1153 = scalar_lea.vmem %s8, %s1152
        // Predicated region
        $region283: #{custom-call.22} parent=139 // pred_check
          _
        $region284: #{custom-call.22} parent=139 // pred_check_branch
          %1155 = sbr.rel (0) target = $region286
        $region285: #{custom-call.22} parent=139 // pred_region
          // Predicated region
          $region287: #{custom-call.22} parent=285 // pred_check
            _
          $region288: #{custom-call.22} parent=285 // pred_check_branch
            %1157 = sbr.rel target = $region290
          $region289: #{custom-call.22} parent=285 // pred_region
            // Predicated region
            $region302: #{custom-call.22} parent=289 // pred_check
              _
            $region303: #{custom-call.22} parent=289 // pred_check_branch
              %1172 = sbr.rel (0) target = $region305
            $region304: #{custom-call.22} parent=289 // pred_region
              loop: start=0, step=1, limit=1
              $region306: #{custom-call.22} parent=304 // loop_pre_header
                _
              $region307: #{custom-call.22} parent=304 // loop_header
                %s1175 = sphi 0, %s1179
                %p1176 = scmp.ge.s32.totalorder %s1175, 1
                %s1180 = sphi %s1007, %s1007
                %s1181 = sphi %s1153, %s1153
              $region308: #{custom-call.22} parent=304 // loop_header_branch
                %1178 = sbr.rel (%p1176) target = $region312
              $region309: #{custom-call.22} parent=304 // loop_body
                %v1182 = vld [vmem:[%s1180] sm:$0x3]
                %1183 = vst [vmem:[%s1181] sm:$0x3] %v1182
              $region310: #{custom-call.22} parent=304 // loop_footer
                %s1179 = sadd.s32 1, %s1175
              $region311: #{custom-call.22} parent=304 // loop_footer_branch
                %1174 = sbr.rel target = $region307
              $region312: #{custom-call.22} parent=304 // loop_exit
                _
            $region305: #{custom-call.22} parent=289 // pred_fallthru
              _
          $region290: #{custom-call.22} parent=285 // pred_fallthru
            _
          // Predicated region
          $region291: #{custom-call.22} parent=285 // pred_check
            _
          $region292: #{custom-call.22} parent=285 // pred_check_branch
            %1159 = sbr.rel (0) target = $region294
          $region293: #{custom-call.22} parent=285 // pred_region
            loop: start=0, step=1, limit=1
            $region295: #{custom-call.22} parent=293 // loop_pre_header
              _
            $region296: #{custom-call.22} parent=293 // loop_header
              %s1162 = sphi 0, %s1166
              %p1163 = scmp.ge.s32.totalorder %s1162, 1
              %s1167 = sphi %s1007, %s1007
              %s1168 = sphi %s1153, %s1153
            $region297: #{custom-call.22} parent=293 // loop_header_branch
              %1165 = sbr.rel (%p1163) target = $region301
            $region298: #{custom-call.22} parent=293 // loop_body
              %v1169 = vld [vmem:[%s1167] sm:$0x3]
              %1170 = vst [vmem:[%s1168] sm:$0x3] %v1169
            $region299: #{custom-call.22} parent=293 // loop_footer
              %s1166 = sadd.s32 1, %s1162
            $region300: #{custom-call.22} parent=293 // loop_footer_branch
              %1161 = sbr.rel target = $region296
            $region301: #{custom-call.22} parent=293 // loop_exit
              _
          $region294: #{custom-call.22} parent=285 // pred_fallthru
            _
        $region286: #{custom-call.22} parent=139 // pred_fallthru
          _
        %1184 = vnop
        %s1185 = smul.addr %s17, 2
        %s1186 = scalar_lea.vmem %s9, %s1185
        // Predicated region
        $region313: #{custom-call.22} parent=139 // pred_check
          _
        $region314: #{custom-call.22} parent=139 // pred_check_branch
          %1188 = sbr.rel (0) target = $region316
        $region315: #{custom-call.22} parent=139 // pred_region
          // Predicated region
          $region317: #{custom-call.22} parent=315 // pred_check
            _
          $region318: #{custom-call.22} parent=315 // pred_check_branch
            %1190 = sbr.rel target = $region320
          $region319: #{custom-call.22} parent=315 // pred_region
            // Predicated region
            $region332: #{custom-call.22} parent=319 // pred_check
              _
            $region333: #{custom-call.22} parent=319 // pred_check_branch
              %1205 = sbr.rel (0) target = $region335
            $region334: #{custom-call.22} parent=319 // pred_region
              loop: start=0, step=1, limit=1
              $region336: #{custom-call.22} parent=334 // loop_pre_header
                _
              $region337: #{custom-call.22} parent=334 // loop_header
                %s1208 = sphi 0, %s1212
                %p1209 = scmp.ge.s32.totalorder %s1208, 1
                %s1213 = sphi %s1011, %s1011
                %s1214 = sphi %s1186, %s1186
              $region338: #{custom-call.22} parent=334 // loop_header_branch
                %1211 = sbr.rel (%p1209) target = $region342
              $region339: #{custom-call.22} parent=334 // loop_body
                %v1215 = vld [vmem:[%s1213] sm:$0x3]
                %1216 = vst [vmem:[%s1214] sm:$0x3] %v1215
              $region340: #{custom-call.22} parent=334 // loop_footer
                %s1212 = sadd.s32 1, %s1208
              $region341: #{custom-call.22} parent=334 // loop_footer_branch
                %1207 = sbr.rel target = $region337
              $region342: #{custom-call.22} parent=334 // loop_exit
                _
            $region335: #{custom-call.22} parent=319 // pred_fallthru
              _
          $region320: #{custom-call.22} parent=315 // pred_fallthru
            _
          // Predicated region
          $region321: #{custom-call.22} parent=315 // pred_check
            _
          $region322: #{custom-call.22} parent=315 // pred_check_branch
            %1192 = sbr.rel (0) target = $region324
          $region323: #{custom-call.22} parent=315 // pred_region
            loop: start=0, step=1, limit=1
            $region325: #{custom-call.22} parent=323 // loop_pre_header
              _
            $region326: #{custom-call.22} parent=323 // loop_header
              %s1195 = sphi 0, %s1199
              %p1196 = scmp.ge.s32.totalorder %s1195, 1
              %s1200 = sphi %s1011, %s1011
              %s1201 = sphi %s1186, %s1186
            $region327: #{custom-call.22} parent=323 // loop_header_branch
              %1198 = sbr.rel (%p1196) target = $region331
            $region328: #{custom-call.22} parent=323 // loop_body
              %v1202 = vld [vmem:[%s1200] sm:$0x3]
              %1203 = vst [vmem:[%s1201] sm:$0x3] %v1202
            $region329: #{custom-call.22} parent=323 // loop_footer
              %s1199 = sadd.s32 1, %s1195
            $region330: #{custom-call.22} parent=323 // loop_footer_branch
              %1194 = sbr.rel target = $region326
            $region331: #{custom-call.22} parent=323 // loop_exit
              _
          $region324: #{custom-call.22} parent=315 // pred_fallthru
            _
        $region316: #{custom-call.22} parent=139 // pred_fallthru
          _
        %1217 = vnop
      $region140: #{custom-call.22} parent=5 // pred_fallthru
        _
      %p1218 = scmp.le.s32.totalorder 2, %s12
      // Predicated region
      $region343: #{custom-call.22} parent=5 // pred_check
        %p1219 = pneg %p1218
      $region344: #{custom-call.22} parent=5 // pred_check_branch
        %1221 = sbr.rel (%p1219) target = $region346
      $region345: #{custom-call.22} parent=5 // pred_region
        %s1222 = ssub.s32 %s12, 2
        // Predicated region
        $region347: #{custom-call.22} parent=345 // pred_check
          %p1223 = pneg %p43
        $region348: #{custom-call.22} parent=345 // pred_check_branch
          %1225 = sbr.rel (%p1223) target = $region350
        $region349: #{custom-call.22} parent=345 // pred_region
          %s1226 = sand.u32 %s28, 1
          %s1227 = sand.u32 %s28, 1
          %s1228 = smul.addr %s1227, 2
          %s1229 = scalar_lea.vmem [#allocation9], %s1228
        $region350: #{custom-call.22} parent=345 // pred_fallthru
          _
        // Predicated region
        $region351: #{custom-call.22} parent=345 // pred_check
          %p1230 = pneg %p71
        $region352: #{custom-call.22} parent=345 // pred_check_branch
          %1232 = sbr.rel (%p1230) target = $region354
        $region353: #{custom-call.22} parent=345 // pred_region
          %s1233 = sand.u32 %s56, 1
          %s1234 = sand.u32 %s56, 1
          %s1235 = smul.addr %s1234, 2
          %s1236 = scalar_lea.vmem [#allocation11], %s1235
        $region354: #{custom-call.22} parent=345 // pred_fallthru
          _
        %s1237 = sand.u32 %s18, 1
        %s1238 = sand.u32 %s18, 1
        %s1239 = smul.addr %s1238, 2
        %s1240 = scalar_lea.vmem [#allocation13], %s1239
        %s1241 = sand.u32 %s18, 1
        %s1242 = sand.u32 %s18, 1
        %s1243 = smul.addr %s1242, 2
        %s1244 = scalar_lea.vmem [#allocation15], %s1243
        %s1245 = sand.u32 %s18, 1
        %s1246 = sand.u32 %s18, 1
        %s1247 = smul.addr %s1246, 2
        %s1248 = scalar_lea.vmem [#allocation17], %s1247
        %s1249 = sand.u32 %s18, 1
        %s1250 = sand.u32 %s18, 1
        %s1251 = smul.addr %s1250, 2
        %s1252 = scalar_lea.vmem [#allocation19], %s1251
      $region346: #{custom-call.22} parent=5 // pred_fallthru
        _
    $region6: #{custom-call.22} parent=1 // loop_footer
      %s16 = sadd.s32 1, %s12
    $region7: #{custom-call.22} parent=1 // loop_footer_branch
      %11 = sbr.rel target = $region3
    $region8: #{custom-call.22} parent=1 // loop_exit
      _

// kernel: reverse
$region0: #{reverse}
  %s0 = inlined_call_operand.vmem [shape: f32[2,3], index: 0, kind: input, shape index: {}]
  %s1 = inlined_call_operand.vmem [shape: f32[2,3], index: 1, kind: output, shape index: {}]
  %v2 = vlaneseq
  %v3 = vsub.s32 2, %v2
  %4 = vset.pattern.permute.xlu0 %v3
  $region1: #{reverse} parent=0
    #allocation0 [shape = 'u8[4096]{0}', space=vmem, size = 0x1000, scoped, tag = 'operand span for operand 0']
    #allocation1 [shape = 'u8[1024]{0}', space=vmem, size = 0x400, scoped, tag = 'packed  for operand 0']
    #allocation2 [shape = 'u8[4096]{0}', space=vmem, size = 0x1000, scoped, tag = 'operand span for operand 1']
    #allocation3 [shape = 'u8[1024]{0}', space=vmem, size = 0x400, scoped, tag = 'packed  for operand 1']
    // Predicated region
    $region2: #{reverse} parent=1 // pred_check
      _
    $region3: #{reverse} parent=1 // pred_check_branch
      %6 = sbr.rel (0) target = $region5
    $region4: #{reverse} parent=1 // pred_region
      // Predicated region
      $region6: #{reverse} parent=4 // pred_check
        _
      $region7: #{reverse} parent=4 // pred_check_branch
        %8 = sbr.rel target = $region9
      $region8: #{reverse} parent=4 // pred_region
        // Predicated region
        $region21: #{reverse} parent=8 // pred_check
          _
        $region22: #{reverse} parent=8 // pred_check_branch
          %23 = sbr.rel (0) target = $region24
        $region23: #{reverse} parent=8 // pred_region
          loop: start=0, step=1, limit=1
          $region25: #{reverse} parent=23 // loop_pre_header
            _
          $region26: #{reverse} parent=23 // loop_header
            %s26 = sphi 0, %s30
            %p27 = scmp.ge.s32.totalorder %s26, 1
            %s31 = sphi %s0, %s0
            %s32 = sphi [#allocation1], [#allocation1]
          $region27: #{reverse} parent=23 // loop_header_branch
            %29 = sbr.rel (%p27) target = $region31
          $region28: #{reverse} parent=23 // loop_body
            %v33 = vld [vmem:[%s31] sm:$0x3]
            %34 = vst [vmem:[%s32] sm:$0x3] %v33
          $region29: #{reverse} parent=23 // loop_footer
            %s30 = sadd.s32 1, %s26
          $region30: #{reverse} parent=23 // loop_footer_branch
            %25 = sbr.rel target = $region26
          $region31: #{reverse} parent=23 // loop_exit
            _
        $region24: #{reverse} parent=8 // pred_fallthru
          _
      $region9: #{reverse} parent=4 // pred_fallthru
        _
      // Predicated region
      $region10: #{reverse} parent=4 // pred_check
        _
      $region11: #{reverse} parent=4 // pred_check_branch
        %10 = sbr.rel (0) target = $region13
      $region12: #{reverse} parent=4 // pred_region
        loop: start=0, step=1, limit=1
        $region14: #{reverse} parent=12 // loop_pre_header
          _
        $region15: #{reverse} parent=12 // loop_header
          %s13 = sphi 0, %s17
          %p14 = scmp.ge.s32.totalorder %s13, 1
          %s18 = sphi %s0, %s0
          %s19 = sphi [#allocation1], [#allocation1]
        $region16: #{reverse} parent=12 // loop_header_branch
          %16 = sbr.rel (%p14) target = $region20
        $region17: #{reverse} parent=12 // loop_body
          %v20 = vld [vmem:[%s18] sm:$0x3]
          %21 = vst [vmem:[%s19] sm:$0x3] %v20
        $region18: #{reverse} parent=12 // loop_footer
          %s17 = sadd.s32 1, %s13
        $region19: #{reverse} parent=12 // loop_footer_branch
          %12 = sbr.rel target = $region15
        $region20: #{reverse} parent=12 // loop_exit
          _
      $region13: #{reverse} parent=4 // pred_fallthru
        _
    $region5: #{reverse} parent=1 // pred_fallthru
      _
    %35 = vnop
    %s37 = sshllo.u32 0, 2
    %v38 = vld [vmem:[#allocation1] sm:%s37]
    %39 = vst [vmem:[#allocation0] sm:%s37] %v38
    %v40 = vld [vmem:[#allocation0] sm:$0xff]
    %41 = vperm.xlu0 %4, %v40
    %v42 = vpop.permute.xlu0 %41
    %43 = vst [vmem:[#allocation2] sm:$0xff] %v42
    %s45 = sshllo.u32 0, 2
    %v47 = vld [vmem:[#allocation2] sm:%s45]
    %s48 = sshllo.u32 0, 2
    %49 = vst [vmem:[#allocation3] sm:%s48] %v47
    // Predicated region
    $region32: #{reverse} parent=1 // pred_check
      _
    $region33: #{reverse} parent=1 // pred_check_branch
      %51 = sbr.rel (0) target = $region35
    $region34: #{reverse} parent=1 // pred_region
      // Predicated region
      $region36: #{reverse} parent=34 // pred_check
        _
      $region37: #{reverse} parent=34 // pred_check_branch
        %53 = sbr.rel target = $region39
      $region38: #{reverse} parent=34 // pred_region
        // Predicated region
        $region51: #{reverse} parent=38 // pred_check
          _
        $region52: #{reverse} parent=38 // pred_check_branch
          %68 = sbr.rel (0) target = $region54
        $region53: #{reverse} parent=38 // pred_region
          loop: start=0, step=1, limit=1
          $region55: #{reverse} parent=53 // loop_pre_header
            _
          $region56: #{reverse} parent=53 // loop_header
            %s71 = sphi 0, %s75
            %p72 = scmp.ge.s32.totalorder %s71, 1
            %s76 = sphi [#allocation3], [#allocation3]
            %s77 = sphi %s1, %s1
          $region57: #{reverse} parent=53 // loop_header_branch
            %74 = sbr.rel (%p72) target = $region61
          $region58: #{reverse} parent=53 // loop_body
            %v78 = vld [vmem:[%s76] sm:$0x3]
            %79 = vst [vmem:[%s77] sm:$0x3] %v78
          $region59: #{reverse} parent=53 // loop_footer
            %s75 = sadd.s32 1, %s71
          $region60: #{reverse} parent=53 // loop_footer_branch
            %70 = sbr.rel target = $region56
          $region61: #{reverse} parent=53 // loop_exit
            _
        $region54: #{reverse} parent=38 // pred_fallthru
          _
      $region39: #{reverse} parent=34 // pred_fallthru
        _
      // Predicated region
      $region40: #{reverse} parent=34 // pred_check
        _
      $region41: #{reverse} parent=34 // pred_check_branch
        %55 = sbr.rel (0) target = $region43
      $region42: #{reverse} parent=34 // pred_region
        loop: start=0, step=1, limit=1
        $region44: #{reverse} parent=42 // loop_pre_header
          _
        $region45: #{reverse} parent=42 // loop_header
          %s58 = sphi 0, %s62
          %p59 = scmp.ge.s32.totalorder %s58, 1
          %s63 = sphi [#allocation3], [#allocation3]
          %s64 = sphi %s1, %s1
        $region46: #{reverse} parent=42 // loop_header_branch
          %61 = sbr.rel (%p59) target = $region50
        $region47: #{reverse} parent=42 // loop_body
          %v65 = vld [vmem:[%s63] sm:$0x3]
          %66 = vst [vmem:[%s64] sm:$0x3] %v65
        $region48: #{reverse} parent=42 // loop_footer
          %s62 = sadd.s32 1, %s58
        $region49: #{reverse} parent=42 // loop_footer_branch
          %57 = sbr.rel target = $region45
        $region50: #{reverse} parent=42 // loop_exit
          _
      $region43: #{reverse} parent=34 // pred_fallthru
        _
    $region35: #{reverse} parent=1 // pred_fallthru
      _
    %80 = vnop

// kernel: custom-call.16
$region0: #{custom-call.16}
  %s0 = inlined_call_operand.vmem [shape: f32[2,3,3], index: 0, kind: input, shape index: {}]
  %s1 = inlined_call_operand.vmem [shape: f32[2,3,3], index: 1, kind: output, shape index: {0}]
  %s2 = inlined_call_operand.vmem [shape: f32[2,3], index: 2, kind: output, shape index: {1}]
  %3 = xla_tuple %s1, %s2
  $region1: #{custom-call.16} parent=0
    #allocation0 [shape = 'u8[4096]{0}', space=vmem, size = 0x1000, scoped, tag = 'operand span for operand 0']
    #allocation1 [shape = 'u8[4096]{0}', space=vmem, size = 0x1000, scoped, tag = 'packed  for operand 0']
    #allocation2 [shape = 'u8[4096]{0}', space=vmem, size = 0x1000, scoped, tag = 'operand span for operand 1']
    #allocation3 [shape = 'u8[4096]{0}', space=vmem, size = 0x1000, scoped, tag = 'packed  for operand 1']
    #allocation4 [shape = 'u8[4096]{0}', space=vmem, size = 0x1000, scoped, tag = 'operand span for operand 2']
    #allocation5 [shape = 'u8[2048]{0}', space=vmem, size = 0x800, scoped, tag = 'packed  for operand 2']
    loop: start=0, step=1, limit=4
    $region2: #{custom-call.16} parent=1 // loop_pre_header
      _
    $region3: #{custom-call.16} parent=1 // loop_header
      %s5 = sphi 0, %s9
      %p6 = scmp.ge.s32.totalorder %s5, 4
      %s12 = sphi 0, %s31
      %s13 = sphi 0, %s27
      %s14 = sphi 0, %s23
      %s15 = sphi 0, %s12
      %s16 = sphi 0, %s13
      %s17 = sphi 0, %s14
      %s18 = sphi 0, %s15
      %s19 = sphi 0, %s16
      %s20 = sphi 0, %s17
      %s46 = sphi 0, %s48
      %s49 = sphi 0, %s46
      %s50 = sphi 0, %s49
      %s66 = sphi 0, %s50
    $region4: #{custom-call.16} parent=1 // loop_header_branch
      %8 = sbr.rel (%p6) target = $region8
    $region5: #{custom-call.16} parent=1 // loop_body
      %s10 = ssub.s32 %s5, 1
      %s11 = ssub.s32 %s5, 2
      %s21 = sadd.s32 1, %s14
      %p22 = scmp.ge.s32.totalorder %s21, 1
      %s23 = scalar_select %p22, 0, %s21
      %s24 = sadd.s32 1, %s13
      %s25 = scalar_select %p22, %s24, %s13
      %p26 = scmp.ge.s32.totalorder %s25, 1
      %s27 = scalar_select %p26, 0, %s25
      %s28 = sadd.s32 1, %s12
      %s29 = scalar_select %p26, %s28, %s12
      %p30 = scmp.ge.s32.totalorder %s29, 2
      %s31 = scalar_select %p30, 0, %s29
      %p32 = scmp.lt.s32.totalorder %s12, 0
      %s33 = ssub.s32 0, %s12
      %s34 = scalar_select %p32, %s33, %s12
      %s35 = sshrl.u32 %s34, 3
      %s36 = ssub.s32 0, %s35
      %s37 = scalar_select %p32, %s36, %s35
      %p38 = scmp.lt.s32.totalorder %s31, 0
      %s39 = ssub.s32 0, %s31
      %s40 = scalar_select %p38, %s39, %s31
      %s41 = sshrl.u32 %s40, 3
      %s42 = ssub.s32 0, %s41
      %s43 = scalar_select %p38, %s42, %s41
      %s44 = ssub.s32 %s37, %s43
      %p45 = scmp.eq.s32.totalorder %s44, 0
      %s47 = sadd.s32 %s46, 1
      %s48 = scalar_select %p45, %s46, %s47
      %p51 = pneg %p45
      %p52 = scmp.eq.s32.totalorder %s5, 1
      %p53 = por %p51, %p52
      %p54 = scmp.ne.s32.totalorder %s46, %s49
      %p55 = scmp.eq.s32.totalorder %s5, 0
      %p56 = por %p54, %p55
      %p57 = scmp.ne.s32.totalorder %s46, %s49
      %p58 = scmp.eq.s32.totalorder %s10, 1
      %p59 = por %p57, %p58
      %p60 = scmp.ne.s32.totalorder %s49, %s50
      %p61 = scmp.eq.s32.totalorder %s10, 0
      %p62 = por %p60, %p61
      %p63 = scmp.ne.s32.totalorder %s49, %s50
      %p64 = scmp.eq.s32.totalorder %s11, 1
      %p65 = por %p63, %p64
      %p67 = scmp.ne.s32.totalorder %s50, %s66
      %p68 = scmp.eq.s32.totalorder %s11, 0
      %p69 = por %p67, %p68
      %p70 = scmp.le.s32.totalorder 1, %s5
      %p71 = scmp.lt.s32.totalorder %s5, 3
      %p72 = pnand %p70, %p71
      %p73 = pneg %p72
      // Predicated region
      $region9: #{custom-call.16} parent=5 // pred_check
        _
      $region10: #{custom-call.16} parent=5 // pred_check_branch
        %75 = sbr.rel (%p72) target = $region12
      $region11: #{custom-call.16} parent=5 // pred_region
        %s76 = ssub.s32 %s5, 1
      $region12: #{custom-call.16} parent=5 // pred_fallthru
        _
      %p77 = scmp.lt.s32.totalorder %s5, 2
      // Predicated region
      $region13: #{custom-call.16} parent=5 // pred_check
        %p78 = pneg %p77
      $region14: #{custom-call.16} parent=5 // pred_check_branch
        %80 = sbr.rel (%p78) target = $region16
      $region15: #{custom-call.16} parent=5 // pred_region
        %s81 = sand.u32 %s5, 1
        %s82 = sand.u32 %s5, 1
        %s83 = smul.addr %s82, 4
        %s84 = scalar_lea.vmem [#allocation1], %s83
        %s85 = sadd.s32 %s14, %s13
        %s86 = sadd.s32 %s85, %s12
        %s87 = smul.addr %s86, 4
        %s88 = scalar_lea.vmem %s0, %s87
        // Predicated region
        $region17: #{custom-call.16} parent=15 // pred_check
          _
        $region18: #{custom-call.16} parent=15 // pred_check_branch
          %90 = sbr.rel (0) target = $region20
        $region19: #{custom-call.16} parent=15 // pred_region
          // Predicated region
          $region21: #{custom-call.16} parent=19 // pred_check
            _
          $region22: #{custom-call.16} parent=19 // pred_check_branch
            %92 = sbr.rel target = $region24
          $region23: #{custom-call.16} parent=19 // pred_region
            // Predicated region
            $region36: #{custom-call.16} parent=23 // pred_check
              _
            $region37: #{custom-call.16} parent=23 // pred_check_branch
              %107 = sbr.rel (0) target = $region39
            $region38: #{custom-call.16} parent=23 // pred_region
              loop: start=0, step=1, limit=1
              $region40: #{custom-call.16} parent=38 // loop_pre_header
                _
              $region41: #{custom-call.16} parent=38 // loop_header
                %s110 = sphi 0, %s114
                %p111 = scmp.ge.s32.totalorder %s110, 1
                %s115 = sphi %s88, %s88
                %s116 = sphi %s84, %s84
              $region42: #{custom-call.16} parent=38 // loop_header_branch
                %113 = sbr.rel (%p111) target = $region46
              $region43: #{custom-call.16} parent=38 // loop_body
                %v117 = vld [vmem:[%s115] sm:$0xf]
                %118 = vst [vmem:[%s116] sm:$0xf] %v117
              $region44: #{custom-call.16} parent=38 // loop_footer
                %s114 = sadd.s32 1, %s110
              $region45: #{custom-call.16} parent=38 // loop_footer_branch
                %109 = sbr.rel target = $region41
              $region46: #{custom-call.16} parent=38 // loop_exit
                _
            $region39: #{custom-call.16} parent=23 // pred_fallthru
              _
          $region24: #{custom-call.16} parent=19 // pred_fallthru
            _
          // Predicated region
          $region25: #{custom-call.16} parent=19 // pred_check
            _
          $region26: #{custom-call.16} parent=19 // pred_check_branch
            %94 = sbr.rel (0) target = $region28
          $region27: #{custom-call.16} parent=19 // pred_region
            loop: start=0, step=1, limit=1
            $region29: #{custom-call.16} parent=27 // loop_pre_header
              _
            $region30: #{custom-call.16} parent=27 // loop_header
              %s97 = sphi 0, %s101
              %p98 = scmp.ge.s32.totalorder %s97, 1
              %s102 = sphi %s88, %s88
              %s103 = sphi %s84, %s84
            $region31: #{custom-call.16} parent=27 // loop_header_branch
              %100 = sbr.rel (%p98) target = $region35
            $region32: #{custom-call.16} parent=27 // loop_body
              %v104 = vld [vmem:[%s102] sm:$0xf]
              %105 = vst [vmem:[%s103] sm:$0xf] %v104
            $region33: #{custom-call.16} parent=27 // loop_footer
              %s101 = sadd.s32 1, %s97
            $region34: #{custom-call.16} parent=27 // loop_footer_branch
              %96 = sbr.rel target = $region30
            $region35: #{custom-call.16} parent=27 // loop_exit
              _
          $region28: #{custom-call.16} parent=19 // pred_fallthru
            _
        $region20: #{custom-call.16} parent=15 // pred_fallthru
          _
        %119 = vnop
      $region16: #{custom-call.16} parent=5 // pred_fallthru
        _
      %p120 = scmp.le.s32.totalorder 1, %s5
      %p121 = scmp.lt.s32.totalorder %s5, 3
      %p122 = pnand %p120, %p121
      %p123 = pneg %p122
      // Predicated region
      $region47: #{custom-call.16} parent=5 // pred_check
        _
      $region48: #{custom-call.16} parent=5 // pred_check_branch
        %125 = sbr.rel (%p122) target = $region50
      $region49: #{custom-call.16} parent=5 // pred_region
        #allocation6 [shape = 'f32[3,128]{1,0}', space=vmem, size = 0x1000, scoped, tag = 'scratch for Householder reflectors']
        %s126 = ssub.s32 %s5, 1
        %s127 = sand.u32 %s10, 1
        %s128 = sand.u32 %s10, 1
        %s129 = smul.addr %s128, 4
        %s130 = scalar_lea.vmem [#allocation1], %s129
        %s131 = sand.u32 %s10, 1
        %s132 = sand.u32 %s10, 1
        %s133 = smul.addr %s132, 4
        %s134 = scalar_lea.vmem [#allocation1], %s133
        %s135 = sand.u32 %s10, 1
        %s136 = sand.u32 %s10, 1
        %s137 = smul.addr %s136, 4
        %s138 = scalar_lea.vmem [#allocation3], %s137
        %p139 = pneg %p62
        %p140 = pneg %p59
        %s141 = sand.u32 %s49, 1
        %s142 = sand.u32 %s49, 1
        %s143 = smul.addr %s142, 2
        %s144 = scalar_lea.vmem [#allocation5], %s143
        %s146 = sshllo.u32 0, 4
        %v147 = vld [vmem:[%s134] sm:%s146]
        %148 = vst [vmem:[#allocation0] sm:%s146] %v147
        %p149 = scmp.lt.s32.totalorder %s15, 0
        %s150 = ssub.s32 0, %s15
        %s151 = scalar_select %p149, %s150, %s15
        %s152 = sshrl.u32 %s151, 3
        %s153 = ssub.s32 0, %s152
        %s154 = scalar_select %p149, %s153, %s152
        %s155 = sand.u32 %s15, 7
        %s156 = scalar_lea.vmem [#allocation4], %s155
        %v157 = vld [vmem:[#allocation0] sm:$0xff]
        %158 = vst [vmem:[#allocation2] sm:$0xff] %v157
        %159 = vst [vmem:[%s156] sm:$0x1] 0.0
        loop: start=0, step=1, limit=3
        $region51: #{custom-call.16} parent=49 // loop_pre_header
          _
        $region52: #{custom-call.16} parent=49 // loop_header
          %s161 = sphi 0, %s165
          %p162 = scmp.ge.s32.totalorder %s161, 3
        $region53: #{custom-call.16} parent=49 // loop_header_branch
          %164 = sbr.rel (%p162) target = $region57
        $region54: #{custom-call.16} parent=49 // loop_body
          %v166 = vld [vmem:[#allocation2] sm:$0xff]
          %v167 = vlaneseq
          %v168 = vshrl.u32 %v167, 7
          %v170 = vstv %s161
          %vm171 = vcmp.gt.s32.totalorder %v168, %v170
          %vm172 = vcmp.lt.s32.totalorder %v168, 3
          %vm173 = vmand %vm171, %vm172
          %v174 = vsel %vm173, %v166, 0.0
          %v175 = vmul.f32 %v174, %v174
          %v176 = vrot.slane %v175, 4
          %v177 = vadd.f32 %v175, %v176
          %v178 = vrot.slane %v177, 2
          %v179 = vadd.f32 %v177, %v178
          %v180 = vrot.slane %v179, 1
          %v181 = vadd.f32 %v179, %v180
          %v182 = vrsqrt.pop %v181
          %v183 = vmul.f32 %v181, %v182
          %vm184 = vcmp.eq.f32.partialorder %v181, inf
          %v185 = vsel %vm184, %v181, %v183
          %vm186 = vcmp.eq.f32.partialorder %v181, 0.0
          %v187 = vand.u32 %v181, 2147483648
          %v188 = vsel %vm186, %v187, %v185
          %vm189 = vcmp.eq.f32.partialorder %v181, 0.0
          %s190 = sshrl.u32 %s161, 3
          %s191 = sand.u32 %s161, 7
          %s192 = smul.addr %s190, 8
          %s193 = sadd.s32 %s191, %s192
          %s194 = scalar_lea.vmem [#allocation2], %s193
          %v195 = vld [vmem:[%s194] ss:$0 sm:$0xff]
          %v196 = vand.u32 2147483647, %v195
          %v197 = vmax.f32 %v196, 0.0
          %v198 = vand.u32 2147483647, %v188
          %v199 = vmax.f32 %v197, %v198
          %v200 = vrcp.pop %v199
          %v201 = vmul.f32 %v196, %v200
          %v202 = vmul.f32 %v201, %v201
          %v203 = vrcp.pop %v199
          %v204 = vmul.f32 0.0, %v203
          %v205 = vmul.f32 %v204, %v204
          %v206 = vadd.f32 %v202, %v205
          %v207 = vrcp.pop %v199
          %v208 = vmul.f32 %v198, %v207
          %v209 = vmul.f32 %v208, %v208
          %v210 = vadd.f32 %v206, %v209
          %vm211 = vcmp.eq.f32.partialorder %v199, 0.0
          %v212 = vrsqrt.pop %v210
          %v213 = vmul.f32 %v210, %v212
          %vm214 = vcmp.eq.f32.partialorder %v210, inf
          %v215 = vsel %vm214, %v210, %v213
          %vm216 = vcmp.eq.f32.partialorder %v210, 0.0
          %v217 = vand.u32 %v210, 2147483648
          %v218 = vsel %vm216, %v217, %v215
          %v219 = vmul.f32 %v199, %v218
          %v220 = vsel %vm211, 0.0, %v219
          %vm221 = vcmp.lt.f32.partialorder %v195, 0.0
          %v222 = vxor.u32 %v220, 2147483648
          %v223 = vsel %vm221, %v220, %v222
          %v224 = vsub.f32 %v223, %v195
          %v225 = vrcp.pop %v223
          %v226 = vmul.f32 %v224, %v225
          %v227 = vsel %vm189, %v195, %v223
          %v228 = vsel %vm189, 0.0, %v226
          %v229 = vsub.f32 %v195, %v227
          %s230 = smov [#allocation2]
          %v231 = vlaneseq
          %v232 = vshrl.u32 %v231, 7
          %v233 = vmov %v232
          %v234 = vld [vmem:[%s230] sm:$0xff]
          %v236 = vstv %s161
          %vm237 = vcmp.gt.s32.totalorder %v233, %v236
          %vm238 = vcmp.lt.s32.totalorder %v233, 3
          %vm239 = vmand %vm237, %vm238
          %v240 = vsel %vm239, %v234, 0.0
          %v241 = vrcp.pop %v229
          %v242 = vmul.f32 %v240, %v241
          %v243 = vsel %vm189, 0.0, %v242
          %v244 = vstv %s161
          %v245 = vlaneseq
          %v246 = vand.u32 %v245, 127
          %vm247 = vcmp.eq.s32.totalorder %v246, %v244
          %v248 = vsel %vm247, %v243, 0.0
          %249 = vadd.xlane.f32.xlu0 %v248
          %v250 = vpop.xlane.xlu0 %249
          %251 = vst [vmem:[#allocation6] sm:$0xff] %v250
          %s252 = scalar_lea.vmem [#allocation6], %s161
          %253 = vst [vmem:[%s252] sm:$0x1] 1.0
          %v254 = vstv %s161
          %v255 = vlaneseq
          %v256 = vand.u32 %v255, 127
          %vm257 = vcmp.eq.s32.totalorder %v256, %v254
          %v258 = vsel %vm257, %v228, 0.0
          %259 = vadd.xlane.f32.xlu0 %v258
          %v260 = vpop.xlane.xlu0 %259
          %v261 = vstv %s161
          %v262 = vlaneseq
          %v263 = vand.u32 %v262, 127
          %vm264 = vcmp.eq.s32.totalorder %v263, %v261
          %v265 = vld [vmem:[%s156] ss:$0 sm:$0xff]
          %v266 = vsel %vm264, %v260, %v265
          %267 = vst [vmem:[%s156] sm:$0x1] %v266
          %s268 = smov [#allocation2]
          %s269 = smov [#allocation6]
          %v270 = vlaneseq
          %v271 = vshrl.u32 %v270, 7
          %v272 = vmov %v271
          %v274 = vld [vmem:[%s269] sm:$0xff]
          %v275 = vld [vmem:[%s268] sm:$0xff]
          %v276 = vmul.f32 %v274, %v275
          %vm277 = vcmp.lt.s32.totalorder %v272, 3
          %v278 = vsel %vm277, %v276, 0.0
          %v279 = vrot.slane %v278, 4
          %v280 = vadd.f32 %v278, %v279
          %v281 = vrot.slane %v280, 2
          %v282 = vadd.f32 %v280, %v281
          %v283 = vrot.slane %v282, 1
          %v284 = vadd.f32 %v282, %v283
          %s285 = smov %s268
          %s286 = smov %s269
          %v287 = vlaneseq
          %v288 = vshrl.u32 %v287, 7
          %v289 = vmov %v288
          %v290 = vmul.f32 %v284, %v260
          %v292 = vlaneseq
          %v293 = vand.u32 %v292, 127
          %v294 = vld [vmem:[%s286] sm:$0xff]
          %v295 = vmul.f32 %v294, %v290
          %v296 = vld [vmem:[%s285] sm:$0xff]
          %v297 = vstv %s161
          %vm298 = vcmp.gt.s32.totalorder %v293, %v297
          %v299 = vsub.f32 %v296, %v295
          %v300 = vsel %vm298, %v299, %v296
          %v301 = vstv %s161
          %v302 = vlaneseq
          %v303 = vand.u32 %v302, 127
          %vm304 = vcmp.eq.s32.totalorder %v303, %v301
          %v305 = vstv %s161
          %vm306 = vcmp.ge.s32.totalorder %v289, %v305
          %vm307 = vmand %vm304, %vm306
          %v308 = vsel %vm307, %v294, %v300
          %309 = vst [vmem:[%s285] sm:$0xff] %v308
          %s310 = scalar_lea.vmem %s285, %s161
          %v311 = vld [vmem:[%s310] ss:$0 sm:$0xff]
          %v312 = vstv %s161
          %v313 = vlaneseq
          %v314 = vand.u32 %v313, 127
          %vm315 = vcmp.eq.s32.totalorder %v314, %v312
          %v316 = vsel %vm315, %v227, %v311
          %317 = vst [vmem:[%s310] sm:$0x1] %v316
        $region55: #{custom-call.16} parent=49 // loop_footer
          %s165 = sadd.s32 1, %s161
        $region56: #{custom-call.16} parent=49 // loop_footer_branch
          %160 = sbr.rel target = $region52
        $region57: #{custom-call.16} parent=49 // loop_exit
          _
        %s319 = sshllo.u32 0, 4
        %v321 = vld [vmem:[#allocation2] sm:%s319]
        %s322 = sshllo.u32 0, 4
        %323 = vst [vmem:[%s138] sm:%s322] %v321
        %s325 = sshllo.u32 0, 2
        %v327 = vld [vmem:[#allocation4] sm:%s325]
        %s328 = sshllo.u32 0, 2
        %329 = vst [vmem:[%s144] sm:%s328] %v327
        %s330 = sand.u32 %s10, 1
        %s331 = sand.u32 %s10, 1
        %s332 = smul.addr %s331, 4
        %s333 = scalar_lea.vmem [#allocation3], %s332
        %s334 = sand.u32 %s49, 1
        %s335 = sand.u32 %s49, 1
        %s336 = smul.addr %s335, 2
        %s337 = scalar_lea.vmem [#allocation5], %s336
        %s338 = sadd.s32 %s17, %s16
        %s339 = sadd.s32 %s338, %s15
        %s340 = smul.addr %s339, 4
        %s341 = scalar_lea.vmem %s1, %s340
        // Predicated region
        $region58: #{custom-call.16} parent=49 // pred_check
          _
        $region59: #{custom-call.16} parent=49 // pred_check_branch
          %343 = sbr.rel (0) target = $region61
        $region60: #{custom-call.16} parent=49 // pred_region
          // Predicated region
          $region62: #{custom-call.16} parent=60 // pred_check
            _
          $region63: #{custom-call.16} parent=60 // pred_check_branch
            %345 = sbr.rel target = $region65
          $region64: #{custom-call.16} parent=60 // pred_region
            // Predicated region
            $region77: #{custom-call.16} parent=64 // pred_check
              _
            $region78: #{custom-call.16} parent=64 // pred_check_branch
              %360 = sbr.rel (0) target = $region80
            $region79: #{custom-call.16} parent=64 // pred_region
              loop: start=0, step=1, limit=1
              $region81: #{custom-call.16} parent=79 // loop_pre_header
                _
              $region82: #{custom-call.16} parent=79 // loop_header
                %s363 = sphi 0, %s367
                %p364 = scmp.ge.s32.totalorder %s363, 1
                %s368 = sphi %s333, %s333
                %s369 = sphi %s341, %s341
              $region83: #{custom-call.16} parent=79 // loop_header_branch
                %366 = sbr.rel (%p364) target = $region87
              $region84: #{custom-call.16} parent=79 // loop_body
                %v370 = vld [vmem:[%s368] sm:$0xf]
                %371 = vst [vmem:[%s369] sm:$0xf] %v370
              $region85: #{custom-call.16} parent=79 // loop_footer
                %s367 = sadd.s32 1, %s363
              $region86: #{custom-call.16} parent=79 // loop_footer_branch
                %362 = sbr.rel target = $region82
              $region87: #{custom-call.16} parent=79 // loop_exit
                _
            $region80: #{custom-call.16} parent=64 // pred_fallthru
              _
          $region65: #{custom-call.16} parent=60 // pred_fallthru
            _
          // Predicated region
          $region66: #{custom-call.16} parent=60 // pred_check
            _
          $region67: #{custom-call.16} parent=60 // pred_check_branch
            %347 = sbr.rel (0) target = $region69
          $region68: #{custom-call.16} parent=60 // pred_region
            loop: start=0, step=1, limit=1
            $region70: #{custom-call.16} parent=68 // loop_pre_header
              _
            $region71: #{custom-call.16} parent=68 // loop_header
              %s350 = sphi 0, %s354
              %p351 = scmp.ge.s32.totalorder %s350, 1
              %s355 = sphi %s333, %s333
              %s356 = sphi %s341, %s341
            $region72: #{custom-call.16} parent=68 // loop_header_branch
              %353 = sbr.rel (%p351) target = $region76
            $region73: #{custom-call.16} parent=68 // loop_body
              %v357 = vld [vmem:[%s355] sm:$0xf]
              %358 = vst [vmem:[%s356] sm:$0xf] %v357
            $region74: #{custom-call.16} parent=68 // loop_footer
              %s354 = sadd.s32 1, %s350
            $region75: #{custom-call.16} parent=68 // loop_footer_branch
              %349 = sbr.rel target = $region71
            $region76: #{custom-call.16} parent=68 // loop_exit
              _
          $region69: #{custom-call.16} parent=60 // pred_fallthru
            _
        $region61: #{custom-call.16} parent=49 // pred_fallthru
          _
        %372 = vnop
        // Predicated region
        $region88: #{custom-call.16} parent=49 // pred_check
          %p373 = pneg %p59
        $region89: #{custom-call.16} parent=49 // pred_check_branch
          %375 = sbr.rel (%p373) target = $region91
        $region90: #{custom-call.16} parent=49 // pred_region
          %p376 = scmp.lt.s32.totalorder %s15, 0
          %s377 = ssub.s32 0, %s15
          %s378 = scalar_select %p376, %s377, %s15
          %s379 = sshrl.u32 %s378, 3
          %s380 = ssub.s32 0, %s379
          %s381 = scalar_select %p376, %s380, %s379
          %s382 = smul.addr %s381, 2
          %s383 = scalar_lea.vmem %s2, %s382
          // Predicated region
          $region92: #{custom-call.16} parent=90 // pred_check
            _
          $region93: #{custom-call.16} parent=90 // pred_check_branch
            %385 = sbr.rel (0) target = $region95
          $region94: #{custom-call.16} parent=90 // pred_region
            // Predicated region
            $region96: #{custom-call.16} parent=94 // pred_check
              _
            $region97: #{custom-call.16} parent=94 // pred_check_branch
              %387 = sbr.rel target = $region99
            $region98: #{custom-call.16} parent=94 // pred_region
              // Predicated region
              $region111: #{custom-call.16} parent=98 // pred_check
                _
              $region112: #{custom-call.16} parent=98 // pred_check_branch
                %402 = sbr.rel (0) target = $region114
              $region113: #{custom-call.16} parent=98 // pred_region
                loop: start=0, step=1, limit=1
                $region115: #{custom-call.16} parent=113 // loop_pre_header
                  _
                $region116: #{custom-call.16} parent=113 // loop_header
                  %s405 = sphi 0, %s409
                  %p406 = scmp.ge.s32.totalorder %s405, 1
                  %s410 = sphi %s337, %s337
                  %s411 = sphi %s383, %s383
                $region117: #{custom-call.16} parent=113 // loop_header_branch
                  %408 = sbr.rel (%p406) target = $region121
                $region118: #{custom-call.16} parent=113 // loop_body
                  %v412 = vld [vmem:[%s410] sm:$0x3]
                  %413 = vst [vmem:[%s411] sm:$0x3] %v412
                $region119: #{custom-call.16} parent=113 // loop_footer
                  %s409 = sadd.s32 1, %s405
                $region120: #{custom-call.16} parent=113 // loop_footer_branch
                  %404 = sbr.rel target = $region116
                $region121: #{custom-call.16} parent=113 // loop_exit
                  _
              $region114: #{custom-call.16} parent=98 // pred_fallthru
                _
            $region99: #{custom-call.16} parent=94 // pred_fallthru
              _
            // Predicated region
            $region100: #{custom-call.16} parent=94 // pred_check
              _
            $region101: #{custom-call.16} parent=94 // pred_check_branch
              %389 = sbr.rel (0) target = $region103
            $region102: #{custom-call.16} parent=94 // pred_region
              loop: start=0, step=1, limit=1
              $region104: #{custom-call.16} parent=102 // loop_pre_header
                _
              $region105: #{custom-call.16} parent=102 // loop_header
                %s392 = sphi 0, %s396
                %p393 = scmp.ge.s32.totalorder %s392, 1
                %s397 = sphi %s337, %s337
                %s398 = sphi %s383, %s383
              $region106: #{custom-call.16} parent=102 // loop_header_branch
                %395 = sbr.rel (%p393) target = $region110
              $region107: #{custom-call.16} parent=102 // loop_body
                %v399 = vld [vmem:[%s397] sm:$0x3]
                %400 = vst [vmem:[%s398] sm:$0x3] %v399
              $region108: #{custom-call.16} parent=102 // loop_footer
                %s396 = sadd.s32 1, %s392
              $region109: #{custom-call.16} parent=102 // loop_footer_branch
                %391 = sbr.rel target = $region105
              $region110: #{custom-call.16} parent=102 // loop_exit
                _
            $region103: #{custom-call.16} parent=94 // pred_fallthru
              _
          $region95: #{custom-call.16} parent=90 // pred_fallthru
            _
          %414 = vnop
        $region91: #{custom-call.16} parent=49 // pred_fallthru
          _
      $region50: #{custom-call.16} parent=5 // pred_fallthru
        _
      %p415 = scmp.le.s32.totalorder 2, %s5
      // Predicated region
      $region122: #{custom-call.16} parent=5 // pred_check
        %p416 = pneg %p415
      $region123: #{custom-call.16} parent=5 // pred_check_branch
        %418 = sbr.rel (%p416) target = $region125
      $region124: #{custom-call.16} parent=5 // pred_region
        %s419 = ssub.s32 %s5, 2
        %s420 = sand.u32 %s11, 1
        %s421 = sand.u32 %s11, 1
        %s422 = smul.addr %s421, 4
        %s423 = scalar_lea.vmem [#allocation3], %s422
        // Predicated region
        $region126: #{custom-call.16} parent=124 // pred_check
          %p424 = pneg %p65
        $region127: #{custom-call.16} parent=124 // pred_check_branch
          %426 = sbr.rel (%p424) target = $region129
        $region128: #{custom-call.16} parent=124 // pred_region
          %s427 = sand.u32 %s50, 1
          %s428 = sand.u32 %s50, 1
          %s429 = smul.addr %s428, 2
          %s430 = scalar_lea.vmem [#allocation5], %s429
        $region129: #{custom-call.16} parent=124 // pred_fallthru
          _
      $region125: #{custom-call.16} parent=5 // pred_fallthru
        _
    $region6: #{custom-call.16} parent=1 // loop_footer
      %s9 = sadd.s32 1, %s5
    $region7: #{custom-call.16} parent=1 // loop_footer_branch
      %4 = sbr.rel target = $region3
    $region8: #{custom-call.16} parent=1 // loop_exit
      _

</llo_original>
